<compile_context>
chip_gen: v7x
topology: tpu7x:2x2x1
jax: 0.10.0
libtpu: 0.0.40
codegen_flags: <defaults>
</compile_context>

<pallas_src>
import numpy as np

import jax
import jax.numpy as jnp
from jax import lax
from jax.experimental import pallas as pl
from jax.experimental.pallas import tpu as pltpu

SELU_ALPHA = 1.6732632423543772848170429916717
SELU_SCALE = 1.0507009873554804934193349852946


def dmon_net_kernel(x_ref, adj_ref, w1_ref, b1_ref, wm1_ref, bm1_ref,
                    wm2_ref, bm2_ref, st_ref, out_ref, loss_ref):
    f32 = jnp.float32
    bf16 = jnp.bfloat16

    Gb, N, _ = adj_ref.shape
    C = wm2_ref.shape[-1]

    x = x_ref[...]                                                  # (Gb*N, F) bf16

    # ---- GCNConv: relu(D^-1/2 (A+I) D^-1/2 (x W1) + b1), normalization folded
    # into vectors.  The shared-weight matmul is flattened over all Gb graphs
    # (fills the MXU M-dimension); only the A propagation is per-graph.
    xw = jnp.dot(x, w1_ref[...], preferred_element_type=f32)        # (Gb*N, H)

    h_parts, deg_parts = [], []
    for g in range(Gb):                                             # unrolled (Python const)
        A_g = adj_ref[g]                                            # (N, N) bf16 0/1
        # Row degrees via an XLU lane reduce (overlaps with the MXU x@W1 work).
        deg_g = jnp.sum(A_g.astype(f32), axis=-1, keepdims=True)    # (N, 1)
        deg_parts.append(deg_g)
        dinv = lax.rsqrt(deg_g + 1.0)                               # self-loop folded in
        xw_g = xw[g * N:(g + 1) * N, :]                             # (N, H)
        v_g = (dinv * xw_g).astype(bf16)
        av_g = jnp.dot(A_g, v_g, preferred_element_type=f32)        # (N, H)
        h_parts.append(dinv * av_g + (dinv * dinv) * xw_g)
    h = jnp.maximum(jnp.concatenate(h_parts, axis=0) + b1_ref[...], 0.0)   # (Gb*N, H)
    h_bf = h.astype(bf16)                                           # reused by MLP & pooling

    # ---- DMoNPooling select MLP (flattened) + softmax in lane-dense (C, Gb*N) layout.
    # TODO(synk): dropout(p=0.5) before the softmax is identity (eval semantics).
    z = jnp.dot(h_bf, wm1_ref[...], preferred_element_type=f32) + bm1_ref[...]
    logits = (jnp.dot(z.astype(bf16), wm2_ref[...], preferred_element_type=f32)
              + bm2_ref[...])                                       # (Gb*N, C)
    lt = jnp.transpose(logits)                                      # (C, Gb*N), single transpose
    lt = lt - jnp.max(lt, axis=0, keepdims=True)
    es = jnp.exp(lt)
    st = es / jnp.sum(es, axis=0, keepdims=True)                    # exact denominator
    st_bf = st.astype(bf16)
    st_ref[...] = st                                                # lane-dense (C, Gb*N) store

    out_parts, loss_parts = [], []
    for g in range(Gb):
        cols = slice(g * N, (g + 1) * N)
        st_g, st_g_bf = st[:, cols], st_bf[:, cols]                 # (C, N)
        h_g_bf = h_bf[g * N:(g + 1) * N, :]                         # (N, H)

        # pooled features: selu(S^T H)   (clamp before exp for safety)
        pooled = jnp.dot(st_g_bf, h_g_bf, preferred_element_type=f32)     # (C, H)
        out_parts.append(SELU_SCALE * jnp.where(
            pooled > 0.0, pooled,
            SELU_ALPHA * (jnp.exp(jnp.minimum(pooled, 0.0)) - 1.0)))

        # spectral loss (trace-only, no (C,C) coarsened adjacency; valid for any A):
        #   Tr(S^T A S)        = sum(S^T * (S^T A))
        #   Tr((S^T d)(d^T S)) = sum((S^T d)^2)
        stA = jnp.dot(st_g_bf, adj_ref[g], preferred_element_type=f32)    # (C, N)
        trace_as = jnp.sum(st_g * stA, axis=(0, 1), keepdims=True)        # (1, 1)
        deg_g = deg_parts[g]                                              # (N, 1)
        sd = jnp.dot(st_g_bf, deg_g.astype(bf16), preferred_element_type=f32)  # (C, 1)
        trace_dd = jnp.sum(sd * sd, axis=(0, 1), keepdims=True)           # (1, 1)
        two_m = jnp.maximum(jnp.sum(deg_g, axis=(0, 1), keepdims=True), 1e-12)
        spectral_loss = -(trace_as - trace_dd / two_m) / two_m            # exact 1/(2m)

        # cluster loss: ||sum_n s_n||_2 / N * sqrt(C) - 1
        csz = jnp.sum(st_g, axis=-1, keepdims=True)                       # (C, 1)
        csz_norm = jnp.sqrt(jnp.sum(csz * csz, axis=(0, 1), keepdims=True))
        cluster_loss = csz_norm * ((float(C) ** 0.5) / float(N)) - 1.0

        loss_parts.append(spectral_loss + cluster_loss)                   # (1, 1)

    out_ref[...] = jnp.concatenate(out_parts, axis=1)                     # (C, Gb*H), lane-dense
    loss_ref[0] = jnp.concatenate(loss_parts, axis=1)                     # (1, Gb) row


def _pick_graphs_per_step(num_graphs, num_nodes, target_rows=256, min_steps=2):
    """Largest divisor of num_graphs whose row count hits the MXU target (256 rows
    fills v6e/v7x; >=128 fills v5e) while keeping >= min_steps grid steps so the
    'parallel' grid axis can still shard across v7x's two TensorCores."""
    divisors = [d for d in range(1, num_graphs + 1)
                if num_graphs % d == 0 and d * num_nodes <= max(num_nodes, target_rows)]
    preferred = [d for d in divisors if num_graphs // d >= min_steps]
    pool = preferred if preferred else divisors
    return max(pool) if pool else 1


@jax.jit
def dmon_net_forward_batched(x, adj, params):
    """x: (G,N,F) float, adj: (G,N,N) 0/1.  Returns (s (G,N,C), pooled (G,C,H), loss (G,))."""
    G, N, F = x.shape
    H = params["w1"].shape[1]
    C = params["wm2"].shape[1]
    Gb = _pick_graphs_per_step(G, N)
    steps = G // Gb

    bf16 = jnp.bfloat16
    x_flat = x.astype(bf16).reshape(G * N, F)   # flattened rows feed the MXU directly
    adj_bf = adj.astype(bf16)                   # exact for 0/1 adjacency
    # (int8 HBM storage of adj would halve DMA bytes further; bf16 keeps the
    #  in-kernel cast count minimal at these sizes.)

    # VMEM budget from the actual block bytes (double-buffered in/out) plus headroom
    # for the in-kernel f32 temporaries -- not a fixed 32 MiB.
    in_block_bytes = (Gb * N * F * 2 + Gb * N * N * 2
                      + F * H * 2 + H * H * 2 + H * C * 2 + (H + H + C) * 4)
    out_block_bytes = (C * Gb * N + C * Gb * H + Gb) * 4
    tmp_bytes = 6 * Gb * N * H * 4              # xw / h / z / bf16 copies (conservative)
    vmem_limit = int(2 * (in_block_bytes + out_block_bytes) + tmp_bytes + (2 << 20))

    st, pooled, loss = pl.pallas_call(
        dmon_net_kernel,
        grid=(steps,),
        in_specs=[
            pl.BlockSpec((Gb * N, F), lambda g: (g, 0)),    # x (rows flattened across graphs)
            pl.BlockSpec((Gb, N, N), lambda g: (g, 0, 0)),  # adj (bf16)
            pl.BlockSpec((F, H), lambda g: (0, 0)),         # w1
            pl.BlockSpec((1, H), lambda g: (0, 0)),         # b1
            pl.BlockSpec((H, H), lambda g: (0, 0)),         # wm1
            pl.BlockSpec((1, H), lambda g: (0, 0)),         # bm1
            pl.BlockSpec((H, C), lambda g: (0, 0)),         # wm2
            pl.BlockSpec((1, C), lambda g: (0, 0)),         # bm2
        ],
        out_specs=(
            pl.BlockSpec((C, Gb * N), lambda g: (0, g)),    # s^T, lane-dense
            pl.BlockSpec((C, Gb * H), lambda g: (0, g)),    # pooled^T, lane-dense
            pl.BlockSpec((1, 1, Gb), lambda g: (g, 0, 0)),  # per-step loss row
        ),
        out_shape=(
            jax.ShapeDtypeStruct((C, G * N), jnp.float32),
            jax.ShapeDtypeStruct((C, G * H), jnp.float32),
            jax.ShapeDtypeStruct((steps, 1, Gb), jnp.float32),
        ),
        compiler_params=pltpu.CompilerParams(
            dimension_semantics=("parallel",),              # graph batches are independent
            vmem_limit_bytes=vmem_limit,
        ),
    )(x_flat, adj_bf,
      params["w1"].astype(bf16), params["b1"],
      params["wm1"].astype(bf16), params["bm1"],
      params["wm2"].astype(bf16), params["bm2"])

    s = jnp.transpose(st, (1, 0)).reshape(G, N, C)              # back to PyTorch (N, C)
    pooled_out = jnp.transpose(pooled.reshape(C, G, H), (1, 0, 2))
    return s, pooled_out, loss.reshape(G)


def dmon_net_forward(x, adj, params):
    """Single-graph path matching Net.forward: returns (s[0], x[0], sp1 + c1)."""
    s, pooled, loss = dmon_net_forward_batched(x[None], adj[None], params)
    return s[0], pooled[0], loss[0]


def dmon_net_reference(x, adj, params):
    """Pure-JAX f32 reference of Net.forward for one graph (correctness check)."""
    A = adj.astype(jnp.float32)
    N = A.shape[0]
    C = params["wm2"].shape[1]
    A_sl = A + jnp.eye(N, dtype=jnp.float32)
    deg = jnp.sum(A_sl, axis=-1, keepdims=True)
    dinv = 1.0 / jnp.sqrt(deg)
    A_hat = A_sl * dinv * dinv.T
    h = jax.nn.relu(A_hat @ (x @ params["w1"]) + params["b1"])
    z = h @ params["wm1"] + params["bm1"]
    logits = z @ params["wm2"] + params["bm2"]
    s = jax.nn.softmax(logits, axis=-1)
    pooled = jax.nn.selu(s.T @ h)
    out_adj = s.T @ A @ s
    degrees = jnp.sum(A, axis=-1, keepdims=True)
    two_m = jnp.sum(degrees)
    normalizer = ((s.T @ degrees) @ (degrees.T @ s)) / two_m
    spectral_loss = -jnp.trace(out_adj - normalizer) / two_m
    cluster_size = jnp.sum(s, axis=0)
    cluster_loss = jnp.linalg.norm(cluster_size) / N * jnp.sqrt(float(C)) - 1.0
    return s, pooled, spectral_loss + cluster_loss


def init_params(key, in_channels, hidden_channels, num_classes):
    k1, k2, k3 = jax.random.split(key, 3)

    def glorot(k, shape):
        fan_in, fan_out = shape
        lim = jnp.sqrt(6.0 / (fan_in + fan_out))
        return jax.random.uniform(k, shape, jnp.float32, -lim, lim)

    return dict(
        w1=glorot(k1, (in_channels, hidden_channels)),
        b1=jnp.zeros((1, hidden_channels), jnp.float32),
        wm1=glorot(k2, (hidden_channels, hidden_channels)),
        bm1=jnp.zeros((1, hidden_channels), jnp.float32),
        wm2=glorot(k3, (hidden_channels, num_classes)),
        bm2=jnp.zeros((1, num_classes), jnp.float32),
    )


if __name__ == "__main__":
    # 8 graphs -> graphs_per_step = 4 (Gb*N = 256 MXU rows) and 2 grid steps (megacore).
    G, N, F_IN, HIDDEN, NUM_CLASSES = 8, 64, 16, 64, 4

    key = jax.random.PRNGKey(0)
    kx, ka, kp = jax.random.split(key, 3)

    x = jax.random.normal(kx, (G, N, F_IN), jnp.float32)

    # Synthetic undirected graphs: symmetric 0/1 adjacency, no self loops
    # (exactly what to_dense_adj(edge_index)[0] produces for undirected graphs).
    upper = (jax.random.uniform(ka, (G, N, N)) < 0.1).astype(jnp.float32)
    upper = jnp.triu(upper, k=1)
    adj = upper + jnp.transpose(upper, (0, 2, 1))

    params = init_params(kp, F_IN, HIDDEN, NUM_CLASSES)

    s, pooled, loss = dmon_net_forward_batched(x, adj, params)
    jax.block_until_ready((s, pooled, loss))

    assert s.shape == (G, N, NUM_CLASSES)
    assert pooled.shape == (G, NUM_CLASSES, HIDDEN)
    assert loss.shape == (G,)

    # Loose-tolerance check vs. a pure-JAX f32 reference (the kernel uses bf16
    # MXU operands throughout, with f32 accumulation).
    for g in range(G):
        s_r, p_r, l_r = dmon_net_reference(x[g], adj[g], params)
        np.testing.assert_allclose(np.asarray(s[g]), np.asarray(s_r), rtol=5e-2, atol=5e-2)
        np.testing.assert_allclose(np.asarray(pooled[g]), np.asarray(p_r), rtol=5e-2, atol=5e-2)
        np.testing.assert_allclose(np.asarray(loss[g]), np.asarray(l_r), rtol=5e-2, atol=5e-2)

    # Single-graph path (the exact Net.forward return contract).
    s0, p0, l0 = dmon_net_forward(x[0], adj[0], params)
    jax.block_until_ready((s0, p0, l0))
    assert s0.shape == (N, NUM_CLASSES)
    assert p0.shape == (NUM_CLASSES, HIDDEN)
    assert l0.shape == ()

    print("KERNEL_OK")
</pallas_src>

<mosaic_0001>
module attributes {stable_mosaic.version = 11 : i64} {
  func.func @dmon_net_kernel(%arg0: i32, %arg1: memref<256x16xbf16, #tpu.memory_space<vmem>>, %arg2: memref<4x64x64xbf16, #tpu.memory_space<vmem>>, %arg3: memref<16x64xbf16, #tpu.memory_space<vmem>>, %arg4: memref<1x64xf32, #tpu.memory_space<vmem>>, %arg5: memref<64x64xbf16, #tpu.memory_space<vmem>>, %arg6: memref<1x64xf32, #tpu.memory_space<vmem>>, %arg7: memref<64x4xbf16, #tpu.memory_space<vmem>>, %arg8: memref<1x4xf32, #tpu.memory_space<vmem>>, %arg9: memref<4x256xf32, #tpu.memory_space<vmem>>, %arg10: memref<4x256xf32, #tpu.memory_space<vmem>>, %arg11: memref<1x1x4xf32, #tpu.memory_space<vmem>>) attributes {dimension_semantics = [#tpu.dimension_semantics<parallel>], iteration_bounds = array<i64: 2>, scalar_prefetch = 0 : i64, scratch_operands = 0 : i64, tpu.core_type = #tpu.core_type<tc>, window_params = [{transform_indices = @transform_0, window_bounds = array<i64: 256, 16>}, {transform_indices = @transform_1, window_bounds = array<i64: 4, 64, 64>}, {pipeline_mode = #tpu.pipeline_mode<synchronous>, transform_indices = @transform_2, window_bounds = array<i64: 16, 64>}, {pipeline_mode = #tpu.pipeline_mode<synchronous>, transform_indices = @transform_3, window_bounds = array<i64: 1, 64>}, {pipeline_mode = #tpu.pipeline_mode<synchronous>, transform_indices = @transform_4, window_bounds = array<i64: 64, 64>}, {pipeline_mode = #tpu.pipeline_mode<synchronous>, transform_indices = @transform_5, window_bounds = array<i64: 1, 64>}, {pipeline_mode = #tpu.pipeline_mode<synchronous>, transform_indices = @transform_6, window_bounds = array<i64: 64, 4>}, {pipeline_mode = #tpu.pipeline_mode<synchronous>, transform_indices = @transform_7, window_bounds = array<i64: 1, 4>}, {transform_indices = @transform_8, window_bounds = array<i64: 4, 256>}, {transform_indices = @transform_9, window_bounds = array<i64: 4, 256>}, {transform_indices = @transform_10, window_bounds = array<i64: 1, 1, 4>}]} {
    %c0 = arith.constant 0 : index
    %c0_0 = arith.constant 0 : index
    %0 = vector.load %arg1[%c0, %c0_0] : memref<256x16xbf16, #tpu.memory_space<vmem>>, vector<256x16xbf16>
    %c0_1 = arith.constant 0 : index
    %c0_2 = arith.constant 0 : index
    %1 = vector.load %arg3[%c0_1, %c0_2] : memref<16x64xbf16, #tpu.memory_space<vmem>>, vector<16x64xbf16>
    %cst = arith.constant dense<0.000000e+00> : vector<256x64xf32>
    %2 = tpu.matmul %0, %1, %cst {dimension_numbers = #tpu.dot_dimension_numbers<[1], [0], [0], [1], [0, 0, 1, 1], [], []>} : vector<256x16xbf16>, vector<16x64xbf16>, vector<256x64xf32> -> vector<256x64xf32>
    %c0_3 = arith.constant 0 : index
    %c0_4 = arith.constant 0 : index
    %c0_5 = arith.constant 0 : index
    %3 = vector.load %arg2[%c0_3, %c0_4, %c0_5] : memref<4x64x64xbf16, #tpu.memory_space<vmem>>, vector<1x64x64xbf16>
    %4 = vector.shape_cast %3 : vector<1x64x64xbf16> to vector<64x64xbf16>
    %5 = arith.extf %4 : vector<64x64xbf16> to vector<64x64xf32>
    %cst_6 = arith.constant dense<0.000000e+00> : vector<64xf32>
    %6 = vector.multi_reduction <add>, %5, %cst_6 [1] : vector<64x64xf32> to vector<64xf32>
    %7 = vector.shape_cast %6 : vector<64xf32> to vector<64x1xf32>
    %cst_7 = arith.constant 1.000000e+00 : f32
    %8 = vector.broadcast %cst_7 : f32 to vector<64x1xf32>
    %9 = arith.addf %7, %8 : vector<64x1xf32>
    %10 = math.rsqrt %9 : vector<64x1xf32>
    %11 = vector.extract_strided_slice %2 {offsets = [0, 0], sizes = [64, 64], strides = [1, 1]} : vector<256x64xf32> to vector<64x64xf32>
    %12 = vector.broadcast %10 : vector<64x1xf32> to vector<64x64xf32>
    %13 = arith.mulf %12, %11 : vector<64x64xf32>
    %14 = arith.truncf %13 : vector<64x64xf32> to vector<64x64xbf16>
    %cst_8 = arith.constant dense<0.000000e+00> : vector<64x64xf32>
    %15 = tpu.matmul %4, %14, %cst_8 {dimension_numbers = #tpu.dot_dimension_numbers<[1], [0], [0], [1], [0, 0, 1, 1], [], []>} : vector<64x64xbf16>, vector<64x64xbf16>, vector<64x64xf32> -> vector<64x64xf32>
    %16 = vector.broadcast %10 : vector<64x1xf32> to vector<64x64xf32>
    %17 = arith.mulf %16, %15 : vector<64x64xf32>
    %18 = arith.mulf %10, %10 : vector<64x1xf32>
    %19 = vector.broadcast %18 : vector<64x1xf32> to vector<64x64xf32>
    %20 = arith.mulf %19, %11 : vector<64x64xf32>
    %21 = arith.addf %17, %20 : vector<64x64xf32>
    %c1 = arith.constant 1 : index
    %c0_9 = arith.constant 0 : index
    %c0_10 = arith.constant 0 : index
    %22 = vector.load %arg2[%c1, %c0_9, %c0_10] : memref<4x64x64xbf16, #tpu.memory_space<vmem>>, vector<1x64x64xbf16>
    %23 = vector.shape_cast %22 : vector<1x64x64xbf16> to vector<64x64xbf16>
    %24 = arith.extf %23 : vector<64x64xbf16> to vector<64x64xf32>
    %cst_11 = arith.constant dense<0.000000e+00> : vector<64xf32>
    %25 = vector.multi_reduction <add>, %24, %cst_11 [1] : vector<64x64xf32> to vector<64xf32>
    %26 = vector.shape_cast %25 : vector<64xf32> to vector<64x1xf32>
    %cst_12 = arith.constant 1.000000e+00 : f32
    %27 = vector.broadcast %cst_12 : f32 to vector<64x1xf32>
    %28 = arith.addf %26, %27 : vector<64x1xf32>
    %29 = math.rsqrt %28 : vector<64x1xf32>
    %30 = vector.extract_strided_slice %2 {offsets = [64, 0], sizes = [64, 64], strides = [1, 1]} : vector<256x64xf32> to vector<64x64xf32>
    %31 = vector.broadcast %29 : vector<64x1xf32> to vector<64x64xf32>
    %32 = arith.mulf %31, %30 : vector<64x64xf32>
    %33 = arith.truncf %32 : vector<64x64xf32> to vector<64x64xbf16>
    %cst_13 = arith.constant dense<0.000000e+00> : vector<64x64xf32>
    %34 = tpu.matmul %23, %33, %cst_13 {dimension_numbers = #tpu.dot_dimension_numbers<[1], [0], [0], [1], [0, 0, 1, 1], [], []>} : vector<64x64xbf16>, vector<64x64xbf16>, vector<64x64xf32> -> vector<64x64xf32>
    %35 = vector.broadcast %29 : vector<64x1xf32> to vector<64x64xf32>
    %36 = arith.mulf %35, %34 : vector<64x64xf32>
    %37 = arith.mulf %29, %29 : vector<64x1xf32>
    %38 = vector.broadcast %37 : vector<64x1xf32> to vector<64x64xf32>
    %39 = arith.mulf %38, %30 : vector<64x64xf32>
    %40 = arith.addf %36, %39 : vector<64x64xf32>
    %c2 = arith.constant 2 : index
    %c0_14 = arith.constant 0 : index
    %c0_15 = arith.constant 0 : index
    %41 = vector.load %arg2[%c2, %c0_14, %c0_15] : memref<4x64x64xbf16, #tpu.memory_space<vmem>>, vector<1x64x64xbf16>
    %42 = vector.shape_cast %41 : vector<1x64x64xbf16> to vector<64x64xbf16>
    %43 = arith.extf %42 : vector<64x64xbf16> to vector<64x64xf32>
    %cst_16 = arith.constant dense<0.000000e+00> : vector<64xf32>
    %44 = vector.multi_reduction <add>, %43, %cst_16 [1] : vector<64x64xf32> to vector<64xf32>
    %45 = vector.shape_cast %44 : vector<64xf32> to vector<64x1xf32>
    %cst_17 = arith.constant 1.000000e+00 : f32
    %46 = vector.broadcast %cst_17 : f32 to vector<64x1xf32>
    %47 = arith.addf %45, %46 : vector<64x1xf32>
    %48 = math.rsqrt %47 : vector<64x1xf32>
    %49 = vector.extract_strided_slice %2 {offsets = [128, 0], sizes = [64, 64], strides = [1, 1]} : vector<256x64xf32> to vector<64x64xf32>
    %50 = vector.broadcast %48 : vector<64x1xf32> to vector<64x64xf32>
    %51 = arith.mulf %50, %49 : vector<64x64xf32>
    %52 = arith.truncf %51 : vector<64x64xf32> to vector<64x64xbf16>
    %cst_18 = arith.constant dense<0.000000e+00> : vector<64x64xf32>
    %53 = tpu.matmul %42, %52, %cst_18 {dimension_numbers = #tpu.dot_dimension_numbers<[1], [0], [0], [1], [0, 0, 1, 1], [], []>} : vector<64x64xbf16>, vector<64x64xbf16>, vector<64x64xf32> -> vector<64x64xf32>
    %54 = vector.broadcast %48 : vector<64x1xf32> to vector<64x64xf32>
    %55 = arith.mulf %54, %53 : vector<64x64xf32>
    %56 = arith.mulf %48, %48 : vector<64x1xf32>
    %57 = vector.broadcast %56 : vector<64x1xf32> to vector<64x64xf32>
    %58 = arith.mulf %57, %49 : vector<64x64xf32>
    %59 = arith.addf %55, %58 : vector<64x64xf32>
    %c3 = arith.constant 3 : index
    %c0_19 = arith.constant 0 : index
    %c0_20 = arith.constant 0 : index
    %60 = vector.load %arg2[%c3, %c0_19, %c0_20] : memref<4x64x64xbf16, #tpu.memory_space<vmem>>, vector<1x64x64xbf16>
    %61 = vector.shape_cast %60 : vector<1x64x64xbf16> to vector<64x64xbf16>
    %62 = arith.extf %61 : vector<64x64xbf16> to vector<64x64xf32>
    %cst_21 = arith.constant dense<0.000000e+00> : vector<64xf32>
    %63 = vector.multi_reduction <add>, %62, %cst_21 [1] : vector<64x64xf32> to vector<64xf32>
    %64 = vector.shape_cast %63 : vector<64xf32> to vector<64x1xf32>
    %cst_22 = arith.constant 1.000000e+00 : f32
    %65 = vector.broadcast %cst_22 : f32 to vector<64x1xf32>
    %66 = arith.addf %64, %65 : vector<64x1xf32>
    %67 = math.rsqrt %66 : vector<64x1xf32>
    %68 = vector.extract_strided_slice %2 {offsets = [192, 0], sizes = [64, 64], strides = [1, 1]} : vector<256x64xf32> to vector<64x64xf32>
    %69 = vector.broadcast %67 : vector<64x1xf32> to vector<64x64xf32>
    %70 = arith.mulf %69, %68 : vector<64x64xf32>
    %71 = arith.truncf %70 : vector<64x64xf32> to vector<64x64xbf16>
    %cst_23 = arith.constant dense<0.000000e+00> : vector<64x64xf32>
    %72 = tpu.matmul %61, %71, %cst_23 {dimension_numbers = #tpu.dot_dimension_numbers<[1], [0], [0], [1], [0, 0, 1, 1], [], []>} : vector<64x64xbf16>, vector<64x64xbf16>, vector<64x64xf32> -> vector<64x64xf32>
    %73 = vector.broadcast %67 : vector<64x1xf32> to vector<64x64xf32>
    %74 = arith.mulf %73, %72 : vector<64x64xf32>
    %75 = arith.mulf %67, %67 : vector<64x1xf32>
    %76 = vector.broadcast %75 : vector<64x1xf32> to vector<64x64xf32>
    %77 = arith.mulf %76, %68 : vector<64x64xf32>
    %78 = arith.addf %74, %77 : vector<64x64xf32>
    %79 = tpu.concatenate %21, %40, %59, %78 in 0 : vector<64x64xf32>, vector<64x64xf32>, vector<64x64xf32>, vector<64x64xf32> -> vector<256x64xf32>
    %c0_24 = arith.constant 0 : index
    %c0_25 = arith.constant 0 : index
    %80 = vector.load %arg4[%c0_24, %c0_25] : memref<1x64xf32, #tpu.memory_space<vmem>>, vector<1x64xf32>
    %81 = vector.broadcast %80 : vector<1x64xf32> to vector<256x64xf32>
    %82 = arith.addf %79, %81 : vector<256x64xf32>
    %cst_26 = arith.constant 0.000000e+00 : f32
    %83 = vector.broadcast %cst_26 : f32 to vector<256x64xf32>
    %84 = arith.maximumf %82, %83 : vector<256x64xf32>
    %85 = arith.truncf %84 : vector<256x64xf32> to vector<256x64xbf16>
    %c0_27 = arith.constant 0 : index
    %c0_28 = arith.constant 0 : index
    %86 = vector.load %arg5[%c0_27, %c0_28] : memref<64x64xbf16, #tpu.memory_space<vmem>>, vector<64x64xbf16>
    %cst_29 = arith.constant dense<0.000000e+00> : vector<256x64xf32>
    %87 = tpu.matmul %85, %86, %cst_29 {dimension_numbers = #tpu.dot_dimension_numbers<[1], [0], [0], [1], [0, 0, 1, 1], [], []>} : vector<256x64xbf16>, vector<64x64xbf16>, vector<256x64xf32> -> vector<256x64xf32>
    %c0_30 = arith.constant 0 : index
    %c0_31 = arith.constant 0 : index
    %88 = vector.load %arg6[%c0_30, %c0_31] : memref<1x64xf32, #tpu.memory_space<vmem>>, vector<1x64xf32>
    %89 = vector.broadcast %88 : vector<1x64xf32> to vector<256x64xf32>
    %90 = arith.addf %87, %89 : vector<256x64xf32>
    %91 = arith.truncf %90 : vector<256x64xf32> to vector<256x64xbf16>
    %c0_32 = arith.constant 0 : index
    %c0_33 = arith.constant 0 : index
    %92 = vector.load %arg7[%c0_32, %c0_33] : memref<64x4xbf16, #tpu.memory_space<vmem>>, vector<64x4xbf16>
    %cst_34 = arith.constant dense<0.000000e+00> : vector<256x4xf32>
    %93 = tpu.matmul %91, %92, %cst_34 {dimension_numbers = #tpu.dot_dimension_numbers<[1], [0], [0], [1], [0, 0, 1, 1], [], []>} : vector<256x64xbf16>, vector<64x4xbf16>, vector<256x4xf32> -> vector<256x4xf32>
    %c0_35 = arith.constant 0 : index
    %c0_36 = arith.constant 0 : index
    %94 = vector.load %arg8[%c0_35, %c0_36] : memref<1x4xf32, #tpu.memory_space<vmem>>, vector<1x4xf32>
    %95 = vector.broadcast %94 : vector<1x4xf32> to vector<256x4xf32>
    %96 = arith.addf %93, %95 : vector<256x4xf32>
    %97 = tpu.transpose %96, [1, 0] : vector<256x4xf32> -> vector<4x256xf32>
    %cst_37 = arith.constant dense<0xFF800000> : vector<256xf32>
    %98 = vector.multi_reduction <maximumf>, %97, %cst_37 [0] : vector<4x256xf32> to vector<256xf32>
    %99 = vector.shape_cast %98 : vector<256xf32> to vector<1x256xf32>
    %100 = vector.broadcast %99 : vector<1x256xf32> to vector<4x256xf32>
    %101 = arith.subf %97, %100 : vector<4x256xf32>
    %102 = math.exp %101 : vector<4x256xf32>
    %cst_38 = arith.constant dense<0.000000e+00> : vector<256xf32>
    %103 = vector.multi_reduction <add>, %102, %cst_38 [0] : vector<4x256xf32> to vector<256xf32>
    %104 = vector.shape_cast %103 : vector<256xf32> to vector<1x256xf32>
    %105 = vector.broadcast %104 : vector<1x256xf32> to vector<4x256xf32>
    %106 = arith.divf %102, %105 : vector<4x256xf32>
    %107 = arith.truncf %106 : vector<4x256xf32> to vector<4x256xbf16>
    %c0_39 = arith.constant 0 : index
    %c0_40 = arith.constant 0 : index
    %108 = vector.load %arg9[%c0_39, %c0_40] : memref<4x256xf32, #tpu.memory_space<vmem>>, vector<4x256xf32>
    tpu.vector_store %arg9[%c0_39, %c0_40], %106 {strides = array<i32>} : memref<4x256xf32, #tpu.memory_space<vmem>>, vector<4x256xf32>,
    %109 = vector.extract_strided_slice %106 {offsets = [0, 0], sizes = [4, 64], strides = [1, 1]} : vector<4x256xf32> to vector<4x64xf32>
    %110 = vector.extract_strided_slice %107 {offsets = [0, 0], sizes = [4, 64], strides = [1, 1]} : vector<4x256xbf16> to vector<4x64xbf16>
    %111 = vector.extract_strided_slice %85 {offsets = [0, 0], sizes = [64, 64], strides = [1, 1]} : vector<256x64xbf16> to vector<64x64xbf16>
    %cst_41 = arith.constant dense<0.000000e+00> : vector<4x64xf32>
    %112 = tpu.matmul %110, %111, %cst_41 {dimension_numbers = #tpu.dot_dimension_numbers<[1], [0], [0], [1], [0, 0, 1, 1], [], []>} : vector<4x64xbf16>, vector<64x64xbf16>, vector<4x64xf32> -> vector<4x64xf32>
    %cst_42 = arith.constant 0.000000e+00 : f32
    %113 = vector.broadcast %cst_42 : f32 to vector<4x64xf32>
    %114 = arith.cmpf ogt, %112, %113 : vector<4x64xf32>
    %cst_43 = arith.constant 0.000000e+00 : f32
    %115 = vector.broadcast %cst_43 : f32 to vector<4x64xf32>
    %116 = arith.minimumf %112, %115 : vector<4x64xf32>
    %117 = math.exp %116 : vector<4x64xf32>
    %cst_44 = arith.constant 1.000000e+00 : f32
    %118 = vector.broadcast %cst_44 : f32 to vector<4x64xf32>
    %119 = arith.subf %117, %118 : vector<4x64xf32>
    %cst_45 = arith.constant 1.67326319 : f32
    %120 = vector.broadcast %cst_45 : f32 to vector<4x64xf32>
    %121 = arith.mulf %120, %119 : vector<4x64xf32>
    %122 = arith.select %114, %112, %121 : vector<4x64xi1>, vector<4x64xf32>
    %cst_46 = arith.constant 1.05070102 : f32
    %123 = vector.broadcast %cst_46 : f32 to vector<4x64xf32>
    %124 = arith.mulf %123, %122 : vector<4x64xf32>
    %c0_47 = arith.constant 0 : index
    %c0_48 = arith.constant 0 : index
    %c0_49 = arith.constant 0 : index
    %125 = vector.load %arg2[%c0_47, %c0_48, %c0_49] : memref<4x64x64xbf16, #tpu.memory_space<vmem>>, vector<1x64x64xbf16>
    %126 = vector.shape_cast %125 : vector<1x64x64xbf16> to vector<64x64xbf16>
    %cst_50 = arith.constant dense<0.000000e+00> : vector<4x64xf32>
    %127 = tpu.matmul %110, %126, %cst_50 {dimension_numbers = #tpu.dot_dimension_numbers<[1], [0], [0], [1], [0, 0, 1, 1], [], []>} : vector<4x64xbf16>, vector<64x64xbf16>, vector<4x64xf32> -> vector<4x64xf32>
    %128 = arith.mulf %109, %127 : vector<4x64xf32>
    %129 = vector.shape_cast %128 : vector<4x64xf32> to vector<1x4x64xf32>
    %cst_51 = arith.constant dense<0.000000e+00> : vector<1xf32>
    %130 = vector.multi_reduction <add>, %129, %cst_51 [1, 2] : vector<1x4x64xf32> to vector<1xf32>
    %131 = vector.shape_cast %130 : vector<1xf32> to vector<1x1x1xf32>
    %132 = vector.extract %131[0, 0, 0] : f32 from vector<1x1x1xf32>
    %133 = vector.broadcast %132 : f32 to vector<1x1xf32>
    %134 = arith.truncf %7 : vector<64x1xf32> to vector<64x1xbf16>
    %cst_52 = arith.constant dense<0.000000e+00> : vector<4x1xf32>
    %135 = tpu.matmul %110, %134, %cst_52 {dimension_numbers = #tpu.dot_dimension_numbers<[1], [0], [0], [1], [0, 0, 1, 1], [], []>} : vector<4x64xbf16>, vector<64x1xbf16>, vector<4x1xf32> -> vector<4x1xf32>
    %136 = arith.mulf %135, %135 : vector<4x1xf32>
    %137 = vector.shape_cast %136 : vector<4x1xf32> to vector<1x4x1xf32>
    %cst_53 = arith.constant dense<0.000000e+00> : vector<1xf32>
    %138 = vector.multi_reduction <add>, %137, %cst_53 [1, 2] : vector<1x4x1xf32> to vector<1xf32>
    %139 = vector.shape_cast %138 : vector<1xf32> to vector<1x1x1xf32>
    %140 = vector.extract %139[0, 0, 0] : f32 from vector<1x1x1xf32>
    %141 = vector.broadcast %140 : f32 to vector<1x1xf32>
    %142 = vector.shape_cast %7 : vector<64x1xf32> to vector<1x64x1xf32>
    %cst_54 = arith.constant dense<0.000000e+00> : vector<1xf32>
    %143 = vector.multi_reduction <add>, %142, %cst_54 [1, 2] : vector<1x64x1xf32> to vector<1xf32>
    %144 = vector.shape_cast %143 : vector<1xf32> to vector<1x1x1xf32>
    %145 = vector.extract %144[0, 0, 0] : f32 from vector<1x1x1xf32>
    %146 = vector.broadcast %145 : f32 to vector<1x1xf32>
    %cst_55 = arith.constant 9.99999996E-13 : f32
    %147 = vector.broadcast %cst_55 : f32 to vector<1x1xf32>
    %148 = arith.maximumf %146, %147 : vector<1x1xf32>
    %149 = arith.divf %141, %148 : vector<1x1xf32>
    %150 = arith.subf %133, %149 : vector<1x1xf32>
    %cst_56 = arith.constant 0.000000e+00 : f32
    %151 = vector.broadcast %cst_56 : f32 to vector<1x1xf32>
    %152 = arith.subf %151, %150 : vector<1x1xf32>
    %153 = arith.divf %152, %148 : vector<1x1xf32>
    %cst_57 = arith.constant dense<0.000000e+00> : vector<4xf32>
    %154 = vector.multi_reduction <add>, %109, %cst_57 [1] : vector<4x64xf32> to vector<4xf32>
    %155 = vector.shape_cast %154 : vector<4xf32> to vector<4x1xf32>
    %156 = arith.mulf %155, %155 : vector<4x1xf32>
    %157 = vector.shape_cast %156 : vector<4x1xf32> to vector<1x4x1xf32>
    %cst_58 = arith.constant dense<0.000000e+00> : vector<1xf32>
    %158 = vector.multi_reduction <add>, %157, %cst_58 [1, 2] : vector<1x4x1xf32> to vector<1xf32>
    %159 = vector.shape_cast %158 : vector<1xf32> to vector<1x1x1xf32>
    %160 = vector.extract %159[0, 0, 0] : f32 from vector<1x1x1xf32>
    %161 = vector.broadcast %160 : f32 to vector<1x1xf32>
    %162 = math.sqrt %161 : vector<1x1xf32>
    %cst_59 = arith.constant 3.125000e-02 : f32
    %163 = vector.broadcast %cst_59 : f32 to vector<1x1xf32>
    %164 = arith.mulf %162, %163 : vector<1x1xf32>
    %cst_60 = arith.constant 1.000000e+00 : f32
    %165 = vector.broadcast %cst_60 : f32 to vector<1x1xf32>
    %166 = arith.subf %164, %165 : vector<1x1xf32>
    %167 = arith.addf %153, %166 : vector<1x1xf32>
    %168 = vector.extract_strided_slice %106 {offsets = [0, 64], sizes = [4, 64], strides = [1, 1]} : vector<4x256xf32> to vector<4x64xf32>
    %169 = vector.extract_strided_slice %107 {offsets = [0, 64], sizes = [4, 64], strides = [1, 1]} : vector<4x256xbf16> to vector<4x64xbf16>
    %170 = vector.extract_strided_slice %85 {offsets = [64, 0], sizes = [64, 64], strides = [1, 1]} : vector<256x64xbf16> to vector<64x64xbf16>
    %cst_61 = arith.constant dense<0.000000e+00> : vector<4x64xf32>
    %171 = tpu.matmul %169, %170, %cst_61 {dimension_numbers = #tpu.dot_dimension_numbers<[1], [0], [0], [1], [0, 0, 1, 1], [], []>} : vector<4x64xbf16>, vector<64x64xbf16>, vector<4x64xf32> -> vector<4x64xf32>
    %cst_62 = arith.constant 0.000000e+00 : f32
    %172 = vector.broadcast %cst_62 : f32 to vector<4x64xf32>
    %173 = arith.cmpf ogt, %171, %172 : vector<4x64xf32>
    %cst_63 = arith.constant 0.000000e+00 : f32
    %174 = vector.broadcast %cst_63 : f32 to vector<4x64xf32>
    %175 = arith.minimumf %171, %174 : vector<4x64xf32>
    %176 = math.exp %175 : vector<4x64xf32>
    %cst_64 = arith.constant 1.000000e+00 : f32
    %177 = vector.broadcast %cst_64 : f32 to vector<4x64xf32>
    %178 = arith.subf %176, %177 : vector<4x64xf32>
    %cst_65 = arith.constant 1.67326319 : f32
    %179 = vector.broadcast %cst_65 : f32 to vector<4x64xf32>
    %180 = arith.mulf %179, %178 : vector<4x64xf32>
    %181 = arith.select %173, %171, %180 : vector<4x64xi1>, vector<4x64xf32>
    %cst_66 = arith.constant 1.05070102 : f32
    %182 = vector.broadcast %cst_66 : f32 to vector<4x64xf32>
    %183 = arith.mulf %182, %181 : vector<4x64xf32>
    %c1_67 = arith.constant 1 : index
    %c0_68 = arith.constant 0 : index
    %c0_69 = arith.constant 0 : index
    %184 = vector.load %arg2[%c1_67, %c0_68, %c0_69] : memref<4x64x64xbf16, #tpu.memory_space<vmem>>, vector<1x64x64xbf16>
    %185 = vector.shape_cast %184 : vector<1x64x64xbf16> to vector<64x64xbf16>
    %cst_70 = arith.constant dense<0.000000e+00> : vector<4x64xf32>
    %186 = tpu.matmul %169, %185, %cst_70 {dimension_numbers = #tpu.dot_dimension_numbers<[1], [0], [0], [1], [0, 0, 1, 1], [], []>} : vector<4x64xbf16>, vector<64x64xbf16>, vector<4x64xf32> -> vector<4x64xf32>
    %187 = arith.mulf %168, %186 : vector<4x64xf32>
    %188 = vector.shape_cast %187 : vector<4x64xf32> to vector<1x4x64xf32>
    %cst_71 = arith.constant dense<0.000000e+00> : vector<1xf32>
    %189 = vector.multi_reduction <add>, %188, %cst_71 [1, 2] : vector<1x4x64xf32> to vector<1xf32>
    %190 = vector.shape_cast %189 : vector<1xf32> to vector<1x1x1xf32>
    %191 = vector.extract %190[0, 0, 0] : f32 from vector<1x1x1xf32>
    %192 = vector.broadcast %191 : f32 to vector<1x1xf32>
    %193 = arith.truncf %26 : vector<64x1xf32> to vector<64x1xbf16>
    %cst_72 = arith.constant dense<0.000000e+00> : vector<4x1xf32>
    %194 = tpu.matmul %169, %193, %cst_72 {dimension_numbers = #tpu.dot_dimension_numbers<[1], [0], [0], [1], [0, 0, 1, 1], [], []>} : vector<4x64xbf16>, vector<64x1xbf16>, vector<4x1xf32> -> vector<4x1xf32>
    %195 = arith.mulf %194, %194 : vector<4x1xf32>
    %196 = vector.shape_cast %195 : vector<4x1xf32> to vector<1x4x1xf32>
    %cst_73 = arith.constant dense<0.000000e+00> : vector<1xf32>
    %197 = vector.multi_reduction <add>, %196, %cst_73 [1, 2] : vector<1x4x1xf32> to vector<1xf32>
    %198 = vector.shape_cast %197 : vector<1xf32> to vector<1x1x1xf32>
    %199 = vector.extract %198[0, 0, 0] : f32 from vector<1x1x1xf32>
    %200 = vector.broadcast %199 : f32 to vector<1x1xf32>
    %201 = vector.shape_cast %26 : vector<64x1xf32> to vector<1x64x1xf32>
    %cst_74 = arith.constant dense<0.000000e+00> : vector<1xf32>
    %202 = vector.multi_reduction <add>, %201, %cst_74 [1, 2] : vector<1x64x1xf32> to vector<1xf32>
    %203 = vector.shape_cast %202 : vector<1xf32> to vector<1x1x1xf32>
    %204 = vector.extract %203[0, 0, 0] : f32 from vector<1x1x1xf32>
    %205 = vector.broadcast %204 : f32 to vector<1x1xf32>
    %cst_75 = arith.constant 9.99999996E-13 : f32
    %206 = vector.broadcast %cst_75 : f32 to vector<1x1xf32>
    %207 = arith.maximumf %205, %206 : vector<1x1xf32>
    %208 = arith.divf %200, %207 : vector<1x1xf32>
    %209 = arith.subf %192, %208 : vector<1x1xf32>
    %cst_76 = arith.constant 0.000000e+00 : f32
    %210 = vector.broadcast %cst_76 : f32 to vector<1x1xf32>
    %211 = arith.subf %210, %209 : vector<1x1xf32>
    %212 = arith.divf %211, %207 : vector<1x1xf32>
    %cst_77 = arith.constant dense<0.000000e+00> : vector<4xf32>
    %213 = vector.multi_reduction <add>, %168, %cst_77 [1] : vector<4x64xf32> to vector<4xf32>
    %214 = vector.shape_cast %213 : vector<4xf32> to vector<4x1xf32>
    %215 = arith.mulf %214, %214 : vector<4x1xf32>
    %216 = vector.shape_cast %215 : vector<4x1xf32> to vector<1x4x1xf32>
    %cst_78 = arith.constant dense<0.000000e+00> : vector<1xf32>
    %217 = vector.multi_reduction <add>, %216, %cst_78 [1, 2] : vector<1x4x1xf32> to vector<1xf32>
    %218 = vector.shape_cast %217 : vector<1xf32> to vector<1x1x1xf32>
    %219 = vector.extract %218[0, 0, 0] : f32 from vector<1x1x1xf32>
    %220 = vector.broadcast %219 : f32 to vector<1x1xf32>
    %221 = math.sqrt %220 : vector<1x1xf32>
    %cst_79 = arith.constant 3.125000e-02 : f32
    %222 = vector.broadcast %cst_79 : f32 to vector<1x1xf32>
    %223 = arith.mulf %221, %222 : vector<1x1xf32>
    %cst_80 = arith.constant 1.000000e+00 : f32
    %224 = vector.broadcast %cst_80 : f32 to vector<1x1xf32>
    %225 = arith.subf %223, %224 : vector<1x1xf32>
    %226 = arith.addf %212, %225 : vector<1x1xf32>
    %227 = vector.extract_strided_slice %106 {offsets = [0, 128], sizes = [4, 64], strides = [1, 1]} : vector<4x256xf32> to vector<4x64xf32>
    %228 = vector.extract_strided_slice %107 {offsets = [0, 128], sizes = [4, 64], strides = [1, 1]} : vector<4x256xbf16> to vector<4x64xbf16>
    %229 = vector.extract_strided_slice %85 {offsets = [128, 0], sizes = [64, 64], strides = [1, 1]} : vector<256x64xbf16> to vector<64x64xbf16>
    %cst_81 = arith.constant dense<0.000000e+00> : vector<4x64xf32>
    %230 = tpu.matmul %228, %229, %cst_81 {dimension_numbers = #tpu.dot_dimension_numbers<[1], [0], [0], [1], [0, 0, 1, 1], [], []>} : vector<4x64xbf16>, vector<64x64xbf16>, vector<4x64xf32> -> vector<4x64xf32>
    %cst_82 = arith.constant 0.000000e+00 : f32
    %231 = vector.broadcast %cst_82 : f32 to vector<4x64xf32>
    %232 = arith.cmpf ogt, %230, %231 : vector<4x64xf32>
    %cst_83 = arith.constant 0.000000e+00 : f32
    %233 = vector.broadcast %cst_83 : f32 to vector<4x64xf32>
    %234 = arith.minimumf %230, %233 : vector<4x64xf32>
    %235 = math.exp %234 : vector<4x64xf32>
    %cst_84 = arith.constant 1.000000e+00 : f32
    %236 = vector.broadcast %cst_84 : f32 to vector<4x64xf32>
    %237 = arith.subf %235, %236 : vector<4x64xf32>
    %cst_85 = arith.constant 1.67326319 : f32
    %238 = vector.broadcast %cst_85 : f32 to vector<4x64xf32>
    %239 = arith.mulf %238, %237 : vector<4x64xf32>
    %240 = arith.select %232, %230, %239 : vector<4x64xi1>, vector<4x64xf32>
    %cst_86 = arith.constant 1.05070102 : f32
    %241 = vector.broadcast %cst_86 : f32 to vector<4x64xf32>
    %242 = arith.mulf %241, %240 : vector<4x64xf32>
    %c2_87 = arith.constant 2 : index
    %c0_88 = arith.constant 0 : index
    %c0_89 = arith.constant 0 : index
    %243 = vector.load %arg2[%c2_87, %c0_88, %c0_89] : memref<4x64x64xbf16, #tpu.memory_space<vmem>>, vector<1x64x64xbf16>
    %244 = vector.shape_cast %243 : vector<1x64x64xbf16> to vector<64x64xbf16>
    %cst_90 = arith.constant dense<0.000000e+00> : vector<4x64xf32>
    %245 = tpu.matmul %228, %244, %cst_90 {dimension_numbers = #tpu.dot_dimension_numbers<[1], [0], [0], [1], [0, 0, 1, 1], [], []>} : vector<4x64xbf16>, vector<64x64xbf16>, vector<4x64xf32> -> vector<4x64xf32>
    %246 = arith.mulf %227, %245 : vector<4x64xf32>
    %247 = vector.shape_cast %246 : vector<4x64xf32> to vector<1x4x64xf32>
    %cst_91 = arith.constant dense<0.000000e+00> : vector<1xf32>
    %248 = vector.multi_reduction <add>, %247, %cst_91 [1, 2] : vector<1x4x64xf32> to vector<1xf32>
    %249 = vector.shape_cast %248 : vector<1xf32> to vector<1x1x1xf32>
    %250 = vector.extract %249[0, 0, 0] : f32 from vector<1x1x1xf32>
    %251 = vector.broadcast %250 : f32 to vector<1x1xf32>
    %252 = arith.truncf %45 : vector<64x1xf32> to vector<64x1xbf16>
    %cst_92 = arith.constant dense<0.000000e+00> : vector<4x1xf32>
    %253 = tpu.matmul %228, %252, %cst_92 {dimension_numbers = #tpu.dot_dimension_numbers<[1], [0], [0], [1], [0, 0, 1, 1], [], []>} : vector<4x64xbf16>, vector<64x1xbf16>, vector<4x1xf32> -> vector<4x1xf32>
    %254 = arith.mulf %253, %253 : vector<4x1xf32>
    %255 = vector.shape_cast %254 : vector<4x1xf32> to vector<1x4x1xf32>
    %cst_93 = arith.constant dense<0.000000e+00> : vector<1xf32>
    %256 = vector.multi_reduction <add>, %255, %cst_93 [1, 2] : vector<1x4x1xf32> to vector<1xf32>
    %257 = vector.shape_cast %256 : vector<1xf32> to vector<1x1x1xf32>
    %258 = vector.extract %257[0, 0, 0] : f32 from vector<1x1x1xf32>
    %259 = vector.broadcast %258 : f32 to vector<1x1xf32>
    %260 = vector.shape_cast %45 : vector<64x1xf32> to vector<1x64x1xf32>
    %cst_94 = arith.constant dense<0.000000e+00> : vector<1xf32>
    %261 = vector.multi_reduction <add>, %260, %cst_94 [1, 2] : vector<1x64x1xf32> to vector<1xf32>
    %262 = vector.shape_cast %261 : vector<1xf32> to vector<1x1x1xf32>
    %263 = vector.extract %262[0, 0, 0] : f32 from vector<1x1x1xf32>
    %264 = vector.broadcast %263 : f32 to vector<1x1xf32>
    %cst_95 = arith.constant 9.99999996E-13 : f32
    %265 = vector.broadcast %cst_95 : f32 to vector<1x1xf32>
    %266 = arith.maximumf %264, %265 : vector<1x1xf32>
    %267 = arith.divf %259, %266 : vector<1x1xf32>
    %268 = arith.subf %251, %267 : vector<1x1xf32>
    %cst_96 = arith.constant 0.000000e+00 : f32
    %269 = vector.broadcast %cst_96 : f32 to vector<1x1xf32>
    %270 = arith.subf %269, %268 : vector<1x1xf32>
    %271 = arith.divf %270, %266 : vector<1x1xf32>
    %cst_97 = arith.constant dense<0.000000e+00> : vector<4xf32>
    %272 = vector.multi_reduction <add>, %227, %cst_97 [1] : vector<4x64xf32> to vector<4xf32>
    %273 = vector.shape_cast %272 : vector<4xf32> to vector<4x1xf32>
    %274 = arith.mulf %273, %273 : vector<4x1xf32>
    %275 = vector.shape_cast %274 : vector<4x1xf32> to vector<1x4x1xf32>
    %cst_98 = arith.constant dense<0.000000e+00> : vector<1xf32>
    %276 = vector.multi_reduction <add>, %275, %cst_98 [1, 2] : vector<1x4x1xf32> to vector<1xf32>
    %277 = vector.shape_cast %276 : vector<1xf32> to vector<1x1x1xf32>
    %278 = vector.extract %277[0, 0, 0] : f32 from vector<1x1x1xf32>
    %279 = vector.broadcast %278 : f32 to vector<1x1xf32>
    %280 = math.sqrt %279 : vector<1x1xf32>
    %cst_99 = arith.constant 3.125000e-02 : f32
    %281 = vector.broadcast %cst_99 : f32 to vector<1x1xf32>
    %282 = arith.mulf %280, %281 : vector<1x1xf32>
    %cst_100 = arith.constant 1.000000e+00 : f32
    %283 = vector.broadcast %cst_100 : f32 to vector<1x1xf32>
    %284 = arith.subf %282, %283 : vector<1x1xf32>
    %285 = arith.addf %271, %284 : vector<1x1xf32>
    %286 = vector.extract_strided_slice %106 {offsets = [0, 192], sizes = [4, 64], strides = [1, 1]} : vector<4x256xf32> to vector<4x64xf32>
    %287 = vector.extract_strided_slice %107 {offsets = [0, 192], sizes = [4, 64], strides = [1, 1]} : vector<4x256xbf16> to vector<4x64xbf16>
    %288 = vector.extract_strided_slice %85 {offsets = [192, 0], sizes = [64, 64], strides = [1, 1]} : vector<256x64xbf16> to vector<64x64xbf16>
    %cst_101 = arith.constant dense<0.000000e+00> : vector<4x64xf32>
    %289 = tpu.matmul %287, %288, %cst_101 {dimension_numbers = #tpu.dot_dimension_numbers<[1], [0], [0], [1], [0, 0, 1, 1], [], []>} : vector<4x64xbf16>, vector<64x64xbf16>, vector<4x64xf32> -> vector<4x64xf32>
    %cst_102 = arith.constant 0.000000e+00 : f32
    %290 = vector.broadcast %cst_102 : f32 to vector<4x64xf32>
    %291 = arith.cmpf ogt, %289, %290 : vector<4x64xf32>
    %cst_103 = arith.constant 0.000000e+00 : f32
    %292 = vector.broadcast %cst_103 : f32 to vector<4x64xf32>
    %293 = arith.minimumf %289, %292 : vector<4x64xf32>
    %294 = math.exp %293 : vector<4x64xf32>
    %cst_104 = arith.constant 1.000000e+00 : f32
    %295 = vector.broadcast %cst_104 : f32 to vector<4x64xf32>
    %296 = arith.subf %294, %295 : vector<4x64xf32>
    %cst_105 = arith.constant 1.67326319 : f32
    %297 = vector.broadcast %cst_105 : f32 to vector<4x64xf32>
    %298 = arith.mulf %297, %296 : vector<4x64xf32>
    %299 = arith.select %291, %289, %298 : vector<4x64xi1>, vector<4x64xf32>
    %cst_106 = arith.constant 1.05070102 : f32
    %300 = vector.broadcast %cst_106 : f32 to vector<4x64xf32>
    %301 = arith.mulf %300, %299 : vector<4x64xf32>
    %c3_107 = arith.constant 3 : index
    %c0_108 = arith.constant 0 : index
    %c0_109 = arith.constant 0 : index
    %302 = vector.load %arg2[%c3_107, %c0_108, %c0_109] : memref<4x64x64xbf16, #tpu.memory_space<vmem>>, vector<1x64x64xbf16>
    %303 = vector.shape_cast %302 : vector<1x64x64xbf16> to vector<64x64xbf16>
    %cst_110 = arith.constant dense<0.000000e+00> : vector<4x64xf32>
    %304 = tpu.matmul %287, %303, %cst_110 {dimension_numbers = #tpu.dot_dimension_numbers<[1], [0], [0], [1], [0, 0, 1, 1], [], []>} : vector<4x64xbf16>, vector<64x64xbf16>, vector<4x64xf32> -> vector<4x64xf32>
    %305 = arith.mulf %286, %304 : vector<4x64xf32>
    %306 = vector.shape_cast %305 : vector<4x64xf32> to vector<1x4x64xf32>
    %cst_111 = arith.constant dense<0.000000e+00> : vector<1xf32>
    %307 = vector.multi_reduction <add>, %306, %cst_111 [1, 2] : vector<1x4x64xf32> to vector<1xf32>
    %308 = vector.shape_cast %307 : vector<1xf32> to vector<1x1x1xf32>
    %309 = vector.extract %308[0, 0, 0] : f32 from vector<1x1x1xf32>
    %310 = vector.broadcast %309 : f32 to vector<1x1xf32>
    %311 = arith.truncf %64 : vector<64x1xf32> to vector<64x1xbf16>
    %cst_112 = arith.constant dense<0.000000e+00> : vector<4x1xf32>
    %312 = tpu.matmul %287, %311, %cst_112 {dimension_numbers = #tpu.dot_dimension_numbers<[1], [0], [0], [1], [0, 0, 1, 1], [], []>} : vector<4x64xbf16>, vector<64x1xbf16>, vector<4x1xf32> -> vector<4x1xf32>
    %313 = arith.mulf %312, %312 : vector<4x1xf32>
    %314 = vector.shape_cast %313 : vector<4x1xf32> to vector<1x4x1xf32>
    %cst_113 = arith.constant dense<0.000000e+00> : vector<1xf32>
    %315 = vector.multi_reduction <add>, %314, %cst_113 [1, 2] : vector<1x4x1xf32> to vector<1xf32>
    %316 = vector.shape_cast %315 : vector<1xf32> to vector<1x1x1xf32>
    %317 = vector.extract %316[0, 0, 0] : f32 from vector<1x1x1xf32>
    %318 = vector.broadcast %317 : f32 to vector<1x1xf32>
    %319 = vector.shape_cast %64 : vector<64x1xf32> to vector<1x64x1xf32>
    %cst_114 = arith.constant dense<0.000000e+00> : vector<1xf32>
    %320 = vector.multi_reduction <add>, %319, %cst_114 [1, 2] : vector<1x64x1xf32> to vector<1xf32>
    %321 = vector.shape_cast %320 : vector<1xf32> to vector<1x1x1xf32>
    %322 = vector.extract %321[0, 0, 0] : f32 from vector<1x1x1xf32>
    %323 = vector.broadcast %322 : f32 to vector<1x1xf32>
    %cst_115 = arith.constant 9.99999996E-13 : f32
    %324 = vector.broadcast %cst_115 : f32 to vector<1x1xf32>
    %325 = arith.maximumf %323, %324 : vector<1x1xf32>
    %326 = arith.divf %318, %325 : vector<1x1xf32>
    %327 = arith.subf %310, %326 : vector<1x1xf32>
    %cst_116 = arith.constant 0.000000e+00 : f32
    %328 = vector.broadcast %cst_116 : f32 to vector<1x1xf32>
    %329 = arith.subf %328, %327 : vector<1x1xf32>
    %330 = arith.divf %329, %325 : vector<1x1xf32>
    %cst_117 = arith.constant dense<0.000000e+00> : vector<4xf32>
    %331 = vector.multi_reduction <add>, %286, %cst_117 [1] : vector<4x64xf32> to vector<4xf32>
    %332 = vector.shape_cast %331 : vector<4xf32> to vector<4x1xf32>
    %333 = arith.mulf %332, %332 : vector<4x1xf32>
    %334 = vector.shape_cast %333 : vector<4x1xf32> to vector<1x4x1xf32>
    %cst_118 = arith.constant dense<0.000000e+00> : vector<1xf32>
    %335 = vector.multi_reduction <add>, %334, %cst_118 [1, 2] : vector<1x4x1xf32> to vector<1xf32>
    %336 = vector.shape_cast %335 : vector<1xf32> to vector<1x1x1xf32>
    %337 = vector.extract %336[0, 0, 0] : f32 from vector<1x1x1xf32>
    %338 = vector.broadcast %337 : f32 to vector<1x1xf32>
    %339 = math.sqrt %338 : vector<1x1xf32>
    %cst_119 = arith.constant 3.125000e-02 : f32
    %340 = vector.broadcast %cst_119 : f32 to vector<1x1xf32>
    %341 = arith.mulf %339, %340 : vector<1x1xf32>
    %cst_120 = arith.constant 1.000000e+00 : f32
    %342 = vector.broadcast %cst_120 : f32 to vector<1x1xf32>
    %343 = arith.subf %341, %342 : vector<1x1xf32>
    %344 = arith.addf %330, %343 : vector<1x1xf32>
    %345 = tpu.concatenate %124, %183, %242, %301 in 1 : vector<4x64xf32>, vector<4x64xf32>, vector<4x64xf32>, vector<4x64xf32> -> vector<4x256xf32>
    %c0_121 = arith.constant 0 : index
    %c0_122 = arith.constant 0 : index
    %346 = vector.load %arg10[%c0_121, %c0_122] : memref<4x256xf32, #tpu.memory_space<vmem>>, vector<4x256xf32>
    tpu.vector_store %arg10[%c0_121, %c0_122], %345 {strides = array<i32>} : memref<4x256xf32, #tpu.memory_space<vmem>>, vector<4x256xf32>,
    %347 = tpu.concatenate %167, %226, %285, %344 in 1 : vector<1x1xf32>, vector<1x1xf32>, vector<1x1xf32>, vector<1x1xf32> -> vector<1x4xf32>
    %c0_123 = arith.constant 0 : index
    %c0_124 = arith.constant 0 : index
    %c0_125 = arith.constant 0 : index
    %348 = vector.load %arg11[%c0_123, %c0_124, %c0_125] : memref<1x1x4xf32, #tpu.memory_space<vmem>>, vector<1x1x4xf32>
    %349 = vector.shape_cast %348 : vector<1x1x4xf32> to vector<1x4xf32>
    %350 = vector.shape_cast %347 : vector<1x4xf32> to vector<1x1x4xf32>
    tpu.vector_store %arg11[%c0_123, %c0_124, %c0_125], %350 {strides = array<i32>} : memref<1x1x4xf32, #tpu.memory_space<vmem>>, vector<1x1x4xf32>,
    return
  }
  func.func @transform_0(%arg0: i32) -> (i32, i32) {
    %c0_i32 = arith.constant 0 : i32
    %c0_i32_0 = arith.constant 0 : i32
    return %arg0, %c0_i32 : i32, i32
  }
  func.func @transform_1(%arg0: i32) -> (i32, i32, i32) {
    %c0_i32 = arith.constant 0 : i32
    %c0_i32_0 = arith.constant 0 : i32
    %c0_i32_1 = arith.constant 0 : i32
    return %arg0, %c0_i32, %c0_i32_0 : i32, i32, i32
  }
  func.func @transform_2(%arg0: i32) -> (i32, i32) {
    %c0_i32 = arith.constant 0 : i32
    %c0_i32_0 = arith.constant 0 : i32
    %c0_i32_1 = arith.constant 0 : i32
    return %c0_i32, %c0_i32_0 : i32, i32
  }
  func.func @transform_3(%arg0: i32) -> (i32, i32) {
    %c0_i32 = arith.constant 0 : i32
    %c0_i32_0 = arith.constant 0 : i32
    %c0_i32_1 = arith.constant 0 : i32
    return %c0_i32, %c0_i32_0 : i32, i32
  }
  func.func @transform_4(%arg0: i32) -> (i32, i32) {
    %c0_i32 = arith.constant 0 : i32
    %c0_i32_0 = arith.constant 0 : i32
    %c0_i32_1 = arith.constant 0 : i32
    return %c0_i32, %c0_i32_0 : i32, i32
  }
  func.func @transform_5(%arg0: i32) -> (i32, i32) {
    %c0_i32 = arith.constant 0 : i32
    %c0_i32_0 = arith.constant 0 : i32
    %c0_i32_1 = arith.constant 0 : i32
    return %c0_i32, %c0_i32_0 : i32, i32
  }
  func.func @transform_6(%arg0: i32) -> (i32, i32) {
    %c0_i32 = arith.constant 0 : i32
    %c0_i32_0 = arith.constant 0 : i32
    %c0_i32_1 = arith.constant 0 : i32
    return %c0_i32, %c0_i32_0 : i32, i32
  }
  func.func @transform_7(%arg0: i32) -> (i32, i32) {
    %c0_i32 = arith.constant 0 : i32
    %c0_i32_0 = arith.constant 0 : i32
    %c0_i32_1 = arith.constant 0 : i32
    return %c0_i32, %c0_i32_0 : i32, i32
  }
  func.func @transform_8(%arg0: i32) -> (i32, i32) {
    %c0_i32 = arith.constant 0 : i32
    %c0_i32_0 = arith.constant 0 : i32
    return %c0_i32, %arg0 : i32, i32
  }
  func.func @transform_9(%arg0: i32) -> (i32, i32) {
    %c0_i32 = arith.constant 0 : i32
    %c0_i32_0 = arith.constant 0 : i32
    return %c0_i32, %arg0 : i32, i32
  }
  func.func @transform_10(%arg0: i32) -> (i32, i32, i32) {
    %c0_i32 = arith.constant 0 : i32
    %c0_i32_0 = arith.constant 0 : i32
    %c0_i32_1 = arith.constant 0 : i32
    return %arg0, %c0_i32, %c0_i32_0 : i32, i32, i32
  }
}

</mosaic_0001>

<llo_original>
// kernel: dmon_net_forward_batched.1
$region0: #{dmon_net_forward_batched.1}
  #allocation0 [shape = 'u32[]', space=smem, size = 0x4, offset = 0x4, fixed_abs, tag = 'smem constant byte address 0x4 - core index']
  #allocation1 [shape = 'u32[144,128]{1,0:T(1,128)}', space=vmem, size = 0x12000, scoped, tag = 'internal scratch']
  %s0 = inlined_call_operand.vmem [shape: bf16[512,16], index: 0, kind: input, shape index: {}]
  %s1 = inlined_call_operand.vmem [shape: bf16[8,64,64], index: 1, kind: input, shape index: {}]
  %s2 = inlined_call_operand.vmem [shape: bf16[16,64], index: 2, kind: input, shape index: {}]
  %s3 = inlined_call_operand.vmem [shape: f32[1,64], index: 3, kind: input, shape index: {}]
  %s4 = inlined_call_operand.vmem [shape: bf16[64,64], index: 4, kind: input, shape index: {}]
  %s5 = inlined_call_operand.vmem [shape: f32[1,64], index: 5, kind: input, shape index: {}]
  %s6 = inlined_call_operand.vmem [shape: bf16[64,4], index: 6, kind: input, shape index: {}]
  %s7 = inlined_call_operand.vmem [shape: f32[1,4], index: 7, kind: input, shape index: {}]
  %s8 = inlined_call_operand.vmem [shape: f32[4,512], index: 8, kind: output, shape index: {0}]
  %s9 = inlined_call_operand.vmem [shape: f32[4,512], index: 9, kind: output, shape index: {1}]
  %s10 = inlined_call_operand.vmem [shape: f32[2,1,4], index: 10, kind: output, shape index: {2}]
  %11 = xla_tuple %s8, %s9, %s10
  %s12 = sld [smem:[#allocation0]]
  $region81: #{dmon_net_forward_batched.1} parent=0
    _
  %s14 = ssub.s32 1, %s12
  %s15 = scalar_select 0, %s14, %s12
  loop: start=0, step=1, limit=4
  $region2: #{dmon_net_forward_batched.1} parent=0 // loop_pre_header
    _
  $region3: #{dmon_net_forward_batched.1} parent=0 // loop_header
    %s17 = sphi 0, %s21
    %p18 = scmp.ge.s32.totalorder %s17, 4
    %s27 = sphi 0, %s29
    %s30 = sphi 0, %s27
    %s31 = sphi 0, %s30
    %s47 = sphi 0, %s31
    %s53 = sphi 0, %s55
    %s56 = sphi 0, %s53
    %s57 = sphi 0, %s56
    %s73 = sphi 0, %s57
    %s77 = sphi 0, %s77
    %s79 = sphi 0, %s77
    %s80 = sphi 0, %s79
    %s94 = sphi 0, %s80
    %s98 = sphi 0, %s98
    %s100 = sphi 0, %s98
    %s101 = sphi 0, %s100
    %s115 = sphi 0, %s101
    %s119 = sphi 0, %s119
    %s121 = sphi 0, %s119
    %s122 = sphi 0, %s121
    %s136 = sphi 0, %s122
    %s140 = sphi 0, %s140
    %s142 = sphi 0, %s140
    %s143 = sphi 0, %s142
    %s157 = sphi 0, %s143
    %s161 = sphi 0, %s161
    %s163 = sphi 0, %s161
    %s164 = sphi 0, %s163
    %s178 = sphi 0, %s164
    %s182 = sphi 0, %s182
    %s184 = sphi 0, %s182
    %s185 = sphi 0, %s184
    %s199 = sphi 0, %s185
    %s205 = sphi 0, %s207
    %s208 = sphi 0, %s205
    %s209 = sphi 0, %s208
    %s225 = sphi 0, %s209
    %s231 = sphi 0, %s233
    %s234 = sphi 0, %s231
    %s235 = sphi 0, %s234
    %s251 = sphi 0, %s235
    %s257 = sphi 0, %s259
    %s260 = sphi 0, %s257
    %s261 = sphi 0, %s260
    %s277 = sphi 0, %s261
  $region4: #{dmon_net_forward_batched.1} parent=0 // loop_header_branch
    %20 = sbr.rel (%p18) target = $region8
  $region5: #{dmon_net_forward_batched.1} parent=0 // loop_body
    %s22 = ssub.s32 %s17, 1
    %s23 = ssub.s32 %s17, 2
    %s24 = sadd.s32 %s17, 1
    %s25 = ssub.s32 %s17, %s24
    %p26 = scmp.eq.s32.totalorder %s25, 0
    %s28 = sadd.s32 %s27, 1
    %s29 = scalar_select %p26, %s27, %s28
    %p32 = pneg %p26
    %p33 = scmp.eq.s32.totalorder %s17, 1
    %p34 = por %p32, %p33
    %p35 = scmp.ne.s32.totalorder %s27, %s30
    %p36 = scmp.eq.s32.totalorder %s17, 0
    %p37 = por %p35, %p36
    %p38 = scmp.ne.s32.totalorder %s27, %s30
    %p39 = scmp.eq.s32.totalorder %s22, 1
    %p40 = por %p38, %p39
    %p41 = scmp.ne.s32.totalorder %s30, %s31
    %p42 = scmp.eq.s32.totalorder %s22, 0
    %p43 = por %p41, %p42
    %p44 = scmp.ne.s32.totalorder %s30, %s31
    %p45 = scmp.eq.s32.totalorder %s23, 1
    %p46 = por %p44, %p45
    %p48 = scmp.ne.s32.totalorder %s31, %s47
    %p49 = scmp.eq.s32.totalorder %s23, 0
    %p50 = por %p48, %p49
    %s51 = ssub.s32 %s17, %s24
    %p52 = scmp.eq.s32.totalorder %s51, 0
    %s54 = sadd.s32 %s53, 1
    %s55 = scalar_select %p52, %s53, %s54
    %p58 = pneg %p52
    %p59 = scmp.eq.s32.totalorder %s17, 1
    %p60 = por %p58, %p59
    %p61 = scmp.ne.s32.totalorder %s53, %s56
    %p62 = scmp.eq.s32.totalorder %s17, 0
    %p63 = por %p61, %p62
    %p64 = scmp.ne.s32.totalorder %s53, %s56
    %p65 = scmp.eq.s32.totalorder %s22, 1
    %p66 = por %p64, %p65
    %p67 = scmp.ne.s32.totalorder %s56, %s57
    %p68 = scmp.eq.s32.totalorder %s22, 0
    %p69 = por %p67, %p68
    %p70 = scmp.ne.s32.totalorder %s56, %s57
    %p71 = scmp.eq.s32.totalorder %s23, 1
    %p72 = por %p70, %p71
    %p74 = scmp.ne.s32.totalorder %s57, %s73
    %p75 = scmp.eq.s32.totalorder %s23, 0
    %p76 = por %p74, %p75
    %s78 = sadd.s32 %s77, 1
    %p81 = scmp.eq.s32.totalorder %s17, 1
    %p82 = scmp.ne.s32.totalorder %s77, %s79
    %p83 = scmp.eq.s32.totalorder %s17, 0
    %p84 = por %p82, %p83
    %p85 = scmp.ne.s32.totalorder %s77, %s79
    %p86 = scmp.eq.s32.totalorder %s22, 1
    %p87 = por %p85, %p86
    %p88 = scmp.ne.s32.totalorder %s79, %s80
    %p89 = scmp.eq.s32.totalorder %s22, 0
    %p90 = por %p88, %p89
    %p91 = scmp.ne.s32.totalorder %s79, %s80
    %p92 = scmp.eq.s32.totalorder %s23, 1
    %p93 = por %p91, %p92
    %p95 = scmp.ne.s32.totalorder %s80, %s94
    %p96 = scmp.eq.s32.totalorder %s23, 0
    %p97 = por %p95, %p96
    %s99 = sadd.s32 %s98, 1
    %p102 = scmp.eq.s32.totalorder %s17, 1
    %p103 = scmp.ne.s32.totalorder %s98, %s100
    %p104 = scmp.eq.s32.totalorder %s17, 0
    %p105 = por %p103, %p104
    %p106 = scmp.ne.s32.totalorder %s98, %s100
    %p107 = scmp.eq.s32.totalorder %s22, 1
    %p108 = por %p106, %p107
    %p109 = scmp.ne.s32.totalorder %s100, %s101
    %p110 = scmp.eq.s32.totalorder %s22, 0
    %p111 = por %p109, %p110
    %p112 = scmp.ne.s32.totalorder %s100, %s101
    %p113 = scmp.eq.s32.totalorder %s23, 1
    %p114 = por %p112, %p113
    %p116 = scmp.ne.s32.totalorder %s101, %s115
    %p117 = scmp.eq.s32.totalorder %s23, 0
    %p118 = por %p116, %p117
    %s120 = sadd.s32 %s119, 1
    %p123 = scmp.eq.s32.totalorder %s17, 1
    %p124 = scmp.ne.s32.totalorder %s119, %s121
    %p125 = scmp.eq.s32.totalorder %s17, 0
    %p126 = por %p124, %p125
    %p127 = scmp.ne.s32.totalorder %s119, %s121
    %p128 = scmp.eq.s32.totalorder %s22, 1
    %p129 = por %p127, %p128
    %p130 = scmp.ne.s32.totalorder %s121, %s122
    %p131 = scmp.eq.s32.totalorder %s22, 0
    %p132 = por %p130, %p131
    %p133 = scmp.ne.s32.totalorder %s121, %s122
    %p134 = scmp.eq.s32.totalorder %s23, 1
    %p135 = por %p133, %p134
    %p137 = scmp.ne.s32.totalorder %s122, %s136
    %p138 = scmp.eq.s32.totalorder %s23, 0
    %p139 = por %p137, %p138
    %s141 = sadd.s32 %s140, 1
    %p144 = scmp.eq.s32.totalorder %s17, 1
    %p145 = scmp.ne.s32.totalorder %s140, %s142
    %p146 = scmp.eq.s32.totalorder %s17, 0
    %p147 = por %p145, %p146
    %p148 = scmp.ne.s32.totalorder %s140, %s142
    %p149 = scmp.eq.s32.totalorder %s22, 1
    %p150 = por %p148, %p149
    %p151 = scmp.ne.s32.totalorder %s142, %s143
    %p152 = scmp.eq.s32.totalorder %s22, 0
    %p153 = por %p151, %p152
    %p154 = scmp.ne.s32.totalorder %s142, %s143
    %p155 = scmp.eq.s32.totalorder %s23, 1
    %p156 = por %p154, %p155
    %p158 = scmp.ne.s32.totalorder %s143, %s157
    %p159 = scmp.eq.s32.totalorder %s23, 0
    %p160 = por %p158, %p159
    %s162 = sadd.s32 %s161, 1
    %p165 = scmp.eq.s32.totalorder %s17, 1
    %p166 = scmp.ne.s32.totalorder %s161, %s163
    %p167 = scmp.eq.s32.totalorder %s17, 0
    %p168 = por %p166, %p167
    %p169 = scmp.ne.s32.totalorder %s161, %s163
    %p170 = scmp.eq.s32.totalorder %s22, 1
    %p171 = por %p169, %p170
    %p172 = scmp.ne.s32.totalorder %s163, %s164
    %p173 = scmp.eq.s32.totalorder %s22, 0
    %p174 = por %p172, %p173
    %p175 = scmp.ne.s32.totalorder %s163, %s164
    %p176 = scmp.eq.s32.totalorder %s23, 1
    %p177 = por %p175, %p176
    %p179 = scmp.ne.s32.totalorder %s164, %s178
    %p180 = scmp.eq.s32.totalorder %s23, 0
    %p181 = por %p179, %p180
    %s183 = sadd.s32 %s182, 1
    %p186 = scmp.eq.s32.totalorder %s17, 1
    %p187 = scmp.ne.s32.totalorder %s182, %s184
    %p188 = scmp.eq.s32.totalorder %s17, 0
    %p189 = por %p187, %p188
    %p190 = scmp.ne.s32.totalorder %s182, %s184
    %p191 = scmp.eq.s32.totalorder %s22, 1
    %p192 = por %p190, %p191
    %p193 = scmp.ne.s32.totalorder %s184, %s185
    %p194 = scmp.eq.s32.totalorder %s22, 0
    %p195 = por %p193, %p194
    %p196 = scmp.ne.s32.totalorder %s184, %s185
    %p197 = scmp.eq.s32.totalorder %s23, 1
    %p198 = por %p196, %p197
    %p200 = scmp.ne.s32.totalorder %s185, %s199
    %p201 = scmp.eq.s32.totalorder %s23, 0
    %p202 = por %p200, %p201
    %s203 = ssub.s32 %s17, %s24
    %p204 = scmp.eq.s32.totalorder %s203, 0
    %s206 = sadd.s32 %s205, 1
    %s207 = scalar_select %p204, %s205, %s206
    %p210 = pneg %p204
    %p211 = scmp.eq.s32.totalorder %s17, 1
    %p212 = por %p210, %p211
    %p213 = scmp.ne.s32.totalorder %s205, %s208
    %p214 = scmp.eq.s32.totalorder %s17, 0
    %p215 = por %p213, %p214
    %p216 = scmp.ne.s32.totalorder %s205, %s208
    %p217 = scmp.eq.s32.totalorder %s22, 1
    %p218 = por %p216, %p217
    %p219 = scmp.ne.s32.totalorder %s208, %s209
    %p220 = scmp.eq.s32.totalorder %s22, 0
    %p221 = por %p219, %p220
    %p222 = scmp.ne.s32.totalorder %s208, %s209
    %p223 = scmp.eq.s32.totalorder %s23, 1
    %p224 = por %p222, %p223
    %p226 = scmp.ne.s32.totalorder %s209, %s225
    %p227 = scmp.eq.s32.totalorder %s23, 0
    %p228 = por %p226, %p227
    %s229 = ssub.s32 %s17, %s24
    %p230 = scmp.eq.s32.totalorder %s229, 0
    %s232 = sadd.s32 %s231, 1
    %s233 = scalar_select %p230, %s231, %s232
    %p236 = pneg %p230
    %p237 = scmp.eq.s32.totalorder %s17, 1
    %p238 = por %p236, %p237
    %p239 = scmp.ne.s32.totalorder %s231, %s234
    %p240 = scmp.eq.s32.totalorder %s17, 0
    %p241 = por %p239, %p240
    %p242 = scmp.ne.s32.totalorder %s231, %s234
    %p243 = scmp.eq.s32.totalorder %s22, 1
    %p244 = por %p242, %p243
    %p245 = scmp.ne.s32.totalorder %s234, %s235
    %p246 = scmp.eq.s32.totalorder %s22, 0
    %p247 = por %p245, %p246
    %p248 = scmp.ne.s32.totalorder %s234, %s235
    %p249 = scmp.eq.s32.totalorder %s23, 1
    %p250 = por %p248, %p249
    %p252 = scmp.ne.s32.totalorder %s235, %s251
    %p253 = scmp.eq.s32.totalorder %s23, 0
    %p254 = por %p252, %p253
    %s255 = ssub.s32 %s17, %s24
    %p256 = scmp.eq.s32.totalorder %s255, 0
    %s258 = sadd.s32 %s257, 1
    %s259 = scalar_select %p256, %s257, %s258
    %p262 = pneg %p256
    %p263 = scmp.eq.s32.totalorder %s17, 1
    %p264 = por %p262, %p263
    %p265 = scmp.ne.s32.totalorder %s257, %s260
    %p266 = scmp.eq.s32.totalorder %s17, 0
    %p267 = por %p265, %p266
    %p268 = scmp.ne.s32.totalorder %s257, %s260
    %p269 = scmp.eq.s32.totalorder %s22, 1
    %p270 = por %p268, %p269
    %p271 = scmp.ne.s32.totalorder %s260, %s261
    %p272 = scmp.eq.s32.totalorder %s22, 0
    %p273 = por %p271, %p272
    %p274 = scmp.ne.s32.totalorder %s260, %s261
    %p275 = scmp.eq.s32.totalorder %s23, 1
    %p276 = por %p274, %p275
    %p278 = scmp.ne.s32.totalorder %s261, %s277
    %p279 = scmp.eq.s32.totalorder %s23, 0
    %p280 = por %p278, %p279
    %p281 = scmp.le.s32.totalorder 1, %s17
    %p282 = scmp.lt.s32.totalorder %s17, 3
    %p283 = pnand %p281, %p282
    %p284 = pneg %p283
    // Predicated region
    $region9: #{dmon_net_forward_batched.1} parent=5 // pred_check
      _
    $region10: #{dmon_net_forward_batched.1} parent=5 // pred_check_branch
      %286 = sbr.rel (%p283) target = $region12
    $region11: #{dmon_net_forward_batched.1} parent=5 // pred_region
      %s287 = ssub.s32 %s17, 1
      // Predicated region
      $region13: #{dmon_net_forward_batched.1} parent=11 // pred_check
        %p288 = pneg %p90
      $region14: #{dmon_net_forward_batched.1} parent=11 // pred_check_branch
        %290 = sbr.rel (%p288) target = $region16
      $region15: #{dmon_net_forward_batched.1} parent=11 // pred_region
        _
      $region16: #{dmon_net_forward_batched.1} parent=11 // pred_fallthru
        _
      // Predicated region
      $region17: #{dmon_net_forward_batched.1} parent=11 // pred_check
        %p291 = pneg %p111
      $region18: #{dmon_net_forward_batched.1} parent=11 // pred_check_branch
        %293 = sbr.rel (%p291) target = $region20
      $region19: #{dmon_net_forward_batched.1} parent=11 // pred_region
        _
      $region20: #{dmon_net_forward_batched.1} parent=11 // pred_fallthru
        _
      // Predicated region
      $region21: #{dmon_net_forward_batched.1} parent=11 // pred_check
        %p294 = pneg %p132
      $region22: #{dmon_net_forward_batched.1} parent=11 // pred_check_branch
        %296 = sbr.rel (%p294) target = $region24
      $region23: #{dmon_net_forward_batched.1} parent=11 // pred_region
        _
      $region24: #{dmon_net_forward_batched.1} parent=11 // pred_fallthru
        _
      // Predicated region
      $region25: #{dmon_net_forward_batched.1} parent=11 // pred_check
        %p297 = pneg %p153
      $region26: #{dmon_net_forward_batched.1} parent=11 // pred_check_branch
        %299 = sbr.rel (%p297) target = $region28
      $region27: #{dmon_net_forward_batched.1} parent=11 // pred_region
        _
      $region28: #{dmon_net_forward_batched.1} parent=11 // pred_fallthru
        _
      // Predicated region
      $region29: #{dmon_net_forward_batched.1} parent=11 // pred_check
        %p300 = pneg %p174
      $region30: #{dmon_net_forward_batched.1} parent=11 // pred_check_branch
        %302 = sbr.rel (%p300) target = $region32
      $region31: #{dmon_net_forward_batched.1} parent=11 // pred_region
        _
      $region32: #{dmon_net_forward_batched.1} parent=11 // pred_fallthru
        _
      // Predicated region
      $region33: #{dmon_net_forward_batched.1} parent=11 // pred_check
        %p303 = pneg %p195
      $region34: #{dmon_net_forward_batched.1} parent=11 // pred_check_branch
        %305 = sbr.rel (%p303) target = $region36
      $region35: #{dmon_net_forward_batched.1} parent=11 // pred_region
        _
      $region36: #{dmon_net_forward_batched.1} parent=11 // pred_fallthru
        _
    $region12: #{dmon_net_forward_batched.1} parent=5 // pred_fallthru
      _
    %p306 = scmp.lt.s32.totalorder %s17, 2
    // Predicated region
    $region37: #{dmon_net_forward_batched.1} parent=5 // pred_check
      %p307 = pneg %p306
    $region38: #{dmon_net_forward_batched.1} parent=5 // pred_check_branch
      %309 = sbr.rel (%p307) target = $region40
    $region39: #{dmon_net_forward_batched.1} parent=5 // pred_region
      // Predicated region
      $region41: #{dmon_net_forward_batched.1} parent=39 // pred_check
        %p310 = pneg %p37
      $region42: #{dmon_net_forward_batched.1} parent=39 // pred_check_branch
        %312 = sbr.rel (%p310) target = $region44
      $region43: #{dmon_net_forward_batched.1} parent=39 // pred_region
        %s313 = smul.u32 32, %s17
        %p314 = scmp.lt.s32.totalorder %s313, 63
        %s315 = scalar_select %p314, %s313, 63
        %s316 = smul.addr %s315, 4
        %s317 = scalar_lea.vmem %s0, %s316
        %s318 = smul.u32 32, %s17
      $region44: #{dmon_net_forward_batched.1} parent=39 // pred_fallthru
        _
      // Predicated region
      $region45: #{dmon_net_forward_batched.1} parent=39 // pred_check
        %p319 = pneg %p63
      $region46: #{dmon_net_forward_batched.1} parent=39 // pred_check_branch
        %321 = sbr.rel (%p319) target = $region48
      $region47: #{dmon_net_forward_batched.1} parent=39 // pred_region
        %s322 = smul.u32 4, %s17
        %p323 = scmp.lt.s32.totalorder %s322, 7
        %s324 = scalar_select %p323, %s322, 7
        %s325 = smul.addr %s324, 8
        %s326 = smul.addr %s325, 4
        %s327 = scalar_lea.vmem %s1, %s326
        %s328 = smul.u32 4, %s17
      $region48: #{dmon_net_forward_batched.1} parent=39 // pred_fallthru
        _
    $region40: #{dmon_net_forward_batched.1} parent=5 // pred_fallthru
      _
    %p329 = scmp.le.s32.totalorder 1, %s17
    %p330 = scmp.lt.s32.totalorder %s17, 3
    %p331 = pnand %p329, %p330
    %p332 = pneg %p331
    // Predicated region
    $region49: #{dmon_net_forward_batched.1} parent=5 // pred_check
      _
    $region50: #{dmon_net_forward_batched.1} parent=5 // pred_check_branch
      %334 = sbr.rel (%p331) target = $region52
    $region51: #{dmon_net_forward_batched.1} parent=5 // pred_region
      %s335 = ssub.s32 %s17, 1
      %s336 = smul.u32 32, %s22
      %p337 = scmp.lt.s32.totalorder %s336, 63
      %s338 = scalar_select %p337, %s336, 63
      %s339 = smul.addr %s338, 4
      %s340 = scalar_lea.vmem %s0, %s339
      %p341 = pneg %p43
      %p342 = pneg %p40
      %s343 = smul.u32 4, %s22
      %p344 = scmp.lt.s32.totalorder %s343, 7
      %s345 = scalar_select %p344, %s343, 7
      %s346 = smul.addr %s345, 8
      %s347 = smul.addr %s346, 4
      %s348 = scalar_lea.vmem %s1, %s347
      %p349 = pneg %p69
      %p350 = pneg %p66
      %p351 = pneg %p90
      %p352 = pneg %p87
      %p353 = pneg %p111
      %p354 = pneg %p108
      %p355 = pneg %p132
      %p356 = pneg %p129
      %p357 = pneg %p153
      %p358 = pneg %p150
      %p359 = pneg %p174
      %p360 = pneg %p171
      %p361 = pneg %p195
      %p362 = pneg %p192
      %p363 = pneg %p221
      %p364 = pneg %p218
      %s365 = smul.u32 2, %s22
      %p366 = scmp.lt.s32.totalorder %s365, 3
      %s367 = scalar_select %p366, %s365, 3
      %s368 = smul.addr %s367, 4
      %s369 = scalar_lea.vmem %s8, %s368
      %p370 = pneg %p247
      %p371 = pneg %p244
      %s372 = smul.u32 2, %s22
      %p373 = scmp.lt.s32.totalorder %s372, 3
      %s374 = scalar_select %p373, %s372, 3
      %s375 = smul.addr %s374, 4
      %s376 = scalar_lea.vmem %s9, %s375
      %p377 = pneg %p273
      %p378 = pneg %p270
      %p379 = scmp.lt.s32.totalorder %s22, 1
      %s380 = scalar_select %p379, %s22, 1
      %s381 = scalar_lea.vmem %s10, %s380
      %s382 = smul.u32 32, %s22
      %p383 = scmp.lt.s32.totalorder %s382, 63
      %s384 = scalar_select %p383, %s382, 63
      %s385 = smul.addr %s384, 4
      %s386 = scalar_lea.vmem %s0, %s385
      %s387 = smul.u32 32, %s22
      %s388 = smul.u32 4, %s22
      %p389 = scmp.lt.s32.totalorder %s388, 7
      %s390 = scalar_select %p389, %s388, 7
      %s391 = smul.addr %s390, 8
      %s392 = smul.addr %s391, 4
      %s393 = scalar_lea.vmem %s1, %s392
      %s394 = smul.u32 4, %s22
      %s395 = smul.u32 2, %s22
      %p396 = scmp.lt.s32.totalorder %s395, 3
      %s397 = scalar_select %p396, %s395, 3
      %s398 = smul.addr %s397, 4
      %s399 = scalar_lea.vmem %s8, %s398
      %s400 = smul.u32 2, %s22
      %s401 = smul.u32 2, %s22
      %p402 = scmp.lt.s32.totalorder %s401, 3
      %s403 = scalar_select %p402, %s401, 3
      %s404 = smul.addr %s403, 4
      %s405 = scalar_lea.vmem %s9, %s404
      %s406 = smul.u32 2, %s22
      %p407 = scmp.lt.s32.totalorder %s22, 1
      %s408 = scalar_select %p407, %s22, 1
      %s409 = scalar_lea.vmem %s10, %s408
      %v411 = vld [vmem:[%s386] sm:$0xf]
      %v412 = vld [vmem:[%s386 + $0x4] sm:$0xf]
      %v413 = vld [vmem:[%s386 + $0x8] sm:$0xf]
      %v414 = vld [vmem:[%s386 + $0xc] sm:$0xf]
      %v415 = vld [vmem:[%s386 + $0x10] sm:$0xf]
      %v416 = vld [vmem:[%s386 + $0x14] sm:$0xf]
      %v417 = vld [vmem:[%s386 + $0x18] sm:$0xf]
      %v418 = vld [vmem:[%s386 + $0x1c] sm:$0xf]
      %v419 = vld [vmem:[%s386 + $0x20] sm:$0xf]
      %v420 = vld [vmem:[%s386 + $0x24] sm:$0xf]
      %v421 = vld [vmem:[%s386 + $0x28] sm:$0xf]
      %v422 = vld [vmem:[%s386 + $0x2c] sm:$0xf]
      %v423 = vld [vmem:[%s386 + $0x30] sm:$0xf]
      %v424 = vld [vmem:[%s386 + $0x34] sm:$0xf]
      %v425 = vld [vmem:[%s386 + $0x38] sm:$0xf]
      %v426 = vld [vmem:[%s386 + $0x3c] sm:$0xf]
      %v427 = vld [vmem:[%s386 + $0x40] sm:$0xf]
      %v428 = vld [vmem:[%s386 + $0x44] sm:$0xf]
      %v429 = vld [vmem:[%s386 + $0x48] sm:$0xf]
      %v430 = vld [vmem:[%s386 + $0x4c] sm:$0xf]
      %v431 = vld [vmem:[%s386 + $0x50] sm:$0xf]
      %v432 = vld [vmem:[%s386 + $0x54] sm:$0xf]
      %v433 = vld [vmem:[%s386 + $0x58] sm:$0xf]
      %v434 = vld [vmem:[%s386 + $0x5c] sm:$0xf]
      %v435 = vld [vmem:[%s386 + $0x60] sm:$0xf]
      %v436 = vld [vmem:[%s386 + $0x64] sm:$0xf]
      %v437 = vld [vmem:[%s386 + $0x68] sm:$0xf]
      %v438 = vld [vmem:[%s386 + $0x6c] sm:$0xf]
      %v439 = vld [vmem:[%s386 + $0x70] sm:$0xf]
      %v440 = vld [vmem:[%s386 + $0x74] sm:$0xf]
      %v441 = vld [vmem:[%s386 + $0x78] sm:$0xf]
      %v442 = vld [vmem:[%s386 + $0x7c] sm:$0xf]
      %v443 = vld [vmem:[%s2] sm:$0xf]
      %v444 = vld [vmem:[%s2 + $0x4] sm:$0xf]
      %v477 = vunpack.c.l.b16 %v411
      %v478 = vunpack.c.l.b16 %v412
      %v479 = vunpack.c.l.b16 %v413
      %v480 = vunpack.c.l.b16 %v414
      %v481 = vunpack.c.l.b16 %v415
      %v482 = vunpack.c.l.b16 %v416
      %v483 = vunpack.c.l.b16 %v417
      %v484 = vunpack.c.l.b16 %v418
      %v485 = vunpack.c.l.b16 %v419
      %v486 = vunpack.c.l.b16 %v420
      %v487 = vunpack.c.l.b16 %v421
      %v488 = vunpack.c.l.b16 %v422
      %v489 = vunpack.c.l.b16 %v423
      %v490 = vunpack.c.l.b16 %v424
      %v491 = vunpack.c.l.b16 %v425
      %v492 = vunpack.c.l.b16 %v426
      %v493 = vunpack.c.l.b16 %v427
      %v494 = vunpack.c.l.b16 %v428
      %v495 = vunpack.c.l.b16 %v429
      %v496 = vunpack.c.l.b16 %v430
      %v497 = vunpack.c.l.b16 %v431
      %v498 = vunpack.c.l.b16 %v432
      %v499 = vunpack.c.l.b16 %v433
      %v500 = vunpack.c.l.b16 %v434
      %v501 = vunpack.c.l.b16 %v435
      %v502 = vunpack.c.l.b16 %v436
      %v503 = vunpack.c.l.b16 %v437
      %v504 = vunpack.c.l.b16 %v438
      %v505 = vunpack.c.l.b16 %v439
      %v506 = vunpack.c.l.b16 %v440
      %v507 = vunpack.c.l.b16 %v441
      %v508 = vunpack.c.l.b16 %v442
      %v509 = vpack.c.b16 %v478, %v477
      %v510 = vpack.c.b16 %v480, %v479
      %v511 = vpack.c.b16 %v482, %v481
      %v512 = vpack.c.b16 %v484, %v483
      %v513 = vpack.c.b16 %v486, %v485
      %v514 = vpack.c.b16 %v488, %v487
      %v515 = vpack.c.b16 %v490, %v489
      %v516 = vpack.c.b16 %v492, %v491
      %v517 = vpack.c.b16 %v494, %v493
      %v518 = vpack.c.b16 %v496, %v495
      %v519 = vpack.c.b16 %v498, %v497
      %v520 = vpack.c.b16 %v500, %v499
      %v521 = vpack.c.b16 %v502, %v501
      %v522 = vpack.c.b16 %v504, %v503
      %v523 = vpack.c.b16 %v506, %v505
      %v524 = vpack.c.b16 %v508, %v507
      %v527 = vunpack.c.l.b16 %v443
      %v528 = vunpack.c.l.b16 %v444
      %v529 = vpack.c.b16 %v528, %v527
      %vm531 = vcmask 130048
      %v533 = vsel %vm531, %v509, 0
      %v536 = vsel %vm531, %v510, 0
      %v539 = vsel %vm531, %v511, 0
      %v542 = vsel %vm531, %v512, 0
      %v545 = vsel %vm531, %v513, 0
      %v548 = vsel %vm531, %v514, 0
      %v551 = vsel %vm531, %v515, 0
      %v554 = vsel %vm531, %v516, 0
      %v557 = vsel %vm531, %v517, 0
      %v560 = vsel %vm531, %v518, 0
      %v563 = vsel %vm531, %v519, 0
      %v566 = vsel %vm531, %v520, 0
      %v569 = vsel %vm531, %v521, 0
      %v572 = vsel %vm531, %v522, 0
      %v575 = vsel %vm531, %v523, 0
      %v578 = vsel %vm531, %v524, 0
      %580 = vmatprep.subr.bf16.mxu0 0
      %581 = vmatpush1.bf16.msra.mxu0 %v529
      %582 = vmatprep.subr.bf16.mxu0 0
      %583 = vmatpush1.bf16.msra.mxu0 0
      %584 = vmatprep.subr.bf16.mxu0 0
      %585 = vmatpush1.bf16.msra.mxu0 0
      %586 = vmatprep.subr.bf16.mxu0 0
      %587 = vmatpush1.bf16.msra.mxu0 0
      %588 = vmatprep.subr.bf16.mxu0 0
      %589 = vmatpush1.bf16.msra.mxu0 0
      %590 = vmatprep.subr.bf16.mxu0 0
      %591 = vmatpush1.bf16.msra.mxu0 0
      %592 = vmatprep.subr.bf16.mxu0 0
      %593 = vmatpush1.bf16.msra.mxu0 0
      %594 = vmatprep.subr.bf16.mxu0 0
      %595 = vmatpush1.bf16.msra.mxu0 0
      %596 = vmatprep.subr.bf16.mxu0 0
      %597 = vmatpush1.bf16.msra.mxu0 0
      %598 = vmatprep.subr.bf16.mxu0 0
      %599 = vmatpush1.bf16.msra.mxu0 0
      %600 = vmatprep.subr.bf16.mxu0 0
      %601 = vmatpush1.bf16.msra.mxu0 0
      %602 = vmatprep.subr.bf16.mxu0 0
      %603 = vmatpush1.bf16.msra.mxu0 0
      %604 = vmatprep.subr.bf16.mxu0 0
      %605 = vmatpush1.bf16.msra.mxu0 0
      %606 = vmatprep.subr.bf16.mxu0 0
      %607 = vmatpush1.bf16.msra.mxu0 0
      %608 = vmatprep.subr.bf16.mxu0 0
      %609 = vmatpush1.bf16.msra.mxu0 0
      %610 = vmatprep.subr.bf16.mxu0 0
      %611 = vmatpush1.bf16.msra.mxu0 0
      %612 = vmatprep.mubr.bf16.mxu0 0
      %613 = vmatmul.mubr.bf16.gmra.mrb[0].mxu0 %v533
      %v614 = vpop.f32.mrb[0].mxu0
      %v615 = vadd.f32 0.0, %v614
      %v616 = vpop.f32.mrb[0].mxu0
      %v617 = vpop.f32.mrb[0].mxu0
      %v618 = vadd.f32 0.0, %v617
      %v619 = vpop.f32.mrb[0].mxu0
      %620 = vmatprep.mubr.bf16.mxu0 0
      %621 = vmatmul.mubr.bf16.gmra.mrb[0].mxu0 %v536
      %v622 = vpop.f32.mrb[0].mxu0
      %v623 = vadd.f32 0.0, %v622
      %v624 = vpop.f32.mrb[0].mxu0
      %v625 = vpop.f32.mrb[0].mxu0
      %v626 = vadd.f32 0.0, %v625
      %v627 = vpop.f32.mrb[0].mxu0
      %628 = vmatprep.mubr.bf16.mxu0 0
      %629 = vmatmul.mubr.bf16.gmra.mrb[0].mxu0 %v539
      %v630 = vpop.f32.mrb[0].mxu0
      %v631 = vadd.f32 0.0, %v630
      %v632 = vpop.f32.mrb[0].mxu0
      %v633 = vpop.f32.mrb[0].mxu0
      %v634 = vadd.f32 0.0, %v633
      %v635 = vpop.f32.mrb[0].mxu0
      %636 = vmatprep.mubr.bf16.mxu0 0
      %637 = vmatmul.mubr.bf16.gmra.mrb[0].mxu0 %v542
      %v638 = vpop.f32.mrb[0].mxu0
      %v639 = vadd.f32 0.0, %v638
      %v640 = vpop.f32.mrb[0].mxu0
      %v641 = vpop.f32.mrb[0].mxu0
      %v642 = vadd.f32 0.0, %v641
      %v643 = vpop.f32.mrb[0].mxu0
      %644 = vmatprep.mubr.bf16.mxu0 0
      %645 = vmatmul.mubr.bf16.gmra.mrb[0].mxu0 %v545
      %v646 = vpop.f32.mrb[0].mxu0
      %v647 = vadd.f32 0.0, %v646
      %v648 = vpop.f32.mrb[0].mxu0
      %v649 = vpop.f32.mrb[0].mxu0
      %v650 = vadd.f32 0.0, %v649
      %v651 = vpop.f32.mrb[0].mxu0
      %652 = vmatprep.mubr.bf16.mxu0 0
      %653 = vmatmul.mubr.bf16.gmra.mrb[0].mxu0 %v548
      %v654 = vpop.f32.mrb[0].mxu0
      %v655 = vadd.f32 0.0, %v654
      %v656 = vpop.f32.mrb[0].mxu0
      %v657 = vpop.f32.mrb[0].mxu0
      %v658 = vadd.f32 0.0, %v657
      %v659 = vpop.f32.mrb[0].mxu0
      %660 = vmatprep.mubr.bf16.mxu0 0
      %661 = vmatmul.mubr.bf16.gmra.mrb[0].mxu0 %v551
      %v662 = vpop.f32.mrb[0].mxu0
      %v663 = vadd.f32 0.0, %v662
      %v664 = vpop.f32.mrb[0].mxu0
      %v665 = vpop.f32.mrb[0].mxu0
      %v666 = vadd.f32 0.0, %v665
      %v667 = vpop.f32.mrb[0].mxu0
      %668 = vmatprep.mubr.bf16.mxu0 0
      %669 = vmatmul.mubr.bf16.gmra.mrb[0].mxu0 %v554
      %v670 = vpop.f32.mrb[0].mxu0
      %v671 = vadd.f32 0.0, %v670
      %v672 = vpop.f32.mrb[0].mxu0
      %v673 = vpop.f32.mrb[0].mxu0
      %v674 = vadd.f32 0.0, %v673
      %v675 = vpop.f32.mrb[0].mxu0
      %676 = vmatprep.mubr.bf16.mxu0 0
      %677 = vmatmul.mubr.bf16.gmra.mrb[0].mxu0 %v557
      %v678 = vpop.f32.mrb[0].mxu0
      %v679 = vadd.f32 0.0, %v678
      %v680 = vpop.f32.mrb[0].mxu0
      %v681 = vpop.f32.mrb[0].mxu0
      %v682 = vadd.f32 0.0, %v681
      %v683 = vpop.f32.mrb[0].mxu0
      %684 = vmatprep.mubr.bf16.mxu0 0
      %685 = vmatmul.mubr.bf16.gmra.mrb[0].mxu0 %v560
      %v686 = vpop.f32.mrb[0].mxu0
      %v687 = vadd.f32 0.0, %v686
      %v688 = vpop.f32.mrb[0].mxu0
      %v689 = vpop.f32.mrb[0].mxu0
      %v690 = vadd.f32 0.0, %v689
      %v691 = vpop.f32.mrb[0].mxu0
      %692 = vmatprep.mubr.bf16.mxu0 0
      %693 = vmatmul.mubr.bf16.gmra.mrb[0].mxu0 %v563
      %v694 = vpop.f32.mrb[0].mxu0
      %v695 = vadd.f32 0.0, %v694
      %v696 = vpop.f32.mrb[0].mxu0
      %v697 = vpop.f32.mrb[0].mxu0
      %v698 = vadd.f32 0.0, %v697
      %v699 = vpop.f32.mrb[0].mxu0
      %700 = vmatprep.mubr.bf16.mxu0 0
      %701 = vmatmul.mubr.bf16.gmra.mrb[0].mxu0 %v566
      %v702 = vpop.f32.mrb[0].mxu0
      %v703 = vadd.f32 0.0, %v702
      %v704 = vpop.f32.mrb[0].mxu0
      %v705 = vpop.f32.mrb[0].mxu0
      %v706 = vadd.f32 0.0, %v705
      %v707 = vpop.f32.mrb[0].mxu0
      %708 = vmatprep.mubr.bf16.mxu0 0
      %709 = vmatmul.mubr.bf16.gmra.mrb[0].mxu0 %v569
      %v710 = vpop.f32.mrb[0].mxu0
      %v711 = vadd.f32 0.0, %v710
      %v712 = vpop.f32.mrb[0].mxu0
      %v713 = vpop.f32.mrb[0].mxu0
      %v714 = vadd.f32 0.0, %v713
      %v715 = vpop.f32.mrb[0].mxu0
      %716 = vmatprep.mubr.bf16.mxu0 0
      %717 = vmatmul.mubr.bf16.gmra.mrb[0].mxu0 %v572
      %v718 = vpop.f32.mrb[0].mxu0
      %v719 = vadd.f32 0.0, %v718
      %v720 = vpop.f32.mrb[0].mxu0
      %v721 = vpop.f32.mrb[0].mxu0
      %v722 = vadd.f32 0.0, %v721
      %v723 = vpop.f32.mrb[0].mxu0
      %724 = vmatprep.mubr.bf16.mxu0 0
      %725 = vmatmul.mubr.bf16.gmra.mrb[0].mxu0 %v575
      %v726 = vpop.f32.mrb[0].mxu0
      %v727 = vadd.f32 0.0, %v726
      %v728 = vpop.f32.mrb[0].mxu0
      %v729 = vpop.f32.mrb[0].mxu0
      %v730 = vadd.f32 0.0, %v729
      %v731 = vpop.f32.mrb[0].mxu0
      %732 = vmatprep.mubr.bf16.mxu0 0
      %733 = vmatmul.mubr.bf16.gmra.mrb[0].mxu0 %v578
      %v734 = vpop.f32.mrb[0].mxu0
      %v735 = vadd.f32 0.0, %v734
      %v736 = vpop.f32.mrb[0].mxu0
      %v737 = vpop.f32.mrb[0].mxu0
      %v738 = vadd.f32 0.0, %v737
      %v739 = vpop.f32.mrb[0].mxu0
      %740 = vdwg.mxu0
      %v741 = vld [vmem:[%s393] sm:$0xf]
      %v742 = vld [vmem:[%s393 + $0x4] sm:$0xf]
      %v743 = vld [vmem:[%s393 + $0x8] sm:$0xf]
      %v744 = vld [vmem:[%s393 + $0xc] sm:$0xf]
      %v745 = vld [vmem:[%s393 + $0x10] sm:$0xf]
      %v746 = vld [vmem:[%s393 + $0x14] sm:$0xf]
      %v747 = vld [vmem:[%s393 + $0x18] sm:$0xf]
      %v748 = vld [vmem:[%s393 + $0x1c] sm:$0xf]
      %v749 = vunpack.c.l.bf16 %v741
      %v750 = vunpack.c.l.bf16 %v742
      %v751 = vunpack.c.l.bf16 %v743
      %v752 = vunpack.c.l.bf16 %v744
      %v753 = vunpack.c.l.bf16 %v745
      %v754 = vunpack.c.l.bf16 %v746
      %v755 = vunpack.c.l.bf16 %v747
      %v756 = vunpack.c.l.bf16 %v748
      %vm757 = vcmask 523264
      %v758 = vsel %vm757, %v749, 0.0
      %759 = vadd.xlane.f32.xlu0 %v758
      %v760 = vpop.xlane.xlu0 %759
      %v761 = vsel %vm757, %v750, 0.0
      %762 = vadd.xlane.f32.xlu0 %v761
      %v763 = vpop.xlane.xlu0 %762
      %v764 = vsel %vm757, %v751, 0.0
      %765 = vadd.xlane.f32.xlu0 %v764
      %v766 = vpop.xlane.xlu0 %765
      %v767 = vsel %vm757, %v752, 0.0
      %768 = vadd.xlane.f32.xlu0 %v767
      %v769 = vpop.xlane.xlu0 %768
      %v770 = vsel %vm757, %v753, 0.0
      %771 = vadd.xlane.f32.xlu0 %v770
      %v772 = vpop.xlane.xlu0 %771
      %v773 = vsel %vm757, %v754, 0.0
      %774 = vadd.xlane.f32.xlu0 %v773
      %v775 = vpop.xlane.xlu0 %774
      %v776 = vsel %vm757, %v755, 0.0
      %777 = vadd.xlane.f32.xlu0 %v776
      %v778 = vpop.xlane.xlu0 %777
      %v779 = vsel %vm757, %v756, 0.0
      %780 = vadd.xlane.f32.xlu0 %v779
      %v781 = vpop.xlane.xlu0 %780
      %v782 = vadd.f32 %v760, 1.0
      %v783 = vadd.f32 %v763, 1.0
      %v784 = vadd.f32 %v766, 1.0
      %v785 = vadd.f32 %v769, 1.0
      %v786 = vadd.f32 %v772, 1.0
      %v787 = vadd.f32 %v775, 1.0
      %v788 = vadd.f32 %v778, 1.0
      %v789 = vadd.f32 %v781, 1.0
      %v790 = vrsqrt.pop %v782
      %v791 = vrsqrt.pop %v783
      %v792 = vrsqrt.pop %v784
      %v793 = vrsqrt.pop %v785
      %v794 = vrsqrt.pop %v786
      %v795 = vrsqrt.pop %v787
      %v796 = vrsqrt.pop %v788
      %v797 = vrsqrt.pop %v789
      %v798 = vmul.f32 %v790, %v615
      %v799 = vmul.f32 %v791, %v618
      %v800 = vmul.f32 %v792, %v623
      %v801 = vmul.f32 %v793, %v626
      %v802 = vmul.f32 %v794, %v631
      %v803 = vmul.f32 %v795, %v634
      %v804 = vmul.f32 %v796, %v639
      %v805 = vmul.f32 %v797, %v642
      %v806 = vpack.c.bf16 %v799, %v798
      %v807 = vpack.c.bf16 %v801, %v800
      %v808 = vpack.c.bf16 %v803, %v802
      %v809 = vpack.c.bf16 %v805, %v804
      %v818 = vunpack.c.l.b16 %v741
      %v819 = vunpack.c.l.b16 %v742
      %v820 = vunpack.c.l.b16 %v743
      %v821 = vunpack.c.l.b16 %v744
      %v822 = vunpack.c.l.b16 %v745
      %v823 = vunpack.c.l.b16 %v746
      %v824 = vunpack.c.l.b16 %v747
      %v825 = vunpack.c.l.b16 %v748
      %v826 = vpack.c.b16 %v819, %v818
      %v827 = vpack.c.b16 %v821, %v820
      %v828 = vpack.c.b16 %v823, %v822
      %v829 = vpack.c.b16 %v825, %v824
      %v831 = vsel %vm757, %v826, 0
      %v834 = vsel %vm757, %v827, 0
      %v837 = vsel %vm757, %v828, 0
      %v840 = vsel %vm757, %v829, 0
      %842 = vmatprep.subr.bf16.mxu0 0
      %843 = vmatpush1.bf16.msra.mxu0 %v806
      %844 = vmatprep.subr.bf16.mxu0 0
      %845 = vmatpush1.bf16.msra.mxu0 %v807
      %846 = vmatprep.subr.bf16.mxu0 0
      %847 = vmatpush1.bf16.msra.mxu0 %v808
      %848 = vmatprep.subr.bf16.mxu0 0
      %849 = vmatpush1.bf16.msra.mxu0 %v809
      %850 = vmatprep.subr.bf16.mxu0 0
      %851 = vmatpush1.bf16.msra.mxu0 0
      %852 = vmatprep.subr.bf16.mxu0 0
      %853 = vmatpush1.bf16.msra.mxu0 0
      %854 = vmatprep.subr.bf16.mxu0 0
      %855 = vmatpush1.bf16.msra.mxu0 0
      %856 = vmatprep.subr.bf16.mxu0 0
      %857 = vmatpush1.bf16.msra.mxu0 0
      %858 = vmatprep.subr.bf16.mxu0 0
      %859 = vmatpush1.bf16.msra.mxu0 0
      %860 = vmatprep.subr.bf16.mxu0 0
      %861 = vmatpush1.bf16.msra.mxu0 0
      %862 = vmatprep.subr.bf16.mxu0 0
      %863 = vmatpush1.bf16.msra.mxu0 0
      %864 = vmatprep.subr.bf16.mxu0 0
      %865 = vmatpush1.bf16.msra.mxu0 0
      %866 = vmatprep.subr.bf16.mxu0 0
      %867 = vmatpush1.bf16.msra.mxu0 0
      %868 = vmatprep.subr.bf16.mxu0 0
      %869 = vmatpush1.bf16.msra.mxu0 0
      %870 = vmatprep.subr.bf16.mxu0 0
      %871 = vmatpush1.bf16.msra.mxu0 0
      %872 = vmatprep.subr.bf16.mxu0 0
      %873 = vmatpush1.bf16.msra.mxu0 0
      %874 = vmatprep.mubr.bf16.mxu0 0
      %875 = vmatmul.mubr.bf16.gmra.mrb[0].mxu0 %v831
      %v876 = vpop.f32.mrb[0].mxu0
      %v877 = vadd.f32 0.0, %v876
      %v878 = vpop.f32.mrb[0].mxu0
      %v879 = vpop.f32.mrb[0].mxu0
      %v880 = vadd.f32 0.0, %v879
      %v881 = vpop.f32.mrb[0].mxu0
      %882 = vmatprep.mubr.bf16.mxu0 0
      %883 = vmatmul.mubr.bf16.gmra.mrb[0].mxu0 %v834
      %v884 = vpop.f32.mrb[0].mxu0
      %v885 = vadd.f32 0.0, %v884
      %v886 = vpop.f32.mrb[0].mxu0
      %v887 = vpop.f32.mrb[0].mxu0
      %v888 = vadd.f32 0.0, %v887
      %v889 = vpop.f32.mrb[0].mxu0
      %890 = vmatprep.mubr.bf16.mxu0 0
      %891 = vmatmul.mubr.bf16.gmra.mrb[0].mxu0 %v837
      %v892 = vpop.f32.mrb[0].mxu0
      %v893 = vadd.f32 0.0, %v892
      %v894 = vpop.f32.mrb[0].mxu0
      %v895 = vpop.f32.mrb[0].mxu0
      %v896 = vadd.f32 0.0, %v895
      %v897 = vpop.f32.mrb[0].mxu0
      %898 = vmatprep.mubr.bf16.mxu0 0
      %899 = vmatmul.mubr.bf16.gmra.mrb[0].mxu0 %v840
      %v900 = vpop.f32.mrb[0].mxu0
      %v901 = vadd.f32 0.0, %v900
      %v902 = vpop.f32.mrb[0].mxu0
      %v903 = vpop.f32.mrb[0].mxu0
      %v904 = vadd.f32 0.0, %v903
      %v905 = vpop.f32.mrb[0].mxu0
      %906 = vdwg.mxu0
      %v907 = vmul.f32 %v790, %v877
      %v908 = vmul.f32 %v791, %v880
      %v909 = vmul.f32 %v792, %v885
      %v910 = vmul.f32 %v793, %v888
      %v911 = vmul.f32 %v794, %v893
      %v912 = vmul.f32 %v795, %v896
      %v913 = vmul.f32 %v796, %v901
      %v914 = vmul.f32 %v797, %v904
      %v915 = vmul.f32 %v790, %v790
      %v916 = vmul.f32 %v791, %v791
      %v917 = vmul.f32 %v792, %v792
      %v918 = vmul.f32 %v793, %v793
      %v919 = vmul.f32 %v794, %v794
      %v920 = vmul.f32 %v795, %v795
      %v921 = vmul.f32 %v796, %v796
      %v922 = vmul.f32 %v797, %v797
      %v923 = vmul.f32 %v915, %v615
      %v924 = vmul.f32 %v916, %v618
      %v925 = vmul.f32 %v917, %v623
      %v926 = vmul.f32 %v918, %v626
      %v927 = vmul.f32 %v919, %v631
      %v928 = vmul.f32 %v920, %v634
      %v929 = vmul.f32 %v921, %v639
      %v930 = vmul.f32 %v922, %v642
      %v931 = vadd.f32 %v907, %v923
      %v932 = vadd.f32 %v908, %v924
      %v933 = vadd.f32 %v909, %v925
      %v934 = vadd.f32 %v910, %v926
      %v935 = vadd.f32 %v911, %v927
      %v936 = vadd.f32 %v912, %v928
      %v937 = vadd.f32 %v913, %v929
      %v938 = vadd.f32 %v914, %v930
      %s939 = scalar_lea.vmem %s393, 32
      %v940 = vld [vmem:[%s939] sm:$0xf]
      %v941 = vld [vmem:[%s939 + $0x4] sm:$0xf]
      %v942 = vld [vmem:[%s939 + $0x8] sm:$0xf]
      %v943 = vld [vmem:[%s939 + $0xc] sm:$0xf]
      %v944 = vld [vmem:[%s939 + $0x10] sm:$0xf]
      %v945 = vld [vmem:[%s939 + $0x14] sm:$0xf]
      %v946 = vld [vmem:[%s939 + $0x18] sm:$0xf]
      %v947 = vld [vmem:[%s939 + $0x1c] sm:$0xf]
      %v948 = vunpack.c.l.bf16 %v940
      %v949 = vunpack.c.l.bf16 %v941
      %v950 = vunpack.c.l.bf16 %v942
      %v951 = vunpack.c.l.bf16 %v943
      %v952 = vunpack.c.l.bf16 %v944
      %v953 = vunpack.c.l.bf16 %v945
      %v954 = vunpack.c.l.bf16 %v946
      %v955 = vunpack.c.l.bf16 %v947
      %v956 = vsel %vm757, %v948, 0.0
      %957 = vadd.xlane.f32.xlu0 %v956
      %v958 = vpop.xlane.xlu0 %957
      %v959 = vsel %vm757, %v949, 0.0
      %960 = vadd.xlane.f32.xlu0 %v959
      %v961 = vpop.xlane.xlu0 %960
      %v962 = vsel %vm757, %v950, 0.0
      %963 = vadd.xlane.f32.xlu0 %v962
      %v964 = vpop.xlane.xlu0 %963
      %v965 = vsel %vm757, %v951, 0.0
      %966 = vadd.xlane.f32.xlu0 %v965
      %v967 = vpop.xlane.xlu0 %966
      %v968 = vsel %vm757, %v952, 0.0
      %969 = vadd.xlane.f32.xlu0 %v968
      %v970 = vpop.xlane.xlu0 %969
      %v971 = vsel %vm757, %v953, 0.0
      %972 = vadd.xlane.f32.xlu0 %v971
      %v973 = vpop.xlane.xlu0 %972
      %v974 = vsel %vm757, %v954, 0.0
      %975 = vadd.xlane.f32.xlu0 %v974
      %v976 = vpop.xlane.xlu0 %975
      %v977 = vsel %vm757, %v955, 0.0
      %978 = vadd.xlane.f32.xlu0 %v977
      %v979 = vpop.xlane.xlu0 %978
      %v980 = vadd.f32 %v958, 1.0
      %v981 = vadd.f32 %v961, 1.0
      %v982 = vadd.f32 %v964, 1.0
      %v983 = vadd.f32 %v967, 1.0
      %v984 = vadd.f32 %v970, 1.0
      %v985 = vadd.f32 %v973, 1.0
      %v986 = vadd.f32 %v976, 1.0
      %v987 = vadd.f32 %v979, 1.0
      %v988 = vrsqrt.pop %v980
      %v989 = vrsqrt.pop %v981
      %v990 = vrsqrt.pop %v982
      %v991 = vrsqrt.pop %v983
      %v992 = vrsqrt.pop %v984
      %v993 = vrsqrt.pop %v985
      %v994 = vrsqrt.pop %v986
      %v995 = vrsqrt.pop %v987
      %v996 = vmul.f32 %v988, %v647
      %v997 = vmul.f32 %v989, %v650
      %v998 = vmul.f32 %v990, %v655
      %v999 = vmul.f32 %v991, %v658
      %v1000 = vmul.f32 %v992, %v663
      %v1001 = vmul.f32 %v993, %v666
      %v1002 = vmul.f32 %v994, %v671
      %v1003 = vmul.f32 %v995, %v674
      %v1004 = vpack.c.bf16 %v997, %v996
      %v1005 = vpack.c.bf16 %v999, %v998
      %v1006 = vpack.c.bf16 %v1001, %v1000
      %v1007 = vpack.c.bf16 %v1003, %v1002
      %v1016 = vunpack.c.l.b16 %v940
      %v1017 = vunpack.c.l.b16 %v941
      %v1018 = vunpack.c.l.b16 %v942
      %v1019 = vunpack.c.l.b16 %v943
      %v1020 = vunpack.c.l.b16 %v944
      %v1021 = vunpack.c.l.b16 %v945
      %v1022 = vunpack.c.l.b16 %v946
      %v1023 = vunpack.c.l.b16 %v947
      %v1024 = vpack.c.b16 %v1017, %v1016
      %v1025 = vpack.c.b16 %v1019, %v1018
      %v1026 = vpack.c.b16 %v1021, %v1020
      %v1027 = vpack.c.b16 %v1023, %v1022
      %v1029 = vsel %vm757, %v1024, 0
      %v1032 = vsel %vm757, %v1025, 0
      %v1035 = vsel %vm757, %v1026, 0
      %v1038 = vsel %vm757, %v1027, 0
      %1040 = vmatprep.subr.bf16.mxu0 0
      %1041 = vmatpush1.bf16.msra.mxu0 %v1004
      %1042 = vmatprep.subr.bf16.mxu0 0
      %1043 = vmatpush1.bf16.msra.mxu0 %v1005
      %1044 = vmatprep.subr.bf16.mxu0 0
      %1045 = vmatpush1.bf16.msra.mxu0 %v1006
      %1046 = vmatprep.subr.bf16.mxu0 0
      %1047 = vmatpush1.bf16.msra.mxu0 %v1007
      %1048 = vmatprep.subr.bf16.mxu0 0
      %1049 = vmatpush1.bf16.msra.mxu0 0
      %1050 = vmatprep.subr.bf16.mxu0 0
      %1051 = vmatpush1.bf16.msra.mxu0 0
      %1052 = vmatprep.subr.bf16.mxu0 0
      %1053 = vmatpush1.bf16.msra.mxu0 0
      %1054 = vmatprep.subr.bf16.mxu0 0
      %1055 = vmatpush1.bf16.msra.mxu0 0
      %1056 = vmatprep.subr.bf16.mxu0 0
      %1057 = vmatpush1.bf16.msra.mxu0 0
      %1058 = vmatprep.subr.bf16.mxu0 0
      %1059 = vmatpush1.bf16.msra.mxu0 0
      %1060 = vmatprep.subr.bf16.mxu0 0
      %1061 = vmatpush1.bf16.msra.mxu0 0
      %1062 = vmatprep.subr.bf16.mxu0 0
      %1063 = vmatpush1.bf16.msra.mxu0 0
      %1064 = vmatprep.subr.bf16.mxu0 0
      %1065 = vmatpush1.bf16.msra.mxu0 0
      %1066 = vmatprep.subr.bf16.mxu0 0
      %1067 = vmatpush1.bf16.msra.mxu0 0
      %1068 = vmatprep.subr.bf16.mxu0 0
      %1069 = vmatpush1.bf16.msra.mxu0 0
      %1070 = vmatprep.subr.bf16.mxu0 0
      %1071 = vmatpush1.bf16.msra.mxu0 0
      %1072 = vmatprep.mubr.bf16.mxu0 0
      %1073 = vmatmul.mubr.bf16.gmra.mrb[0].mxu0 %v1029
      %v1074 = vpop.f32.mrb[0].mxu0
      %v1075 = vadd.f32 0.0, %v1074
      %v1076 = vpop.f32.mrb[0].mxu0
      %v1077 = vpop.f32.mrb[0].mxu0
      %v1078 = vadd.f32 0.0, %v1077
      %v1079 = vpop.f32.mrb[0].mxu0
      %1080 = vmatprep.mubr.bf16.mxu0 0
      %1081 = vmatmul.mubr.bf16.gmra.mrb[0].mxu0 %v1032
      %v1082 = vpop.f32.mrb[0].mxu0
      %v1083 = vadd.f32 0.0, %v1082
      %v1084 = vpop.f32.mrb[0].mxu0
      %v1085 = vpop.f32.mrb[0].mxu0
      %v1086 = vadd.f32 0.0, %v1085
      %v1087 = vpop.f32.mrb[0].mxu0
      %1088 = vmatprep.mubr.bf16.mxu0 0
      %1089 = vmatmul.mubr.bf16.gmra.mrb[0].mxu0 %v1035
      %v1090 = vpop.f32.mrb[0].mxu0
      %v1091 = vadd.f32 0.0, %v1090
      %v1092 = vpop.f32.mrb[0].mxu0
      %v1093 = vpop.f32.mrb[0].mxu0
      %v1094 = vadd.f32 0.0, %v1093
      %v1095 = vpop.f32.mrb[0].mxu0
      %1096 = vmatprep.mubr.bf16.mxu0 0
      %1097 = vmatmul.mubr.bf16.gmra.mrb[0].mxu0 %v1038
      %v1098 = vpop.f32.mrb[0].mxu0
      %v1099 = vadd.f32 0.0, %v1098
      %v1100 = vpop.f32.mrb[0].mxu0
      %v1101 = vpop.f32.mrb[0].mxu0
      %v1102 = vadd.f32 0.0, %v1101
      %v1103 = vpop.f32.mrb[0].mxu0
      %1104 = vdwg.mxu0
      %v1105 = vmul.f32 %v988, %v1075
      %v1106 = vmul.f32 %v989, %v1078
      %v1107 = vmul.f32 %v990, %v1083
      %v1108 = vmul.f32 %v991, %v1086
      %v1109 = vmul.f32 %v992, %v1091
      %v1110 = vmul.f32 %v993, %v1094
      %v1111 = vmul.f32 %v994, %v1099
      %v1112 = vmul.f32 %v995, %v1102
      %v1113 = vmul.f32 %v988, %v988
      %v1114 = vmul.f32 %v989, %v989
      %v1115 = vmul.f32 %v990, %v990
      %v1116 = vmul.f32 %v991, %v991
      %v1117 = vmul.f32 %v992, %v992
      %v1118 = vmul.f32 %v993, %v993
      %v1119 = vmul.f32 %v994, %v994
      %v1120 = vmul.f32 %v995, %v995
      %v1121 = vmul.f32 %v1113, %v647
      %v1122 = vmul.f32 %v1114, %v650
      %v1123 = vmul.f32 %v1115, %v655
      %v1124 = vmul.f32 %v1116, %v658
      %v1125 = vmul.f32 %v1117, %v663
      %v1126 = vmul.f32 %v1118, %v666
      %v1127 = vmul.f32 %v1119, %v671
      %v1128 = vmul.f32 %v1120, %v674
      %v1129 = vadd.f32 %v1105, %v1121
      %v1130 = vadd.f32 %v1106, %v1122
      %v1131 = vadd.f32 %v1107, %v1123
      %v1132 = vadd.f32 %v1108, %v1124
      %v1133 = vadd.f32 %v1109, %v1125
      %v1134 = vadd.f32 %v1110, %v1126
      %v1135 = vadd.f32 %v1111, %v1127
      %v1136 = vadd.f32 %v1112, %v1128
      %s1137 = scalar_lea.vmem %s393, 64
      %v1138 = vld [vmem:[%s1137] sm:$0xf]
      %v1139 = vld [vmem:[%s1137 + $0x4] sm:$0xf]
      %v1140 = vld [vmem:[%s1137 + $0x8] sm:$0xf]
      %v1141 = vld [vmem:[%s1137 + $0xc] sm:$0xf]
      %v1142 = vld [vmem:[%s1137 + $0x10] sm:$0xf]
      %v1143 = vld [vmem:[%s1137 + $0x14] sm:$0xf]
      %v1144 = vld [vmem:[%s1137 + $0x18] sm:$0xf]
      %v1145 = vld [vmem:[%s1137 + $0x1c] sm:$0xf]
      %v1146 = vunpack.c.l.bf16 %v1138
      %v1147 = vunpack.c.l.bf16 %v1139
      %v1148 = vunpack.c.l.bf16 %v1140
      %v1149 = vunpack.c.l.bf16 %v1141
      %v1150 = vunpack.c.l.bf16 %v1142
      %v1151 = vunpack.c.l.bf16 %v1143
      %v1152 = vunpack.c.l.bf16 %v1144
      %v1153 = vunpack.c.l.bf16 %v1145
      %v1154 = vsel %vm757, %v1146, 0.0
      %1155 = vadd.xlane.f32.xlu0 %v1154
      %v1156 = vpop.xlane.xlu0 %1155
      %v1157 = vsel %vm757, %v1147, 0.0
      %1158 = vadd.xlane.f32.xlu0 %v1157
      %v1159 = vpop.xlane.xlu0 %1158
      %v1160 = vsel %vm757, %v1148, 0.0
      %1161 = vadd.xlane.f32.xlu0 %v1160
      %v1162 = vpop.xlane.xlu0 %1161
      %v1163 = vsel %vm757, %v1149, 0.0
      %1164 = vadd.xlane.f32.xlu0 %v1163
      %v1165 = vpop.xlane.xlu0 %1164
      %v1166 = vsel %vm757, %v1150, 0.0
      %1167 = vadd.xlane.f32.xlu0 %v1166
      %v1168 = vpop.xlane.xlu0 %1167
      %v1169 = vsel %vm757, %v1151, 0.0
      %1170 = vadd.xlane.f32.xlu0 %v1169
      %v1171 = vpop.xlane.xlu0 %1170
      %v1172 = vsel %vm757, %v1152, 0.0
      %1173 = vadd.xlane.f32.xlu0 %v1172
      %v1174 = vpop.xlane.xlu0 %1173
      %v1175 = vsel %vm757, %v1153, 0.0
      %1176 = vadd.xlane.f32.xlu0 %v1175
      %v1177 = vpop.xlane.xlu0 %1176
      %v1178 = vadd.f32 %v1156, 1.0
      %v1179 = vadd.f32 %v1159, 1.0
      %v1180 = vadd.f32 %v1162, 1.0
      %v1181 = vadd.f32 %v1165, 1.0
      %v1182 = vadd.f32 %v1168, 1.0
      %v1183 = vadd.f32 %v1171, 1.0
      %v1184 = vadd.f32 %v1174, 1.0
      %v1185 = vadd.f32 %v1177, 1.0
      %v1186 = vrsqrt.pop %v1178
      %v1187 = vrsqrt.pop %v1179
      %v1188 = vrsqrt.pop %v1180
      %v1189 = vrsqrt.pop %v1181
      %v1190 = vrsqrt.pop %v1182
      %v1191 = vrsqrt.pop %v1183
      %v1192 = vrsqrt.pop %v1184
      %v1193 = vrsqrt.pop %v1185
      %v1194 = vmul.f32 %v1186, %v679
      %v1195 = vmul.f32 %v1187, %v682
      %v1196 = vmul.f32 %v1188, %v687
      %v1197 = vmul.f32 %v1189, %v690
      %v1198 = vmul.f32 %v1190, %v695
      %v1199 = vmul.f32 %v1191, %v698
      %v1200 = vmul.f32 %v1192, %v703
      %v1201 = vmul.f32 %v1193, %v706
      %v1202 = vpack.c.bf16 %v1195, %v1194
      %v1203 = vpack.c.bf16 %v1197, %v1196
      %v1204 = vpack.c.bf16 %v1199, %v1198
      %v1205 = vpack.c.bf16 %v1201, %v1200
      %v1214 = vunpack.c.l.b16 %v1138
      %v1215 = vunpack.c.l.b16 %v1139
      %v1216 = vunpack.c.l.b16 %v1140
      %v1217 = vunpack.c.l.b16 %v1141
      %v1218 = vunpack.c.l.b16 %v1142
      %v1219 = vunpack.c.l.b16 %v1143
      %v1220 = vunpack.c.l.b16 %v1144
      %v1221 = vunpack.c.l.b16 %v1145
      %v1222 = vpack.c.b16 %v1215, %v1214
      %v1223 = vpack.c.b16 %v1217, %v1216
      %v1224 = vpack.c.b16 %v1219, %v1218
      %v1225 = vpack.c.b16 %v1221, %v1220
      %v1227 = vsel %vm757, %v1222, 0
      %v1230 = vsel %vm757, %v1223, 0
      %v1233 = vsel %vm757, %v1224, 0
      %v1236 = vsel %vm757, %v1225, 0
      %1238 = vmatprep.subr.bf16.mxu0 0
      %1239 = vmatpush1.bf16.msra.mxu0 %v1202
      %1240 = vmatprep.subr.bf16.mxu0 0
      %1241 = vmatpush1.bf16.msra.mxu0 %v1203
      %1242 = vmatprep.subr.bf16.mxu0 0
      %1243 = vmatpush1.bf16.msra.mxu0 %v1204
      %1244 = vmatprep.subr.bf16.mxu0 0
      %1245 = vmatpush1.bf16.msra.mxu0 %v1205
      %1246 = vmatprep.subr.bf16.mxu0 0
      %1247 = vmatpush1.bf16.msra.mxu0 0
      %1248 = vmatprep.subr.bf16.mxu0 0
      %1249 = vmatpush1.bf16.msra.mxu0 0
      %1250 = vmatprep.subr.bf16.mxu0 0
      %1251 = vmatpush1.bf16.msra.mxu0 0
      %1252 = vmatprep.subr.bf16.mxu0 0
      %1253 = vmatpush1.bf16.msra.mxu0 0
      %1254 = vmatprep.subr.bf16.mxu0 0
      %1255 = vmatpush1.bf16.msra.mxu0 0
      %1256 = vmatprep.subr.bf16.mxu0 0
      %1257 = vmatpush1.bf16.msra.mxu0 0
      %1258 = vmatprep.subr.bf16.mxu0 0
      %1259 = vmatpush1.bf16.msra.mxu0 0
      %1260 = vmatprep.subr.bf16.mxu0 0
      %1261 = vmatpush1.bf16.msra.mxu0 0
      %1262 = vmatprep.subr.bf16.mxu0 0
      %1263 = vmatpush1.bf16.msra.mxu0 0
      %1264 = vmatprep.subr.bf16.mxu0 0
      %1265 = vmatpush1.bf16.msra.mxu0 0
      %1266 = vmatprep.subr.bf16.mxu0 0
      %1267 = vmatpush1.bf16.msra.mxu0 0
      %1268 = vmatprep.subr.bf16.mxu0 0
      %1269 = vmatpush1.bf16.msra.mxu0 0
      %1270 = vmatprep.mubr.bf16.mxu0 0
      %1271 = vmatmul.mubr.bf16.gmra.mrb[0].mxu0 %v1227
      %v1272 = vpop.f32.mrb[0].mxu0
      %v1273 = vadd.f32 0.0, %v1272
      %v1274 = vpop.f32.mrb[0].mxu0
      %v1275 = vpop.f32.mrb[0].mxu0
      %v1276 = vadd.f32 0.0, %v1275
      %v1277 = vpop.f32.mrb[0].mxu0
      %1278 = vmatprep.mubr.bf16.mxu0 0
      %1279 = vmatmul.mubr.bf16.gmra.mrb[0].mxu0 %v1230
      %v1280 = vpop.f32.mrb[0].mxu0
      %v1281 = vadd.f32 0.0, %v1280
      %v1282 = vpop.f32.mrb[0].mxu0
      %v1283 = vpop.f32.mrb[0].mxu0
      %v1284 = vadd.f32 0.0, %v1283
      %v1285 = vpop.f32.mrb[0].mxu0
      %1286 = vmatprep.mubr.bf16.mxu0 0
      %1287 = vmatmul.mubr.bf16.gmra.mrb[0].mxu0 %v1233
      %v1288 = vpop.f32.mrb[0].mxu0
      %v1289 = vadd.f32 0.0, %v1288
      %v1290 = vpop.f32.mrb[0].mxu0
      %v1291 = vpop.f32.mrb[0].mxu0
      %v1292 = vadd.f32 0.0, %v1291
      %v1293 = vpop.f32.mrb[0].mxu0
      %1294 = vmatprep.mubr.bf16.mxu0 0
      %1295 = vmatmul.mubr.bf16.gmra.mrb[0].mxu0 %v1236
      %v1296 = vpop.f32.mrb[0].mxu0
      %v1297 = vadd.f32 0.0, %v1296
      %v1298 = vpop.f32.mrb[0].mxu0
      %v1299 = vpop.f32.mrb[0].mxu0
      %v1300 = vadd.f32 0.0, %v1299
      %v1301 = vpop.f32.mrb[0].mxu0
      %1302 = vdwg.mxu0
      %v1303 = vmul.f32 %v1186, %v1273
      %v1304 = vmul.f32 %v1187, %v1276
      %v1305 = vmul.f32 %v1188, %v1281
      %v1306 = vmul.f32 %v1189, %v1284
      %v1307 = vmul.f32 %v1190, %v1289
      %v1308 = vmul.f32 %v1191, %v1292
      %v1309 = vmul.f32 %v1192, %v1297
      %v1310 = vmul.f32 %v1193, %v1300
      %v1311 = vmul.f32 %v1186, %v1186
      %v1312 = vmul.f32 %v1187, %v1187
      %v1313 = vmul.f32 %v1188, %v1188
      %v1314 = vmul.f32 %v1189, %v1189
      %v1315 = vmul.f32 %v1190, %v1190
      %v1316 = vmul.f32 %v1191, %v1191
      %v1317 = vmul.f32 %v1192, %v1192
      %v1318 = vmul.f32 %v1193, %v1193
      %v1319 = vmul.f32 %v1311, %v679
      %v1320 = vmul.f32 %v1312, %v682
      %v1321 = vmul.f32 %v1313, %v687
      %v1322 = vmul.f32 %v1314, %v690
      %v1323 = vmul.f32 %v1315, %v695
      %v1324 = vmul.f32 %v1316, %v698
      %v1325 = vmul.f32 %v1317, %v703
      %v1326 = vmul.f32 %v1318, %v706
      %v1327 = vadd.f32 %v1303, %v1319
      %v1328 = vadd.f32 %v1304, %v1320
      %v1329 = vadd.f32 %v1305, %v1321
      %v1330 = vadd.f32 %v1306, %v1322
      %v1331 = vadd.f32 %v1307, %v1323
      %v1332 = vadd.f32 %v1308, %v1324
      %v1333 = vadd.f32 %v1309, %v1325
      %v1334 = vadd.f32 %v1310, %v1326
      %s1335 = scalar_lea.vmem %s393, 96
      %v1336 = vld [vmem:[%s1335] sm:$0xf]
      %v1337 = vld [vmem:[%s1335 + $0x4] sm:$0xf]
      %v1338 = vld [vmem:[%s1335 + $0x8] sm:$0xf]
      %v1339 = vld [vmem:[%s1335 + $0xc] sm:$0xf]
      %v1340 = vld [vmem:[%s1335 + $0x10] sm:$0xf]
      %v1341 = vld [vmem:[%s1335 + $0x14] sm:$0xf]
      %v1342 = vld [vmem:[%s1335 + $0x18] sm:$0xf]
      %v1343 = vld [vmem:[%s1335 + $0x1c] sm:$0xf]
      %v1344 = vunpack.c.l.bf16 %v1336
      %v1345 = vunpack.c.l.bf16 %v1337
      %v1346 = vunpack.c.l.bf16 %v1338
      %v1347 = vunpack.c.l.bf16 %v1339
      %v1348 = vunpack.c.l.bf16 %v1340
      %v1349 = vunpack.c.l.bf16 %v1341
      %v1350 = vunpack.c.l.bf16 %v1342
      %v1351 = vunpack.c.l.bf16 %v1343
      %v1352 = vsel %vm757, %v1344, 0.0
      %1353 = vadd.xlane.f32.xlu0 %v1352
      %v1354 = vpop.xlane.xlu0 %1353
      %v1355 = vsel %vm757, %v1345, 0.0
      %1356 = vadd.xlane.f32.xlu0 %v1355
      %v1357 = vpop.xlane.xlu0 %1356
      %v1358 = vsel %vm757, %v1346, 0.0
      %1359 = vadd.xlane.f32.xlu0 %v1358
      %v1360 = vpop.xlane.xlu0 %1359
      %v1361 = vsel %vm757, %v1347, 0.0
      %1362 = vadd.xlane.f32.xlu0 %v1361
      %v1363 = vpop.xlane.xlu0 %1362
      %v1364 = vsel %vm757, %v1348, 0.0
      %1365 = vadd.xlane.f32.xlu0 %v1364
      %v1366 = vpop.xlane.xlu0 %1365
      %v1367 = vsel %vm757, %v1349, 0.0
      %1368 = vadd.xlane.f32.xlu0 %v1367
      %v1369 = vpop.xlane.xlu0 %1368
      %v1370 = vsel %vm757, %v1350, 0.0
      %1371 = vadd.xlane.f32.xlu0 %v1370
      %v1372 = vpop.xlane.xlu0 %1371
      %v1373 = vsel %vm757, %v1351, 0.0
      %1374 = vadd.xlane.f32.xlu0 %v1373
      %v1375 = vpop.xlane.xlu0 %1374
      %v1376 = vadd.f32 %v1354, 1.0
      %v1377 = vadd.f32 %v1357, 1.0
      %v1378 = vadd.f32 %v1360, 1.0
      %v1379 = vadd.f32 %v1363, 1.0
      %v1380 = vadd.f32 %v1366, 1.0
      %v1381 = vadd.f32 %v1369, 1.0
      %v1382 = vadd.f32 %v1372, 1.0
      %v1383 = vadd.f32 %v1375, 1.0
      %v1384 = vrsqrt.pop %v1376
      %v1385 = vrsqrt.pop %v1377
      %v1386 = vrsqrt.pop %v1378
      %v1387 = vrsqrt.pop %v1379
      %v1388 = vrsqrt.pop %v1380
      %v1389 = vrsqrt.pop %v1381
      %v1390 = vrsqrt.pop %v1382
      %v1391 = vrsqrt.pop %v1383
      %v1392 = vmul.f32 %v1384, %v711
      %v1393 = vmul.f32 %v1385, %v714
      %v1394 = vmul.f32 %v1386, %v719
      %v1395 = vmul.f32 %v1387, %v722
      %v1396 = vmul.f32 %v1388, %v727
      %v1397 = vmul.f32 %v1389, %v730
      %v1398 = vmul.f32 %v1390, %v735
      %v1399 = vmul.f32 %v1391, %v738
      %v1400 = vpack.c.bf16 %v1393, %v1392
      %v1401 = vpack.c.bf16 %v1395, %v1394
      %v1402 = vpack.c.bf16 %v1397, %v1396
      %v1403 = vpack.c.bf16 %v1399, %v1398
      %v1412 = vunpack.c.l.b16 %v1336
      %v1413 = vunpack.c.l.b16 %v1337
      %v1414 = vunpack.c.l.b16 %v1338
      %v1415 = vunpack.c.l.b16 %v1339
      %v1416 = vunpack.c.l.b16 %v1340
      %v1417 = vunpack.c.l.b16 %v1341
      %v1418 = vunpack.c.l.b16 %v1342
      %v1419 = vunpack.c.l.b16 %v1343
      %v1420 = vpack.c.b16 %v1413, %v1412
      %v1421 = vpack.c.b16 %v1415, %v1414
      %v1422 = vpack.c.b16 %v1417, %v1416
      %v1423 = vpack.c.b16 %v1419, %v1418
      %v1425 = vsel %vm757, %v1420, 0
      %v1428 = vsel %vm757, %v1421, 0
      %v1431 = vsel %vm757, %v1422, 0
      %v1434 = vsel %vm757, %v1423, 0
      %1436 = vmatprep.subr.bf16.mxu0 0
      %1437 = vmatpush1.bf16.msra.mxu0 %v1400
      %1438 = vmatprep.subr.bf16.mxu0 0
      %1439 = vmatpush1.bf16.msra.mxu0 %v1401
      %1440 = vmatprep.subr.bf16.mxu0 0
      %1441 = vmatpush1.bf16.msra.mxu0 %v1402
      %1442 = vmatprep.subr.bf16.mxu0 0
      %1443 = vmatpush1.bf16.msra.mxu0 %v1403
      %1444 = vmatprep.subr.bf16.mxu0 0
      %1445 = vmatpush1.bf16.msra.mxu0 0
      %1446 = vmatprep.subr.bf16.mxu0 0
      %1447 = vmatpush1.bf16.msra.mxu0 0
      %1448 = vmatprep.subr.bf16.mxu0 0
      %1449 = vmatpush1.bf16.msra.mxu0 0
      %1450 = vmatprep.subr.bf16.mxu0 0
      %1451 = vmatpush1.bf16.msra.mxu0 0
      %1452 = vmatprep.subr.bf16.mxu0 0
      %1453 = vmatpush1.bf16.msra.mxu0 0
      %1454 = vmatprep.subr.bf16.mxu0 0
      %1455 = vmatpush1.bf16.msra.mxu0 0
      %1456 = vmatprep.subr.bf16.mxu0 0
      %1457 = vmatpush1.bf16.msra.mxu0 0
      %1458 = vmatprep.subr.bf16.mxu0 0
      %1459 = vmatpush1.bf16.msra.mxu0 0
      %1460 = vmatprep.subr.bf16.mxu0 0
      %1461 = vmatpush1.bf16.msra.mxu0 0
      %1462 = vmatprep.subr.bf16.mxu0 0
      %1463 = vmatpush1.bf16.msra.mxu0 0
      %1464 = vmatprep.subr.bf16.mxu0 0
      %1465 = vmatpush1.bf16.msra.mxu0 0
      %1466 = vmatprep.subr.bf16.mxu0 0
      %1467 = vmatpush1.bf16.msra.mxu0 0
      %1468 = vmatprep.mubr.bf16.mxu0 0
      %1469 = vmatmul.mubr.bf16.gmra.mrb[0].mxu0 %v1425
      %v1470 = vpop.f32.mrb[0].mxu0
      %v1471 = vadd.f32 0.0, %v1470
      %v1472 = vpop.f32.mrb[0].mxu0
      %v1473 = vpop.f32.mrb[0].mxu0
      %v1474 = vadd.f32 0.0, %v1473
      %v1475 = vpop.f32.mrb[0].mxu0
      %1476 = vmatprep.mubr.bf16.mxu0 0
      %1477 = vmatmul.mubr.bf16.gmra.mrb[0].mxu0 %v1428
      %v1478 = vpop.f32.mrb[0].mxu0
      %v1479 = vadd.f32 0.0, %v1478
      %v1480 = vpop.f32.mrb[0].mxu0
      %v1481 = vpop.f32.mrb[0].mxu0
      %v1482 = vadd.f32 0.0, %v1481
      %v1483 = vpop.f32.mrb[0].mxu0
      %1484 = vmatprep.mubr.bf16.mxu0 0
      %1485 = vmatmul.mubr.bf16.gmra.mrb[0].mxu0 %v1431
      %v1486 = vpop.f32.mrb[0].mxu0
      %v1487 = vadd.f32 0.0, %v1486
      %v1488 = vpop.f32.mrb[0].mxu0
      %v1489 = vpop.f32.mrb[0].mxu0
      %v1490 = vadd.f32 0.0, %v1489
      %v1491 = vpop.f32.mrb[0].mxu0
      %1492 = vmatprep.mubr.bf16.mxu0 0
      %1493 = vmatmul.mubr.bf16.gmra.mrb[0].mxu0 %v1434
      %v1494 = vpop.f32.mrb[0].mxu0
      %v1495 = vadd.f32 0.0, %v1494
      %v1496 = vpop.f32.mrb[0].mxu0
      %v1497 = vpop.f32.mrb[0].mxu0
      %v1498 = vadd.f32 0.0, %v1497
      %v1499 = vpop.f32.mrb[0].mxu0
      %1500 = vdwg.mxu0
      %v1501 = vmul.f32 %v1384, %v1471
      %v1502 = vmul.f32 %v1385, %v1474
      %v1503 = vmul.f32 %v1386, %v1479
      %v1504 = vmul.f32 %v1387, %v1482
      %v1505 = vmul.f32 %v1388, %v1487
      %v1506 = vmul.f32 %v1389, %v1490
      %v1507 = vmul.f32 %v1390, %v1495
      %v1508 = vmul.f32 %v1391, %v1498
      %v1509 = vmul.f32 %v1384, %v1384
      %v1510 = vmul.f32 %v1385, %v1385
      %v1511 = vmul.f32 %v1386, %v1386
      %v1512 = vmul.f32 %v1387, %v1387
      %v1513 = vmul.f32 %v1388, %v1388
      %v1514 = vmul.f32 %v1389, %v1389
      %v1515 = vmul.f32 %v1390, %v1390
      %v1516 = vmul.f32 %v1391, %v1391
      %v1517 = vmul.f32 %v1509, %v711
      %v1518 = vmul.f32 %v1510, %v714
      %v1519 = vmul.f32 %v1511, %v719
      %v1520 = vmul.f32 %v1512, %v722
      %v1521 = vmul.f32 %v1513, %v727
      %v1522 = vmul.f32 %v1514, %v730
      %v1523 = vmul.f32 %v1515, %v735
      %v1524 = vmul.f32 %v1516, %v738
      %v1525 = vadd.f32 %v1501, %v1517
      %v1526 = vadd.f32 %v1502, %v1518
      %v1527 = vadd.f32 %v1503, %v1519
      %v1528 = vadd.f32 %v1504, %v1520
      %v1529 = vadd.f32 %v1505, %v1521
      %v1530 = vadd.f32 %v1506, %v1522
      %v1531 = vadd.f32 %v1507, %v1523
      %v1532 = vadd.f32 %v1508, %v1524
      %v1533 = vld [vmem:[%s3] sm:$0x1]
      %v1535 = vlaneseq
      %v1536 = vshrl.u32 %v1535, 7
      %v1537 = vsub.s32 0, %v1536
      %v1538 = vrot.slane %v1533, %v1537
      %v1540 = vadd.f32 %v931, %v1538
      %v1541 = vadd.f32 %v932, %v1538
      %v1542 = vadd.f32 %v933, %v1538
      %v1543 = vadd.f32 %v934, %v1538
      %v1544 = vadd.f32 %v935, %v1538
      %v1545 = vadd.f32 %v936, %v1538
      %v1546 = vadd.f32 %v937, %v1538
      %v1547 = vadd.f32 %v938, %v1538
      %v1548 = vadd.f32 %v1129, %v1538
      %v1549 = vadd.f32 %v1130, %v1538
      %v1550 = vadd.f32 %v1131, %v1538
      %v1551 = vadd.f32 %v1132, %v1538
      %v1552 = vadd.f32 %v1133, %v1538
      %v1553 = vadd.f32 %v1134, %v1538
      %v1554 = vadd.f32 %v1135, %v1538
      %v1555 = vadd.f32 %v1136, %v1538
      %v1556 = vadd.f32 %v1327, %v1538
      %v1557 = vadd.f32 %v1328, %v1538
      %v1558 = vadd.f32 %v1329, %v1538
      %v1559 = vadd.f32 %v1330, %v1538
      %v1560 = vadd.f32 %v1331, %v1538
      %v1561 = vadd.f32 %v1332, %v1538
      %v1562 = vadd.f32 %v1333, %v1538
      %v1563 = vadd.f32 %v1334, %v1538
      %v1564 = vadd.f32 %v1525, %v1538
      %v1565 = vadd.f32 %v1526, %v1538
      %v1566 = vadd.f32 %v1527, %v1538
      %v1567 = vadd.f32 %v1528, %v1538
      %v1568 = vadd.f32 %v1529, %v1538
      %v1569 = vadd.f32 %v1530, %v1538
      %v1570 = vadd.f32 %v1531, %v1538
      %v1571 = vadd.f32 %v1532, %v1538
      %v1572 = vmax.f32 %v1540, 0.0
      %v1573 = vmax.f32 %v1541, 0.0
      %v1574 = vmax.f32 %v1542, 0.0
      %v1575 = vmax.f32 %v1543, 0.0
      %v1576 = vmax.f32 %v1544, 0.0
      %v1577 = vmax.f32 %v1545, 0.0
      %v1578 = vmax.f32 %v1546, 0.0
      %v1579 = vmax.f32 %v1547, 0.0
      %v1580 = vmax.f32 %v1548, 0.0
      %v1581 = vmax.f32 %v1549, 0.0
      %v1582 = vmax.f32 %v1550, 0.0
      %v1583 = vmax.f32 %v1551, 0.0
      %v1584 = vmax.f32 %v1552, 0.0
      %v1585 = vmax.f32 %v1553, 0.0
      %v1586 = vmax.f32 %v1554, 0.0
      %v1587 = vmax.f32 %v1555, 0.0
      %v1588 = vmax.f32 %v1556, 0.0
      %v1589 = vmax.f32 %v1557, 0.0
      %v1590 = vmax.f32 %v1558, 0.0
      %v1591 = vmax.f32 %v1559, 0.0
      %v1592 = vmax.f32 %v1560, 0.0
      %v1593 = vmax.f32 %v1561, 0.0
      %v1594 = vmax.f32 %v1562, 0.0
      %v1595 = vmax.f32 %v1563, 0.0
      %v1596 = vmax.f32 %v1564, 0.0
      %v1597 = vmax.f32 %v1565, 0.0
      %v1598 = vmax.f32 %v1566, 0.0
      %v1599 = vmax.f32 %v1567, 0.0
      %v1600 = vmax.f32 %v1568, 0.0
      %v1601 = vmax.f32 %v1569, 0.0
      %v1602 = vmax.f32 %v1570, 0.0
      %v1603 = vmax.f32 %v1571, 0.0
      %v1604 = vpack.c.bf16 %v1573, %v1572
      %v1605 = vpack.c.bf16 %v1575, %v1574
      %v1606 = vpack.c.bf16 %v1577, %v1576
      %v1607 = vpack.c.bf16 %v1579, %v1578
      %v1608 = vpack.c.bf16 %v1581, %v1580
      %v1609 = vpack.c.bf16 %v1583, %v1582
      %v1610 = vpack.c.bf16 %v1585, %v1584
      %v1611 = vpack.c.bf16 %v1587, %v1586
      %v1612 = vpack.c.bf16 %v1589, %v1588
      %v1613 = vpack.c.bf16 %v1591, %v1590
      %v1614 = vpack.c.bf16 %v1593, %v1592
      %v1615 = vpack.c.bf16 %v1595, %v1594
      %v1616 = vpack.c.bf16 %v1597, %v1596
      %v1617 = vpack.c.bf16 %v1599, %v1598
      %v1618 = vpack.c.bf16 %v1601, %v1600
      %v1619 = vpack.c.bf16 %v1603, %v1602
      %v1620 = vld [vmem:[%s4] sm:$0xf]
      %v1621 = vld [vmem:[%s4 + $0x4] sm:$0xf]
      %v1622 = vld [vmem:[%s4 + $0x8] sm:$0xf]
      %v1623 = vld [vmem:[%s4 + $0xc] sm:$0xf]
      %v1624 = vld [vmem:[%s4 + $0x10] sm:$0xf]
      %v1625 = vld [vmem:[%s4 + $0x14] sm:$0xf]
      %v1626 = vld [vmem:[%s4 + $0x18] sm:$0xf]
      %v1627 = vld [vmem:[%s4 + $0x1c] sm:$0xf]
      %v1628 = vld [vmem:[%s5] sm:$0x1]
      %v1630 = vlaneseq
      %v1631 = vshrl.u32 %v1630, 7
      %v1632 = vsub.s32 0, %v1631
      %v1633 = vrot.slane %v1628, %v1632
      %v1643 = vunpack.c.l.b16 %v1620
      %v1644 = vunpack.c.l.b16 %v1621
      %v1645 = vunpack.c.l.b16 %v1622
      %v1646 = vunpack.c.l.b16 %v1623
      %v1647 = vunpack.c.l.b16 %v1624
      %v1648 = vunpack.c.l.b16 %v1625
      %v1649 = vunpack.c.l.b16 %v1626
      %v1650 = vunpack.c.l.b16 %v1627
      %v1651 = vpack.c.b16 %v1644, %v1643
      %v1652 = vpack.c.b16 %v1646, %v1645
      %v1653 = vpack.c.b16 %v1648, %v1647
      %v1654 = vpack.c.b16 %v1650, %v1649
      %v1660 = vsel %vm757, %v1604, 0
      %v1663 = vsel %vm757, %v1605, 0
      %v1666 = vsel %vm757, %v1606, 0
      %v1669 = vsel %vm757, %v1607, 0
      %v1672 = vsel %vm757, %v1608, 0
      %v1675 = vsel %vm757, %v1609, 0
      %v1678 = vsel %vm757, %v1610, 0
      %v1681 = vsel %vm757, %v1611, 0
      %v1684 = vsel %vm757, %v1612, 0
      %v1687 = vsel %vm757, %v1613, 0
      %v1690 = vsel %vm757, %v1614, 0
      %v1693 = vsel %vm757, %v1615, 0
      %v1696 = vsel %vm757, %v1616, 0
      %v1699 = vsel %vm757, %v1617, 0
      %v1702 = vsel %vm757, %v1618, 0
      %v1705 = vsel %vm757, %v1619, 0
      %1707 = vmatprep.subr.bf16.mxu0 0
      %1708 = vmatpush1.bf16.msra.mxu0 %v1651
      %1709 = vmatprep.subr.bf16.mxu0 0
      %1710 = vmatpush1.bf16.msra.mxu0 %v1652
      %1711 = vmatprep.subr.bf16.mxu0 0
      %1712 = vmatpush1.bf16.msra.mxu0 %v1653
      %1713 = vmatprep.subr.bf16.mxu0 0
      %1714 = vmatpush1.bf16.msra.mxu0 %v1654
      %1715 = vmatprep.subr.bf16.mxu0 0
      %1716 = vmatpush1.bf16.msra.mxu0 0
      %1717 = vmatprep.subr.bf16.mxu0 0
      %1718 = vmatpush1.bf16.msra.mxu0 0
      %1719 = vmatprep.subr.bf16.mxu0 0
      %1720 = vmatpush1.bf16.msra.mxu0 0
      %1721 = vmatprep.subr.bf16.mxu0 0
      %1722 = vmatpush1.bf16.msra.mxu0 0
      %1723 = vmatprep.subr.bf16.mxu0 0
      %1724 = vmatpush1.bf16.msra.mxu0 0
      %1725 = vmatprep.subr.bf16.mxu0 0
      %1726 = vmatpush1.bf16.msra.mxu0 0
      %1727 = vmatprep.subr.bf16.mxu0 0
      %1728 = vmatpush1.bf16.msra.mxu0 0
      %1729 = vmatprep.subr.bf16.mxu0 0
      %1730 = vmatpush1.bf16.msra.mxu0 0
      %1731 = vmatprep.subr.bf16.mxu0 0
      %1732 = vmatpush1.bf16.msra.mxu0 0
      %1733 = vmatprep.subr.bf16.mxu0 0
      %1734 = vmatpush1.bf16.msra.mxu0 0
      %1735 = vmatprep.subr.bf16.mxu0 0
      %1736 = vmatpush1.bf16.msra.mxu0 0
      %1737 = vmatprep.subr.bf16.mxu0 0
      %1738 = vmatpush1.bf16.msra.mxu0 0
      %1739 = vmatprep.mubr.bf16.mxu0 0
      %1740 = vmatmul.mubr.bf16.gmra.mrb[0].mxu0 %v1660
      %v1741 = vpop.f32.mrb[0].mxu0
      %v1742 = vadd.f32 %v1633, %v1741
      %v1743 = vpop.f32.mrb[0].mxu0
      %v1744 = vpop.f32.mrb[0].mxu0
      %v1745 = vadd.f32 %v1633, %v1744
      %v1746 = vpop.f32.mrb[0].mxu0
      %1747 = vmatprep.mubr.bf16.mxu0 0
      %1748 = vmatmul.mubr.bf16.gmra.mrb[0].mxu0 %v1663
      %v1749 = vpop.f32.mrb[0].mxu0
      %v1750 = vadd.f32 %v1633, %v1749
      %v1751 = vpop.f32.mrb[0].mxu0
      %v1752 = vpop.f32.mrb[0].mxu0
      %v1753 = vadd.f32 %v1633, %v1752
      %v1754 = vpop.f32.mrb[0].mxu0
      %1755 = vmatprep.mubr.bf16.mxu0 0
      %1756 = vmatmul.mubr.bf16.gmra.mrb[0].mxu0 %v1666
      %v1757 = vpop.f32.mrb[0].mxu0
      %v1758 = vadd.f32 %v1633, %v1757
      %v1759 = vpop.f32.mrb[0].mxu0
      %v1760 = vpop.f32.mrb[0].mxu0
      %v1761 = vadd.f32 %v1633, %v1760
      %v1762 = vpop.f32.mrb[0].mxu0
      %1763 = vmatprep.mubr.bf16.mxu0 0
      %1764 = vmatmul.mubr.bf16.gmra.mrb[0].mxu0 %v1669
      %v1765 = vpop.f32.mrb[0].mxu0
      %v1766 = vadd.f32 %v1633, %v1765
      %v1767 = vpop.f32.mrb[0].mxu0
      %v1768 = vpop.f32.mrb[0].mxu0
      %v1769 = vadd.f32 %v1633, %v1768
      %v1770 = vpop.f32.mrb[0].mxu0
      %1771 = vmatprep.mubr.bf16.mxu0 0
      %1772 = vmatmul.mubr.bf16.gmra.mrb[0].mxu0 %v1672
      %v1773 = vpop.f32.mrb[0].mxu0
      %v1774 = vadd.f32 %v1633, %v1773
      %v1775 = vpop.f32.mrb[0].mxu0
      %v1776 = vpop.f32.mrb[0].mxu0
      %v1777 = vadd.f32 %v1633, %v1776
      %v1778 = vpop.f32.mrb[0].mxu0
      %1779 = vmatprep.mubr.bf16.mxu0 0
      %1780 = vmatmul.mubr.bf16.gmra.mrb[0].mxu0 %v1675
      %v1781 = vpop.f32.mrb[0].mxu0
      %v1782 = vadd.f32 %v1633, %v1781
      %v1783 = vpop.f32.mrb[0].mxu0
      %v1784 = vpop.f32.mrb[0].mxu0
      %v1785 = vadd.f32 %v1633, %v1784
      %v1786 = vpop.f32.mrb[0].mxu0
      %1787 = vmatprep.mubr.bf16.mxu0 0
      %1788 = vmatmul.mubr.bf16.gmra.mrb[0].mxu0 %v1678
      %v1789 = vpop.f32.mrb[0].mxu0
      %v1790 = vadd.f32 %v1633, %v1789
      %v1791 = vpop.f32.mrb[0].mxu0
      %v1792 = vpop.f32.mrb[0].mxu0
      %v1793 = vadd.f32 %v1633, %v1792
      %v1794 = vpop.f32.mrb[0].mxu0
      %1795 = vmatprep.mubr.bf16.mxu0 0
      %1796 = vmatmul.mubr.bf16.gmra.mrb[0].mxu0 %v1681
      %v1797 = vpop.f32.mrb[0].mxu0
      %v1798 = vadd.f32 %v1633, %v1797
      %v1799 = vpop.f32.mrb[0].mxu0
      %v1800 = vpop.f32.mrb[0].mxu0
      %v1801 = vadd.f32 %v1633, %v1800
      %v1802 = vpop.f32.mrb[0].mxu0
      %1803 = vmatprep.mubr.bf16.mxu0 0
      %1804 = vmatmul.mubr.bf16.gmra.mrb[0].mxu0 %v1684
      %v1805 = vpop.f32.mrb[0].mxu0
      %v1806 = vadd.f32 %v1633, %v1805
      %v1807 = vpop.f32.mrb[0].mxu0
      %v1808 = vpop.f32.mrb[0].mxu0
      %v1809 = vadd.f32 %v1633, %v1808
      %v1810 = vpop.f32.mrb[0].mxu0
      %1811 = vmatprep.mubr.bf16.mxu0 0
      %1812 = vmatmul.mubr.bf16.gmra.mrb[0].mxu0 %v1687
      %v1813 = vpop.f32.mrb[0].mxu0
      %v1814 = vadd.f32 %v1633, %v1813
      %v1815 = vpop.f32.mrb[0].mxu0
      %v1816 = vpop.f32.mrb[0].mxu0
      %v1817 = vadd.f32 %v1633, %v1816
      %v1818 = vpop.f32.mrb[0].mxu0
      %1819 = vmatprep.mubr.bf16.mxu0 0
      %1820 = vmatmul.mubr.bf16.gmra.mrb[0].mxu0 %v1690
      %v1821 = vpop.f32.mrb[0].mxu0
      %v1822 = vadd.f32 %v1633, %v1821
      %v1823 = vpop.f32.mrb[0].mxu0
      %v1824 = vpop.f32.mrb[0].mxu0
      %v1825 = vadd.f32 %v1633, %v1824
      %v1826 = vpop.f32.mrb[0].mxu0
      %1827 = vmatprep.mubr.bf16.mxu0 0
      %1828 = vmatmul.mubr.bf16.gmra.mrb[0].mxu0 %v1693
      %v1829 = vpop.f32.mrb[0].mxu0
      %v1830 = vadd.f32 %v1633, %v1829
      %v1831 = vpop.f32.mrb[0].mxu0
      %v1832 = vpop.f32.mrb[0].mxu0
      %v1833 = vadd.f32 %v1633, %v1832
      %v1834 = vpop.f32.mrb[0].mxu0
      %1835 = vmatprep.mubr.bf16.mxu0 0
      %1836 = vmatmul.mubr.bf16.gmra.mrb[0].mxu0 %v1696
      %v1837 = vpop.f32.mrb[0].mxu0
      %v1838 = vadd.f32 %v1633, %v1837
      %v1839 = vpop.f32.mrb[0].mxu0
      %v1840 = vpop.f32.mrb[0].mxu0
      %v1841 = vadd.f32 %v1633, %v1840
      %v1842 = vpop.f32.mrb[0].mxu0
      %1843 = vmatprep.mubr.bf16.mxu0 0
      %1844 = vmatmul.mubr.bf16.gmra.mrb[0].mxu0 %v1699
      %v1845 = vpop.f32.mrb[0].mxu0
      %v1846 = vadd.f32 %v1633, %v1845
      %v1847 = vpop.f32.mrb[0].mxu0
      %v1848 = vpop.f32.mrb[0].mxu0
      %v1849 = vadd.f32 %v1633, %v1848
      %v1850 = vpop.f32.mrb[0].mxu0
      %1851 = vmatprep.mubr.bf16.mxu0 0
      %1852 = vmatmul.mubr.bf16.gmra.mrb[0].mxu0 %v1702
      %v1853 = vpop.f32.mrb[0].mxu0
      %v1854 = vadd.f32 %v1633, %v1853
      %v1855 = vpop.f32.mrb[0].mxu0
      %v1856 = vpop.f32.mrb[0].mxu0
      %v1857 = vadd.f32 %v1633, %v1856
      %v1858 = vpop.f32.mrb[0].mxu0
      %1859 = vmatprep.mubr.bf16.mxu0 0
      %1860 = vmatmul.mubr.bf16.gmra.mrb[0].mxu0 %v1705
      %v1861 = vpop.f32.mrb[0].mxu0
      %v1862 = vadd.f32 %v1633, %v1861
      %v1863 = vpop.f32.mrb[0].mxu0
      %v1864 = vpop.f32.mrb[0].mxu0
      %v1865 = vadd.f32 %v1633, %v1864
      %v1866 = vpop.f32.mrb[0].mxu0
      %1867 = vdwg.mxu0
      %v1868 = vpack.c.bf16 %v1745, %v1742
      %v1869 = vpack.c.bf16 %v1753, %v1750
      %v1870 = vpack.c.bf16 %v1761, %v1758
      %v1871 = vpack.c.bf16 %v1769, %v1766
      %v1872 = vpack.c.bf16 %v1777, %v1774
      %v1873 = vpack.c.bf16 %v1785, %v1782
      %v1874 = vpack.c.bf16 %v1793, %v1790
      %v1875 = vpack.c.bf16 %v1801, %v1798
      %v1876 = vpack.c.bf16 %v1809, %v1806
      %v1877 = vpack.c.bf16 %v1817, %v1814
      %v1878 = vpack.c.bf16 %v1825, %v1822
      %v1879 = vpack.c.bf16 %v1833, %v1830
      %v1880 = vpack.c.bf16 %v1841, %v1838
      %v1881 = vpack.c.bf16 %v1849, %v1846
      %v1882 = vpack.c.bf16 %v1857, %v1854
      %v1883 = vpack.c.bf16 %v1865, %v1862
      %v1884 = vld [vmem:[%s6] sm:$0xf]
      %v1885 = vld [vmem:[%s6 + $0x4] sm:$0xf]
      %v1886 = vld [vmem:[%s6 + $0x8] sm:$0xf]
      %v1887 = vld [vmem:[%s6 + $0xc] sm:$0xf]
      %v1888 = vld [vmem:[%s6 + $0x10] sm:$0xf]
      %v1889 = vld [vmem:[%s6 + $0x14] sm:$0xf]
      %v1890 = vld [vmem:[%s6 + $0x18] sm:$0xf]
      %v1891 = vld [vmem:[%s6 + $0x1c] sm:$0xf]
      %v1892 = vld [vmem:[%s7] sm:$0x1]
      %v1894 = vlaneseq
      %v1895 = vshrl.u32 %v1894, 7
      %v1896 = vsub.s32 0, %v1895
      %v1897 = vrot.slane %v1892, %v1896
      %v1907 = vunpack.c.l.b16 %v1884
      %v1908 = vunpack.c.l.b16 %v1885
      %v1909 = vunpack.c.l.b16 %v1886
      %v1910 = vunpack.c.l.b16 %v1887
      %v1911 = vunpack.c.l.b16 %v1888
      %v1912 = vunpack.c.l.b16 %v1889
      %v1913 = vunpack.c.l.b16 %v1890
      %v1914 = vunpack.c.l.b16 %v1891
      %v1915 = vpack.c.b16 %v1908, %v1907
      %v1916 = vpack.c.b16 %v1910, %v1909
      %v1917 = vpack.c.b16 %v1912, %v1911
      %v1918 = vpack.c.b16 %v1914, %v1913
      %v1924 = vsel %vm757, %v1868, 0
      %v1927 = vsel %vm757, %v1869, 0
      %v1930 = vsel %vm757, %v1870, 0
      %v1933 = vsel %vm757, %v1871, 0
      %v1936 = vsel %vm757, %v1872, 0
      %v1939 = vsel %vm757, %v1873, 0
      %v1942 = vsel %vm757, %v1874, 0
      %v1945 = vsel %vm757, %v1875, 0
      %v1948 = vsel %vm757, %v1876, 0
      %v1951 = vsel %vm757, %v1877, 0
      %v1954 = vsel %vm757, %v1878, 0
      %v1957 = vsel %vm757, %v1879, 0
      %v1960 = vsel %vm757, %v1880, 0
      %v1963 = vsel %vm757, %v1881, 0
      %v1966 = vsel %vm757, %v1882, 0
      %v1969 = vsel %vm757, %v1883, 0
      %1971 = vmatprep.subr.bf16.mxu0 0
      %1972 = vmatpush1.bf16.msra.mxu0 %v1915
      %1973 = vmatprep.subr.bf16.mxu0 0
      %1974 = vmatpush1.bf16.msra.mxu0 %v1916
      %1975 = vmatprep.subr.bf16.mxu0 0
      %1976 = vmatpush1.bf16.msra.mxu0 %v1917
      %1977 = vmatprep.subr.bf16.mxu0 0
      %1978 = vmatpush1.bf16.msra.mxu0 %v1918
      %1979 = vmatprep.subr.bf16.mxu0 0
      %1980 = vmatpush1.bf16.msra.mxu0 0
      %1981 = vmatprep.subr.bf16.mxu0 0
      %1982 = vmatpush1.bf16.msra.mxu0 0
      %1983 = vmatprep.subr.bf16.mxu0 0
      %1984 = vmatpush1.bf16.msra.mxu0 0
      %1985 = vmatprep.subr.bf16.mxu0 0
      %1986 = vmatpush1.bf16.msra.mxu0 0
      %1987 = vmatprep.subr.bf16.mxu0 0
      %1988 = vmatpush1.bf16.msra.mxu0 0
      %1989 = vmatprep.subr.bf16.mxu0 0
      %1990 = vmatpush1.bf16.msra.mxu0 0
      %1991 = vmatprep.subr.bf16.mxu0 0
      %1992 = vmatpush1.bf16.msra.mxu0 0
      %1993 = vmatprep.subr.bf16.mxu0 0
      %1994 = vmatpush1.bf16.msra.mxu0 0
      %1995 = vmatprep.subr.bf16.mxu0 0
      %1996 = vmatpush1.bf16.msra.mxu0 0
      %1997 = vmatprep.subr.bf16.mxu0 0
      %1998 = vmatpush1.bf16.msra.mxu0 0
      %1999 = vmatprep.subr.bf16.mxu0 0
      %2000 = vmatpush1.bf16.msra.mxu0 0
      %2001 = vmatprep.subr.bf16.mxu0 0
      %2002 = vmatpush1.bf16.msra.mxu0 0
      %2003 = vmatprep.mubr.bf16.mxu0 0
      %2004 = vmatmul.mubr.bf16.gmra.mrb[0].mxu0 %v1924
      %v2005 = vpop.f32.mrb[0].mxu0
      %v2006 = vadd.f32 %v1897, %v2005
      %v2007 = vpop.f32.mrb[0].mxu0
      %v2008 = vpop.f32.mrb[0].mxu0
      %v2009 = vadd.f32 %v1897, %v2008
      %v2010 = vpop.f32.mrb[0].mxu0
      %2011 = vmatprep.mubr.bf16.mxu0 0
      %2012 = vmatmul.mubr.bf16.gmra.mrb[0].mxu0 %v1927
      %v2013 = vpop.f32.mrb[0].mxu0
      %v2014 = vadd.f32 %v1897, %v2013
      %v2015 = vpop.f32.mrb[0].mxu0
      %v2016 = vpop.f32.mrb[0].mxu0
      %v2017 = vadd.f32 %v1897, %v2016
      %v2018 = vpop.f32.mrb[0].mxu0
      %2019 = vmatprep.mubr.bf16.mxu0 0
      %2020 = vmatmul.mubr.bf16.gmra.mrb[0].mxu0 %v1930
      %v2021 = vpop.f32.mrb[0].mxu0
      %v2022 = vadd.f32 %v1897, %v2021
      %v2023 = vpop.f32.mrb[0].mxu0
      %v2024 = vpop.f32.mrb[0].mxu0
      %v2025 = vadd.f32 %v1897, %v2024
      %v2026 = vpop.f32.mrb[0].mxu0
      %2027 = vmatprep.mubr.bf16.mxu0 0
      %2028 = vmatmul.mubr.bf16.gmra.mrb[0].mxu0 %v1933
      %v2029 = vpop.f32.mrb[0].mxu0
      %v2030 = vadd.f32 %v1897, %v2029
      %v2031 = vpop.f32.mrb[0].mxu0
      %v2032 = vpop.f32.mrb[0].mxu0
      %v2033 = vadd.f32 %v1897, %v2032
      %v2034 = vpop.f32.mrb[0].mxu0
      %2035 = vmatprep.mubr.bf16.mxu0 0
      %2036 = vmatmul.mubr.bf16.gmra.mrb[0].mxu0 %v1936
      %v2037 = vpop.f32.mrb[0].mxu0
      %v2038 = vadd.f32 %v1897, %v2037
      %v2039 = vpop.f32.mrb[0].mxu0
      %v2040 = vpop.f32.mrb[0].mxu0
      %v2041 = vadd.f32 %v1897, %v2040
      %v2042 = vpop.f32.mrb[0].mxu0
      %2043 = vmatprep.mubr.bf16.mxu0 0
      %2044 = vmatmul.mubr.bf16.gmra.mrb[0].mxu0 %v1939
      %v2045 = vpop.f32.mrb[0].mxu0
      %v2046 = vadd.f32 %v1897, %v2045
      %v2047 = vpop.f32.mrb[0].mxu0
      %v2048 = vpop.f32.mrb[0].mxu0
      %v2049 = vadd.f32 %v1897, %v2048
      %v2050 = vpop.f32.mrb[0].mxu0
      %2051 = vmatprep.mubr.bf16.mxu0 0
      %2052 = vmatmul.mubr.bf16.gmra.mrb[0].mxu0 %v1942
      %v2053 = vpop.f32.mrb[0].mxu0
      %v2054 = vadd.f32 %v1897, %v2053
      %v2055 = vpop.f32.mrb[0].mxu0
      %v2056 = vpop.f32.mrb[0].mxu0
      %v2057 = vadd.f32 %v1897, %v2056
      %v2058 = vpop.f32.mrb[0].mxu0
      %2059 = vmatprep.mubr.bf16.mxu0 0
      %2060 = vmatmul.mubr.bf16.gmra.mrb[0].mxu0 %v1945
      %v2061 = vpop.f32.mrb[0].mxu0
      %v2062 = vadd.f32 %v1897, %v2061
      %v2063 = vpop.f32.mrb[0].mxu0
      %v2064 = vpop.f32.mrb[0].mxu0
      %v2065 = vadd.f32 %v1897, %v2064
      %v2066 = vpop.f32.mrb[0].mxu0
      %2067 = vmatprep.mubr.bf16.mxu0 0
      %2068 = vmatmul.mubr.bf16.gmra.mrb[0].mxu0 %v1948
      %v2069 = vpop.f32.mrb[0].mxu0
      %v2070 = vadd.f32 %v1897, %v2069
      %v2071 = vpop.f32.mrb[0].mxu0
      %v2072 = vpop.f32.mrb[0].mxu0
      %v2073 = vadd.f32 %v1897, %v2072
      %v2074 = vpop.f32.mrb[0].mxu0
      %2075 = vmatprep.mubr.bf16.mxu0 0
      %2076 = vmatmul.mubr.bf16.gmra.mrb[0].mxu0 %v1951
      %v2077 = vpop.f32.mrb[0].mxu0
      %v2078 = vadd.f32 %v1897, %v2077
      %v2079 = vpop.f32.mrb[0].mxu0
      %v2080 = vpop.f32.mrb[0].mxu0
      %v2081 = vadd.f32 %v1897, %v2080
      %v2082 = vpop.f32.mrb[0].mxu0
      %2083 = vmatprep.mubr.bf16.mxu0 0
      %2084 = vmatmul.mubr.bf16.gmra.mrb[0].mxu0 %v1954
      %v2085 = vpop.f32.mrb[0].mxu0
      %v2086 = vadd.f32 %v1897, %v2085
      %v2087 = vpop.f32.mrb[0].mxu0
      %v2088 = vpop.f32.mrb[0].mxu0
      %v2089 = vadd.f32 %v1897, %v2088
      %v2090 = vpop.f32.mrb[0].mxu0
      %2091 = vmatprep.mubr.bf16.mxu0 0
      %2092 = vmatmul.mubr.bf16.gmra.mrb[0].mxu0 %v1957
      %v2093 = vpop.f32.mrb[0].mxu0
      %v2094 = vadd.f32 %v1897, %v2093
      %v2095 = vpop.f32.mrb[0].mxu0
      %v2096 = vpop.f32.mrb[0].mxu0
      %v2097 = vadd.f32 %v1897, %v2096
      %v2098 = vpop.f32.mrb[0].mxu0
      %2099 = vmatprep.mubr.bf16.mxu0 0
      %2100 = vmatmul.mubr.bf16.gmra.mrb[0].mxu0 %v1960
      %v2101 = vpop.f32.mrb[0].mxu0
      %v2102 = vadd.f32 %v1897, %v2101
      %v2103 = vpop.f32.mrb[0].mxu0
      %v2104 = vpop.f32.mrb[0].mxu0
      %v2105 = vadd.f32 %v1897, %v2104
      %v2106 = vpop.f32.mrb[0].mxu0
      %2107 = vmatprep.mubr.bf16.mxu0 0
      %2108 = vmatmul.mubr.bf16.gmra.mrb[0].mxu0 %v1963
      %v2109 = vpop.f32.mrb[0].mxu0
      %v2110 = vadd.f32 %v1897, %v2109
      %v2111 = vpop.f32.mrb[0].mxu0
      %v2112 = vpop.f32.mrb[0].mxu0
      %v2113 = vadd.f32 %v1897, %v2112
      %v2114 = vpop.f32.mrb[0].mxu0
      %2115 = vmatprep.mubr.bf16.mxu0 0
      %2116 = vmatmul.mubr.bf16.gmra.mrb[0].mxu0 %v1966
      %v2117 = vpop.f32.mrb[0].mxu0
      %v2118 = vadd.f32 %v1897, %v2117
      %v2119 = vpop.f32.mrb[0].mxu0
      %v2120 = vpop.f32.mrb[0].mxu0
      %v2121 = vadd.f32 %v1897, %v2120
      %v2122 = vpop.f32.mrb[0].mxu0
      %2123 = vmatprep.mubr.bf16.mxu0 0
      %2124 = vmatmul.mubr.bf16.gmra.mrb[0].mxu0 %v1969
      %v2125 = vpop.f32.mrb[0].mxu0
      %v2126 = vadd.f32 %v1897, %v2125
      %v2127 = vpop.f32.mrb[0].mxu0
      %v2128 = vpop.f32.mrb[0].mxu0
      %v2129 = vadd.f32 %v1897, %v2128
      %v2130 = vpop.f32.mrb[0].mxu0
      %2131 = vdwg.mxu0
      %2132 = vxpose.xlu0.b32.start [1/16] %v2006, 128
      %2133 = vxpose.xlu0.b32.cont [2/16] %v2009, 128
      %2134 = vxpose.xlu0.b32.cont [3/16] %v2014, 128
      %2135 = vxpose.xlu0.b32.cont [4/16] %v2017, 128
      %2136 = vxpose.xlu0.b32.cont [5/16] %v2022, 128
      %2137 = vxpose.xlu0.b32.cont [6/16] %v2025, 128
      %2138 = vxpose.xlu0.b32.cont [7/16] %v2030, 128
      %2139 = vxpose.xlu0.b32.cont [8/16] %v2033, 128
      %2140 = vxpose.xlu0.b32.cont [9/16] %v2038, 128
      %2141 = vxpose.xlu0.b32.cont [10/16] %v2041, 128
      %2142 = vxpose.xlu0.b32.cont [11/16] %v2046, 128
      %2143 = vxpose.xlu0.b32.cont [12/16] %v2049, 128
      %2144 = vxpose.xlu0.b32.cont [13/16] %v2054, 128
      %2145 = vxpose.xlu0.b32.cont [14/16] %v2057, 128
      %2146 = vxpose.xlu0.b32.cont [15/16] %v2062, 128
      %2147 = vxpose.xlu0.b32.end [16/16] %v2065, 128
      %v2148 = vpop.trf.xlu0
      %v2149 = vpop.trf.xlu0
      %v2150 = vpop.trf.xlu0
      %v2151 = vpop.trf.xlu0
      %v2152 = vpop.trf.xlu0
      %v2153 = vpop.trf.xlu0
      %v2154 = vpop.trf.xlu0
      %v2155 = vpop.trf.xlu0
      %v2156 = vpop.trf.xlu0
      %v2157 = vpop.trf.xlu0
      %v2158 = vpop.trf.xlu0
      %v2159 = vpop.trf.xlu0
      %v2160 = vpop.trf.xlu0
      %v2161 = vpop.trf.xlu0
      %v2162 = vpop.trf.xlu0
      %v2163 = vpop.trf.xlu0
      %2164 = vxpose.xlu0.b32.start [1/16] %v2070, 128
      %2165 = vxpose.xlu0.b32.cont [2/16] %v2073, 128
      %2166 = vxpose.xlu0.b32.cont [3/16] %v2078, 128
      %2167 = vxpose.xlu0.b32.cont [4/16] %v2081, 128
      %2168 = vxpose.xlu0.b32.cont [5/16] %v2086, 128
      %2169 = vxpose.xlu0.b32.cont [6/16] %v2089, 128
      %2170 = vxpose.xlu0.b32.cont [7/16] %v2094, 128
      %2171 = vxpose.xlu0.b32.cont [8/16] %v2097, 128
      %2172 = vxpose.xlu0.b32.cont [9/16] %v2102, 128
      %2173 = vxpose.xlu0.b32.cont [10/16] %v2105, 128
      %2174 = vxpose.xlu0.b32.cont [11/16] %v2110, 128
      %2175 = vxpose.xlu0.b32.cont [12/16] %v2113, 128
      %2176 = vxpose.xlu0.b32.cont [13/16] %v2118, 128
      %2177 = vxpose.xlu0.b32.cont [14/16] %v2121, 128
      %2178 = vxpose.xlu0.b32.cont [15/16] %v2126, 128
      %2179 = vxpose.xlu0.b32.end [16/16] %v2129, 128
      %v2180 = vpop.trf.xlu0
      %v2181 = vpop.trf.xlu0
      %v2182 = vpop.trf.xlu0
      %v2183 = vpop.trf.xlu0
      %v2184 = vpop.trf.xlu0
      %v2185 = vpop.trf.xlu0
      %v2186 = vpop.trf.xlu0
      %v2187 = vpop.trf.xlu0
      %v2188 = vpop.trf.xlu0
      %v2189 = vpop.trf.xlu0
      %v2190 = vpop.trf.xlu0
      %v2191 = vpop.trf.xlu0
      %v2192 = vpop.trf.xlu0
      %v2193 = vpop.trf.xlu0
      %v2194 = vpop.trf.xlu0
      %v2195 = vpop.trf.xlu0
      %vm2196 = vcmask 1043456
      %v2197 = vsel %vm2196, %v2148, -inf
      %v2198 = vrot.slane %v2197, 4
      %v2199 = vmax.f32 %v2197, %v2198
      %v2200 = vrot.slane %v2199, 2
      %v2201 = vmax.f32 %v2199, %v2200
      %v2202 = vrot.slane %v2201, 1
      %v2203 = vmax.f32 %v2201, %v2202
      %v2204 = vsel %vm2196, %v2180, -inf
      %v2205 = vrot.slane %v2204, 4
      %v2206 = vmax.f32 %v2204, %v2205
      %v2207 = vrot.slane %v2206, 2
      %v2208 = vmax.f32 %v2206, %v2207
      %v2209 = vrot.slane %v2208, 1
      %v2210 = vmax.f32 %v2208, %v2209
      %v2211 = vsub.f32 %v2148, %v2203
      %v2212 = vsub.f32 %v2180, %v2210
      %v2213 = vmul.f32 %v2211, 1.442695
      %v2214 = vpow.pop %v2213
      %v2215 = vmul.f32 %v2212, 1.442695
      %v2216 = vpow.pop %v2215
      %v2217 = vsel %vm2196, %v2214, 0.0
      %v2218 = vrot.slane %v2217, 4
      %v2219 = vadd.f32 %v2217, %v2218
      %v2220 = vrot.slane %v2219, 2
      %v2221 = vadd.f32 %v2219, %v2220
      %v2222 = vrot.slane %v2221, 1
      %v2223 = vadd.f32 %v2221, %v2222
      %v2224 = vsel %vm2196, %v2216, 0.0
      %v2225 = vrot.slane %v2224, 4
      %v2226 = vadd.f32 %v2224, %v2225
      %v2227 = vrot.slane %v2226, 2
      %v2228 = vadd.f32 %v2226, %v2227
      %v2229 = vrot.slane %v2228, 1
      %v2230 = vadd.f32 %v2228, %v2229
      %v2231 = vrcp.pop %v2223
      %v2232 = vmul.f32 %v2214, %v2231
      %v2233 = vrcp.pop %v2230
      %v2234 = vmul.f32 %v2216, %v2233
      %v2235 = vpack.c.bf16 %v2232, %v2232
      %v2236 = vpack.c.bf16 %v2234, %v2234
      %v2239 = vcombine.low %v2232, %v2234
      %2241 = vst [vmem:[%s399] sm:$0xff] %v2239
      %v2243 = vsel %vm757, %v2235, 0
      %2245 = vmatprep.subr.bf16.mxu0 0
      %2246 = vmatpush1.bf16.msra.mxu0 %v1604
      %2247 = vmatprep.subr.bf16.mxu0 0
      %2248 = vmatpush1.bf16.msra.mxu0 %v1605
      %2249 = vmatprep.subr.bf16.mxu0 0
      %2250 = vmatpush1.bf16.msra.mxu0 %v1606
      %2251 = vmatprep.subr.bf16.mxu0 0
      %2252 = vmatpush1.bf16.msra.mxu0 %v1607
      %2253 = vmatprep.subr.bf16.mxu0 0
      %2254 = vmatpush1.bf16.msra.mxu0 0
      %2255 = vmatprep.subr.bf16.mxu0 0
      %2256 = vmatpush1.bf16.msra.mxu0 0
      %2257 = vmatprep.subr.bf16.mxu0 0
      %2258 = vmatpush1.bf16.msra.mxu0 0
      %2259 = vmatprep.subr.bf16.mxu0 0
      %2260 = vmatpush1.bf16.msra.mxu0 0
      %2261 = vmatprep.subr.bf16.mxu0 0
      %2262 = vmatpush1.bf16.msra.mxu0 0
      %2263 = vmatprep.subr.bf16.mxu0 0
      %2264 = vmatpush1.bf16.msra.mxu0 0
      %2265 = vmatprep.subr.bf16.mxu0 0
      %2266 = vmatpush1.bf16.msra.mxu0 0
      %2267 = vmatprep.subr.bf16.mxu0 0
      %2268 = vmatpush1.bf16.msra.mxu0 0
      %2269 = vmatprep.subr.bf16.mxu0 0
      %2270 = vmatpush1.bf16.msra.mxu0 0
      %2271 = vmatprep.subr.bf16.mxu0 0
      %2272 = vmatpush1.bf16.msra.mxu0 0
      %2273 = vmatprep.subr.bf16.mxu0 0
      %2274 = vmatpush1.bf16.msra.mxu0 0
      %2275 = vmatprep.subr.bf16.mxu0 0
      %2276 = vmatpush1.bf16.msra.mxu0 0
      %2277 = vmatprep.mubr.bf16.mxu0 0
      %2278 = vmatmul.mubr.bf16.gmra.mrb[0].mxu0 %v2243
      %v2279 = vpop.f32.mrb[0].mxu0
      %v2280 = vadd.f32 0.0, %v2279
      %v2281 = vpop.f32.mrb[0].mxu0
      %v2282 = vpop.f32.mrb[0].mxu0
      %v2283 = vpop.f32.mrb[0].mxu0
      %2284 = vdwg.mxu0
      %vm2285 = vcmp.gt.f32.partialorder %v2280, 0.0
      %v2286 = vmin.f32 %v2280, 0.0
      %v2287 = vmul.f32 %v2286, 1.442695
      %v2288 = vpow.pop %v2287
      %v2289 = vsub.f32 %v2288, 1.0
      %v2290 = vmul.f32 %v2289, 1.6732632
      %v2291 = vsel %vm2285, %v2280, %v2290
      %v2292 = vmul.f32 %v2291, 1.050701
      %v2293 = vld [vmem:[%s393] sm:$0xf]
      %v2294 = vld [vmem:[%s393 + $0x4] sm:$0xf]
      %v2295 = vld [vmem:[%s393 + $0x8] sm:$0xf]
      %v2296 = vld [vmem:[%s393 + $0xc] sm:$0xf]
      %v2297 = vld [vmem:[%s393 + $0x10] sm:$0xf]
      %v2298 = vld [vmem:[%s393 + $0x14] sm:$0xf]
      %v2299 = vld [vmem:[%s393 + $0x18] sm:$0xf]
      %v2300 = vld [vmem:[%s393 + $0x1c] sm:$0xf]
      %v2309 = vunpack.c.l.b16 %v2293
      %v2310 = vunpack.c.l.b16 %v2294
      %v2311 = vunpack.c.l.b16 %v2295
      %v2312 = vunpack.c.l.b16 %v2296
      %v2313 = vunpack.c.l.b16 %v2297
      %v2314 = vunpack.c.l.b16 %v2298
      %v2315 = vunpack.c.l.b16 %v2299
      %v2316 = vunpack.c.l.b16 %v2300
      %v2317 = vpack.c.b16 %v2310, %v2309
      %v2318 = vpack.c.b16 %v2312, %v2311
      %v2319 = vpack.c.b16 %v2314, %v2313
      %v2320 = vpack.c.b16 %v2316, %v2315
      %2325 = vmatprep.subr.bf16.mxu0 0
      %2326 = vmatpush1.bf16.msra.mxu0 %v2317
      %2327 = vmatprep.subr.bf16.mxu0 0
      %2328 = vmatpush1.bf16.msra.mxu0 %v2318
      %2329 = vmatprep.subr.bf16.mxu0 0
      %2330 = vmatpush1.bf16.msra.mxu0 %v2319
      %2331 = vmatprep.subr.bf16.mxu0 0
      %2332 = vmatpush1.bf16.msra.mxu0 %v2320
      %2333 = vmatprep.subr.bf16.mxu0 0
      %2334 = vmatpush1.bf16.msra.mxu0 0
      %2335 = vmatprep.subr.bf16.mxu0 0
      %2336 = vmatpush1.bf16.msra.mxu0 0
      %2337 = vmatprep.subr.bf16.mxu0 0
      %2338 = vmatpush1.bf16.msra.mxu0 0
      %2339 = vmatprep.subr.bf16.mxu0 0
      %2340 = vmatpush1.bf16.msra.mxu0 0
      %2341 = vmatprep.subr.bf16.mxu0 0
      %2342 = vmatpush1.bf16.msra.mxu0 0
      %2343 = vmatprep.subr.bf16.mxu0 0
      %2344 = vmatpush1.bf16.msra.mxu0 0
      %2345 = vmatprep.subr.bf16.mxu0 0
      %2346 = vmatpush1.bf16.msra.mxu0 0
      %2347 = vmatprep.subr.bf16.mxu0 0
      %2348 = vmatpush1.bf16.msra.mxu0 0
      %2349 = vmatprep.subr.bf16.mxu0 0
      %2350 = vmatpush1.bf16.msra.mxu0 0
      %2351 = vmatprep.subr.bf16.mxu0 0
      %2352 = vmatpush1.bf16.msra.mxu0 0
      %2353 = vmatprep.subr.bf16.mxu0 0
      %2354 = vmatpush1.bf16.msra.mxu0 0
      %2355 = vmatprep.subr.bf16.mxu0 0
      %2356 = vmatpush1.bf16.msra.mxu0 0
      %2357 = vmatprep.mubr.bf16.mxu0 0
      %2358 = vmatmul.mubr.bf16.gmra.mrb[0].mxu0 %v2243
      %v2359 = vpop.f32.mrb[0].mxu0
      %v2360 = vadd.f32 0.0, %v2359
      %v2361 = vpop.f32.mrb[0].mxu0
      %v2362 = vpop.f32.mrb[0].mxu0
      %v2363 = vpop.f32.mrb[0].mxu0
      %2364 = vdwg.mxu0
      %v2365 = vmul.f32 %v2232, %v2360
      %vm2366 = vcmask 519168
      %v2367 = vsel %vm2366, %v2365, 0.0
      %2368 = vadd.xlane.f32.xlu0 %v2367
      %v2369 = vpop.xlane.xlu0 %2368
      %v2370 = vrot.slane %v2369, 4
      %v2371 = vadd.f32 %v2369, %v2370
      %v2372 = vrot.slane %v2371, 2
      %v2373 = vadd.f32 %v2371, %v2372
      %v2374 = vrot.slane %v2373, 1
      %v2375 = vadd.f32 %v2373, %v2374
      %s2376 = vtos %v2375
      %v2377 = vstv %s2376
      %v2378 = vpack.c.bf16 %v763, %v760
      %v2379 = vpack.c.bf16 %v769, %v766
      %v2380 = vpack.c.bf16 %v775, %v772
      %v2381 = vpack.c.bf16 %v781, %v778
      %2382 = vmatprep.subr.bf16.mxu0 0
      %2383 = vmatpush1.bf16.msra.mxu0 %v2378
      %2384 = vmatprep.subr.bf16.mxu0 0
      %2385 = vmatpush1.bf16.msra.mxu0 %v2379
      %2386 = vmatprep.subr.bf16.mxu0 0
      %2387 = vmatpush1.bf16.msra.mxu0 %v2380
      %2388 = vmatprep.subr.bf16.mxu0 0
      %2389 = vmatpush1.bf16.msra.mxu0 %v2381
      %2390 = vmatprep.subr.bf16.mxu0 0
      %2391 = vmatpush1.bf16.msra.mxu0 0
      %2392 = vmatprep.subr.bf16.mxu0 0
      %2393 = vmatpush1.bf16.msra.mxu0 0
      %2394 = vmatprep.subr.bf16.mxu0 0
      %2395 = vmatpush1.bf16.msra.mxu0 0
      %2396 = vmatprep.subr.bf16.mxu0 0
      %2397 = vmatpush1.bf16.msra.mxu0 0
      %2398 = vmatprep.subr.bf16.mxu0 0
      %2399 = vmatpush1.bf16.msra.mxu0 0
      %2400 = vmatprep.subr.bf16.mxu0 0
      %2401 = vmatpush1.bf16.msra.mxu0 0
      %2402 = vmatprep.subr.bf16.mxu0 0
      %2403 = vmatpush1.bf16.msra.mxu0 0
      %2404 = vmatprep.subr.bf16.mxu0 0
      %2405 = vmatpush1.bf16.msra.mxu0 0
      %2406 = vmatprep.subr.bf16.mxu0 0
      %2407 = vmatpush1.bf16.msra.mxu0 0
      %2408 = vmatprep.subr.bf16.mxu0 0
      %2409 = vmatpush1.bf16.msra.mxu0 0
      %2410 = vmatprep.subr.bf16.mxu0 0
      %2411 = vmatpush1.bf16.msra.mxu0 0
      %2412 = vmatprep.subr.bf16.mxu0 0
      %2413 = vmatpush1.bf16.msra.mxu0 0
      %2414 = vmatprep.mubr.bf16.mxu0 0
      %2415 = vmatmul.mubr.bf16.gmra.mrb[0].mxu0 %v2243
      %v2416 = vpop.f32.mrb[0].mxu0
      %v2417 = vadd.f32 0.0, %v2416
      %v2418 = vpop.f32.mrb[0].mxu0
      %v2419 = vpop.f32.mrb[0].mxu0
      %v2420 = vpop.f32.mrb[0].mxu0
      %2421 = vdwg.mxu0
      %v2422 = vmul.f32 %v2417, %v2417
      %vm2423 = vcmask 3072
      %v2424 = vsel %vm2423, %v2422, 0.0
      %2425 = vadd.xlane.f32.xlu0 %v2424
      %v2426 = vpop.xlane.xlu0 %2425
      %v2427 = vrot.slane %v2426, 4
      %v2428 = vadd.f32 %v2426, %v2427
      %v2429 = vrot.slane %v2428, 2
      %v2430 = vadd.f32 %v2428, %v2429
      %v2431 = vrot.slane %v2430, 1
      %v2432 = vadd.f32 %v2430, %v2431
      %s2433 = vtos %v2432
      %v2434 = vstv %s2433
      %vm2435 = vcmask 7168
      %v2436 = vsel %vm2435, %v760, 0.0
      %v2437 = vsel %vm2435, %v763, 0.0
      %v2438 = vadd.f32 %v2436, %v2437
      %v2439 = vsel %vm2435, %v766, 0.0
      %v2440 = vadd.f32 %v2438, %v2439
      %v2441 = vsel %vm2435, %v769, 0.0
      %v2442 = vadd.f32 %v2440, %v2441
      %v2443 = vsel %vm2435, %v772, 0.0
      %v2444 = vadd.f32 %v2442, %v2443
      %v2445 = vsel %vm2435, %v775, 0.0
      %v2446 = vadd.f32 %v2444, %v2445
      %v2447 = vsel %vm2435, %v778, 0.0
      %v2448 = vadd.f32 %v2446, %v2447
      %v2449 = vsel %vm2435, %v781, 0.0
      %v2450 = vadd.f32 %v2448, %v2449
      %2451 = vadd.xlane.f32.xlu0 %v2450
      %v2452 = vpop.xlane.xlu0 %2451
      %v2453 = vrot.slane %v2452, 4
      %v2454 = vadd.f32 %v2452, %v2453
      %v2455 = vrot.slane %v2454, 2
      %v2456 = vadd.f32 %v2454, %v2455
      %v2457 = vrot.slane %v2456, 1
      %v2458 = vadd.f32 %v2456, %v2457
      %s2459 = vtos %v2458
      %v2460 = vstv %s2459
      %v2461 = vmax.f32 %v2460, 1e-12
      %v2462 = vrcp.pop %v2461
      %v2463 = vmul.f32 %v2434, %v2462
      %v2464 = vsub.f32 %v2377, %v2463
      %v2465 = vsub.f32 0.0, %v2464
      %v2466 = vmul.f32 %v2465, %v2462
      %v2467 = vsel %vm2366, %v2232, 0.0
      %2468 = vadd.xlane.f32.xlu0 %v2467
      %v2469 = vpop.xlane.xlu0 %2468
      %v2470 = vmul.f32 %v2469, %v2469
      %v2471 = vsel %vm2423, %v2470, 0.0
      %2472 = vadd.xlane.f32.xlu0 %v2471
      %v2473 = vpop.xlane.xlu0 %2472
      %v2474 = vrot.slane %v2473, 4
      %v2475 = vadd.f32 %v2473, %v2474
      %v2476 = vrot.slane %v2475, 2
      %v2477 = vadd.f32 %v2475, %v2476
      %v2478 = vrot.slane %v2477, 1
      %v2479 = vadd.f32 %v2477, %v2478
      %s2480 = vtos %v2479
      %v2481 = vstv %s2480
      %v2482 = vrsqrt.pop %v2481
      %v2483 = vmul.f32 %v2481, %v2482
      %vm2484 = vcmp.eq.f32.partialorder %v2481, inf
      %v2485 = vsel %vm2484, %v2481, %v2483
      %vm2486 = vcmp.eq.f32.partialorder %v2481, 0.0
      %v2487 = vand.u32 %v2481, 2147483648
      %v2488 = vsel %vm2486, %v2487, %v2485
      %v2489 = vmul.f32 %v2488, 0.03125
      %v2490 = vsub.f32 %v2489, 1.0
      %v2491 = vadd.f32 %v2466, %v2490
      %2493 = vrot.lane.b32.xlu0 %v2235, 64
      %v2494 = vpop.permute.xlu0 %2493
      %v2496 = vsel %vm757, %v2494, 0
      %2498 = vmatprep.subr.bf16.mxu0 0
      %2499 = vmatpush1.bf16.msra.mxu0 %v1608
      %2500 = vmatprep.subr.bf16.mxu0 0
      %2501 = vmatpush1.bf16.msra.mxu0 %v1609
      %2502 = vmatprep.subr.bf16.mxu0 0
      %2503 = vmatpush1.bf16.msra.mxu0 %v1610
      %2504 = vmatprep.subr.bf16.mxu0 0
      %2505 = vmatpush1.bf16.msra.mxu0 %v1611
      %2506 = vmatprep.subr.bf16.mxu0 0
      %2507 = vmatpush1.bf16.msra.mxu0 0
      %2508 = vmatprep.subr.bf16.mxu0 0
      %2509 = vmatpush1.bf16.msra.mxu0 0
      %2510 = vmatprep.subr.bf16.mxu0 0
      %2511 = vmatpush1.bf16.msra.mxu0 0
      %2512 = vmatprep.subr.bf16.mxu0 0
      %2513 = vmatpush1.bf16.msra.mxu0 0
      %2514 = vmatprep.subr.bf16.mxu0 0
      %2515 = vmatpush1.bf16.msra.mxu0 0
      %2516 = vmatprep.subr.bf16.mxu0 0
      %2517 = vmatpush1.bf16.msra.mxu0 0
      %2518 = vmatprep.subr.bf16.mxu0 0
      %2519 = vmatpush1.bf16.msra.mxu0 0
      %2520 = vmatprep.subr.bf16.mxu0 0
      %2521 = vmatpush1.bf16.msra.mxu0 0
      %2522 = vmatprep.subr.bf16.mxu0 0
      %2523 = vmatpush1.bf16.msra.mxu0 0
      %2524 = vmatprep.subr.bf16.mxu0 0
      %2525 = vmatpush1.bf16.msra.mxu0 0
      %2526 = vmatprep.subr.bf16.mxu0 0
      %2527 = vmatpush1.bf16.msra.mxu0 0
      %2528 = vmatprep.subr.bf16.mxu0 0
      %2529 = vmatpush1.bf16.msra.mxu0 0
      %2530 = vmatprep.mubr.bf16.mxu0 0
      %2531 = vmatmul.mubr.bf16.gmra.mrb[0].mxu0 %v2496
      %v2532 = vpop.f32.mrb[0].mxu0
      %v2533 = vadd.f32 0.0, %v2532
      %v2534 = vpop.f32.mrb[0].mxu0
      %v2535 = vpop.f32.mrb[0].mxu0
      %v2536 = vpop.f32.mrb[0].mxu0
      %2537 = vdwg.mxu0
      %vm2538 = vcmp.gt.f32.partialorder %v2533, 0.0
      %v2539 = vmin.f32 %v2533, 0.0
      %v2540 = vmul.f32 %v2539, 1.442695
      %v2541 = vpow.pop %v2540
      %v2542 = vsub.f32 %v2541, 1.0
      %v2543 = vmul.f32 %v2542, 1.6732632
      %v2544 = vsel %vm2538, %v2533, %v2543
      %v2545 = vmul.f32 %v2544, 1.050701
      %v2546 = vld [vmem:[%s939] sm:$0xf]
      %v2547 = vld [vmem:[%s939 + $0x4] sm:$0xf]
      %v2548 = vld [vmem:[%s939 + $0x8] sm:$0xf]
      %v2549 = vld [vmem:[%s939 + $0xc] sm:$0xf]
      %v2550 = vld [vmem:[%s939 + $0x10] sm:$0xf]
      %v2551 = vld [vmem:[%s939 + $0x14] sm:$0xf]
      %v2552 = vld [vmem:[%s939 + $0x18] sm:$0xf]
      %v2553 = vld [vmem:[%s939 + $0x1c] sm:$0xf]
      %v2562 = vunpack.c.l.b16 %v2546
      %v2563 = vunpack.c.l.b16 %v2547
      %v2564 = vunpack.c.l.b16 %v2548
      %v2565 = vunpack.c.l.b16 %v2549
      %v2566 = vunpack.c.l.b16 %v2550
      %v2567 = vunpack.c.l.b16 %v2551
      %v2568 = vunpack.c.l.b16 %v2552
      %v2569 = vunpack.c.l.b16 %v2553
      %v2570 = vpack.c.b16 %v2563, %v2562
      %v2571 = vpack.c.b16 %v2565, %v2564
      %v2572 = vpack.c.b16 %v2567, %v2566
      %v2573 = vpack.c.b16 %v2569, %v2568
      %2578 = vmatprep.subr.bf16.mxu0 0
      %2579 = vmatpush1.bf16.msra.mxu0 %v2570
      %2580 = vmatprep.subr.bf16.mxu0 0
      %2581 = vmatpush1.bf16.msra.mxu0 %v2571
      %2582 = vmatprep.subr.bf16.mxu0 0
      %2583 = vmatpush1.bf16.msra.mxu0 %v2572
      %2584 = vmatprep.subr.bf16.mxu0 0
      %2585 = vmatpush1.bf16.msra.mxu0 %v2573
      %2586 = vmatprep.subr.bf16.mxu0 0
      %2587 = vmatpush1.bf16.msra.mxu0 0
      %2588 = vmatprep.subr.bf16.mxu0 0
      %2589 = vmatpush1.bf16.msra.mxu0 0
      %2590 = vmatprep.subr.bf16.mxu0 0
      %2591 = vmatpush1.bf16.msra.mxu0 0
      %2592 = vmatprep.subr.bf16.mxu0 0
      %2593 = vmatpush1.bf16.msra.mxu0 0
      %2594 = vmatprep.subr.bf16.mxu0 0
      %2595 = vmatpush1.bf16.msra.mxu0 0
      %2596 = vmatprep.subr.bf16.mxu0 0
      %2597 = vmatpush1.bf16.msra.mxu0 0
      %2598 = vmatprep.subr.bf16.mxu0 0
      %2599 = vmatpush1.bf16.msra.mxu0 0
      %2600 = vmatprep.subr.bf16.mxu0 0
      %2601 = vmatpush1.bf16.msra.mxu0 0
      %2602 = vmatprep.subr.bf16.mxu0 0
      %2603 = vmatpush1.bf16.msra.mxu0 0
      %2604 = vmatprep.subr.bf16.mxu0 0
      %2605 = vmatpush1.bf16.msra.mxu0 0
      %2606 = vmatprep.subr.bf16.mxu0 0
      %2607 = vmatpush1.bf16.msra.mxu0 0
      %2608 = vmatprep.subr.bf16.mxu0 0
      %2609 = vmatpush1.bf16.msra.mxu0 0
      %2610 = vmatprep.mubr.bf16.mxu0 0
      %2611 = vmatmul.mubr.bf16.gmra.mrb[0].mxu0 %v2496
      %v2612 = vpop.f32.mrb[0].mxu0
      %v2613 = vadd.f32 0.0, %v2612
      %v2614 = vpop.f32.mrb[0].mxu0
      %v2615 = vpop.f32.mrb[0].mxu0
      %v2616 = vpop.f32.mrb[0].mxu0
      %2617 = vdwg.mxu0
      %2619 = vrot.lane.b32.xlu0 %v2613, 64
      %v2620 = vpop.permute.xlu0 %2619
      %v2622 = vmul.f32 %v2232, %v2620
      %2624 = vrot.lane.b32.xlu0 %v2622, 64
      %v2625 = vpop.permute.xlu0 %2624
      %v2627 = vsel %vm2366, %v2625, 0.0
      %2628 = vadd.xlane.f32.xlu0 %v2627
      %v2629 = vpop.xlane.xlu0 %2628
      %v2630 = vrot.slane %v2629, 4
      %v2631 = vadd.f32 %v2629, %v2630
      %v2632 = vrot.slane %v2631, 2
      %v2633 = vadd.f32 %v2631, %v2632
      %v2634 = vrot.slane %v2633, 1
      %v2635 = vadd.f32 %v2633, %v2634
      %s2636 = vtos %v2635
      %v2637 = vstv %s2636
      %v2638 = vpack.c.bf16 %v961, %v958
      %v2639 = vpack.c.bf16 %v967, %v964
      %v2640 = vpack.c.bf16 %v973, %v970
      %v2641 = vpack.c.bf16 %v979, %v976
      %2642 = vmatprep.subr.bf16.mxu0 0
      %2643 = vmatpush1.bf16.msra.mxu0 %v2638
      %2644 = vmatprep.subr.bf16.mxu0 0
      %2645 = vmatpush1.bf16.msra.mxu0 %v2639
      %2646 = vmatprep.subr.bf16.mxu0 0
      %2647 = vmatpush1.bf16.msra.mxu0 %v2640
      %2648 = vmatprep.subr.bf16.mxu0 0
      %2649 = vmatpush1.bf16.msra.mxu0 %v2641
      %2650 = vmatprep.subr.bf16.mxu0 0
      %2651 = vmatpush1.bf16.msra.mxu0 0
      %2652 = vmatprep.subr.bf16.mxu0 0
      %2653 = vmatpush1.bf16.msra.mxu0 0
      %2654 = vmatprep.subr.bf16.mxu0 0
      %2655 = vmatpush1.bf16.msra.mxu0 0
      %2656 = vmatprep.subr.bf16.mxu0 0
      %2657 = vmatpush1.bf16.msra.mxu0 0
      %2658 = vmatprep.subr.bf16.mxu0 0
      %2659 = vmatpush1.bf16.msra.mxu0 0
      %2660 = vmatprep.subr.bf16.mxu0 0
      %2661 = vmatpush1.bf16.msra.mxu0 0
      %2662 = vmatprep.subr.bf16.mxu0 0
      %2663 = vmatpush1.bf16.msra.mxu0 0
      %2664 = vmatprep.subr.bf16.mxu0 0
      %2665 = vmatpush1.bf16.msra.mxu0 0
      %2666 = vmatprep.subr.bf16.mxu0 0
      %2667 = vmatpush1.bf16.msra.mxu0 0
      %2668 = vmatprep.subr.bf16.mxu0 0
      %2669 = vmatpush1.bf16.msra.mxu0 0
      %2670 = vmatprep.subr.bf16.mxu0 0
      %2671 = vmatpush1.bf16.msra.mxu0 0
      %2672 = vmatprep.subr.bf16.mxu0 0
      %2673 = vmatpush1.bf16.msra.mxu0 0
      %2674 = vmatprep.mubr.bf16.mxu0 0
      %2675 = vmatmul.mubr.bf16.gmra.mrb[0].mxu0 %v2496
      %v2676 = vpop.f32.mrb[0].mxu0
      %v2677 = vadd.f32 0.0, %v2676
      %v2678 = vpop.f32.mrb[0].mxu0
      %v2679 = vpop.f32.mrb[0].mxu0
      %v2680 = vpop.f32.mrb[0].mxu0
      %2681 = vdwg.mxu0
      %v2682 = vmul.f32 %v2677, %v2677
      %v2683 = vsel %vm2423, %v2682, 0.0
      %2684 = vadd.xlane.f32.xlu0 %v2683
      %v2685 = vpop.xlane.xlu0 %2684
      %v2686 = vrot.slane %v2685, 4
      %v2687 = vadd.f32 %v2685, %v2686
      %v2688 = vrot.slane %v2687, 2
      %v2689 = vadd.f32 %v2687, %v2688
      %v2690 = vrot.slane %v2689, 1
      %v2691 = vadd.f32 %v2689, %v2690
      %s2692 = vtos %v2691
      %v2693 = vstv %s2692
      %v2694 = vsel %vm2435, %v958, 0.0
      %v2695 = vsel %vm2435, %v961, 0.0
      %v2696 = vadd.f32 %v2694, %v2695
      %v2697 = vsel %vm2435, %v964, 0.0
      %v2698 = vadd.f32 %v2696, %v2697
      %v2699 = vsel %vm2435, %v967, 0.0
      %v2700 = vadd.f32 %v2698, %v2699
      %v2701 = vsel %vm2435, %v970, 0.0
      %v2702 = vadd.f32 %v2700, %v2701
      %v2703 = vsel %vm2435, %v973, 0.0
      %v2704 = vadd.f32 %v2702, %v2703
      %v2705 = vsel %vm2435, %v976, 0.0
      %v2706 = vadd.f32 %v2704, %v2705
      %v2707 = vsel %vm2435, %v979, 0.0
      %v2708 = vadd.f32 %v2706, %v2707
      %2709 = vadd.xlane.f32.xlu0 %v2708
      %v2710 = vpop.xlane.xlu0 %2709
      %v2711 = vrot.slane %v2710, 4
      %v2712 = vadd.f32 %v2710, %v2711
      %v2713 = vrot.slane %v2712, 2
      %v2714 = vadd.f32 %v2712, %v2713
      %v2715 = vrot.slane %v2714, 1
      %v2716 = vadd.f32 %v2714, %v2715
      %s2717 = vtos %v2716
      %v2718 = vstv %s2717
      %v2719 = vmax.f32 %v2718, 1e-12
      %v2720 = vrcp.pop %v2719
      %v2721 = vmul.f32 %v2693, %v2720
      %v2722 = vsub.f32 %v2637, %v2721
      %v2723 = vsub.f32 0.0, %v2722
      %v2724 = vmul.f32 %v2723, %v2720
      %2725 = vrot.lane.b32.xlu0 %v2232, 64
      %v2726 = vpop.permute.xlu0 %2725
      %v2728 = vsel %vm2366, %v2726, 0.0
      %2729 = vadd.xlane.f32.xlu0 %v2728
      %v2730 = vpop.xlane.xlu0 %2729
      %v2731 = vmul.f32 %v2730, %v2730
      %v2732 = vsel %vm2423, %v2731, 0.0
      %2733 = vadd.xlane.f32.xlu0 %v2732
      %v2734 = vpop.xlane.xlu0 %2733
      %v2735 = vrot.slane %v2734, 4
      %v2736 = vadd.f32 %v2734, %v2735
      %v2737 = vrot.slane %v2736, 2
      %v2738 = vadd.f32 %v2736, %v2737
      %v2739 = vrot.slane %v2738, 1
      %v2740 = vadd.f32 %v2738, %v2739
      %s2741 = vtos %v2740
      %v2742 = vstv %s2741
      %v2743 = vrsqrt.pop %v2742
      %v2744 = vmul.f32 %v2742, %v2743
      %vm2745 = vcmp.eq.f32.partialorder %v2742, inf
      %v2746 = vsel %vm2745, %v2742, %v2744
      %vm2747 = vcmp.eq.f32.partialorder %v2742, 0.0
      %v2748 = vand.u32 %v2742, 2147483648
      %v2749 = vsel %vm2747, %v2748, %v2746
      %v2750 = vmul.f32 %v2749, 0.03125
      %v2751 = vsub.f32 %v2750, 1.0
      %v2752 = vadd.f32 %v2724, %v2751
      %v2754 = vsel %vm757, %v2236, 0
      %2756 = vmatprep.subr.bf16.mxu0 0
      %2757 = vmatpush1.bf16.msra.mxu0 %v1612
      %2758 = vmatprep.subr.bf16.mxu0 0
      %2759 = vmatpush1.bf16.msra.mxu0 %v1613
      %2760 = vmatprep.subr.bf16.mxu0 0
      %2761 = vmatpush1.bf16.msra.mxu0 %v1614
      %2762 = vmatprep.subr.bf16.mxu0 0
      %2763 = vmatpush1.bf16.msra.mxu0 %v1615
      %2764 = vmatprep.subr.bf16.mxu0 0
      %2765 = vmatpush1.bf16.msra.mxu0 0
      %2766 = vmatprep.subr.bf16.mxu0 0
      %2767 = vmatpush1.bf16.msra.mxu0 0
      %2768 = vmatprep.subr.bf16.mxu0 0
      %2769 = vmatpush1.bf16.msra.mxu0 0
      %2770 = vmatprep.subr.bf16.mxu0 0
      %2771 = vmatpush1.bf16.msra.mxu0 0
      %2772 = vmatprep.subr.bf16.mxu0 0
      %2773 = vmatpush1.bf16.msra.mxu0 0
      %2774 = vmatprep.subr.bf16.mxu0 0
      %2775 = vmatpush1.bf16.msra.mxu0 0
      %2776 = vmatprep.subr.bf16.mxu0 0
      %2777 = vmatpush1.bf16.msra.mxu0 0
      %2778 = vmatprep.subr.bf16.mxu0 0
      %2779 = vmatpush1.bf16.msra.mxu0 0
      %2780 = vmatprep.subr.bf16.mxu0 0
      %2781 = vmatpush1.bf16.msra.mxu0 0
      %2782 = vmatprep.subr.bf16.mxu0 0
      %2783 = vmatpush1.bf16.msra.mxu0 0
      %2784 = vmatprep.subr.bf16.mxu0 0
      %2785 = vmatpush1.bf16.msra.mxu0 0
      %2786 = vmatprep.subr.bf16.mxu0 0
      %2787 = vmatpush1.bf16.msra.mxu0 0
      %2788 = vmatprep.mubr.bf16.mxu0 0
      %2789 = vmatmul.mubr.bf16.gmra.mrb[0].mxu0 %v2754
      %v2790 = vpop.f32.mrb[0].mxu0
      %v2791 = vadd.f32 0.0, %v2790
      %v2792 = vpop.f32.mrb[0].mxu0
      %v2793 = vpop.f32.mrb[0].mxu0
      %v2794 = vpop.f32.mrb[0].mxu0
      %2795 = vdwg.mxu0
      %vm2796 = vcmp.gt.f32.partialorder %v2791, 0.0
      %v2797 = vmin.f32 %v2791, 0.0
      %v2798 = vmul.f32 %v2797, 1.442695
      %v2799 = vpow.pop %v2798
      %v2800 = vsub.f32 %v2799, 1.0
      %v2801 = vmul.f32 %v2800, 1.6732632
      %v2802 = vsel %vm2796, %v2791, %v2801
      %v2803 = vmul.f32 %v2802, 1.050701
      %v2804 = vld [vmem:[%s1137] sm:$0xf]
      %v2805 = vld [vmem:[%s1137 + $0x4] sm:$0xf]
      %v2806 = vld [vmem:[%s1137 + $0x8] sm:$0xf]
      %v2807 = vld [vmem:[%s1137 + $0xc] sm:$0xf]
      %v2808 = vld [vmem:[%s1137 + $0x10] sm:$0xf]
      %v2809 = vld [vmem:[%s1137 + $0x14] sm:$0xf]
      %v2810 = vld [vmem:[%s1137 + $0x18] sm:$0xf]
      %v2811 = vld [vmem:[%s1137 + $0x1c] sm:$0xf]
      %v2820 = vunpack.c.l.b16 %v2804
      %v2821 = vunpack.c.l.b16 %v2805
      %v2822 = vunpack.c.l.b16 %v2806
      %v2823 = vunpack.c.l.b16 %v2807
      %v2824 = vunpack.c.l.b16 %v2808
      %v2825 = vunpack.c.l.b16 %v2809
      %v2826 = vunpack.c.l.b16 %v2810
      %v2827 = vunpack.c.l.b16 %v2811
      %v2828 = vpack.c.b16 %v2821, %v2820
      %v2829 = vpack.c.b16 %v2823, %v2822
      %v2830 = vpack.c.b16 %v2825, %v2824
      %v2831 = vpack.c.b16 %v2827, %v2826
      %2836 = vmatprep.subr.bf16.mxu0 0
      %2837 = vmatpush1.bf16.msra.mxu0 %v2828
      %2838 = vmatprep.subr.bf16.mxu0 0
      %2839 = vmatpush1.bf16.msra.mxu0 %v2829
      %2840 = vmatprep.subr.bf16.mxu0 0
      %2841 = vmatpush1.bf16.msra.mxu0 %v2830
      %2842 = vmatprep.subr.bf16.mxu0 0
      %2843 = vmatpush1.bf16.msra.mxu0 %v2831
      %2844 = vmatprep.subr.bf16.mxu0 0
      %2845 = vmatpush1.bf16.msra.mxu0 0
      %2846 = vmatprep.subr.bf16.mxu0 0
      %2847 = vmatpush1.bf16.msra.mxu0 0
      %2848 = vmatprep.subr.bf16.mxu0 0
      %2849 = vmatpush1.bf16.msra.mxu0 0
      %2850 = vmatprep.subr.bf16.mxu0 0
      %2851 = vmatpush1.bf16.msra.mxu0 0
      %2852 = vmatprep.subr.bf16.mxu0 0
      %2853 = vmatpush1.bf16.msra.mxu0 0
      %2854 = vmatprep.subr.bf16.mxu0 0
      %2855 = vmatpush1.bf16.msra.mxu0 0
      %2856 = vmatprep.subr.bf16.mxu0 0
      %2857 = vmatpush1.bf16.msra.mxu0 0
      %2858 = vmatprep.subr.bf16.mxu0 0
      %2859 = vmatpush1.bf16.msra.mxu0 0
      %2860 = vmatprep.subr.bf16.mxu0 0
      %2861 = vmatpush1.bf16.msra.mxu0 0
      %2862 = vmatprep.subr.bf16.mxu0 0
      %2863 = vmatpush1.bf16.msra.mxu0 0
      %2864 = vmatprep.subr.bf16.mxu0 0
      %2865 = vmatpush1.bf16.msra.mxu0 0
      %2866 = vmatprep.subr.bf16.mxu0 0
      %2867 = vmatpush1.bf16.msra.mxu0 0
      %2868 = vmatprep.mubr.bf16.mxu0 0
      %2869 = vmatmul.mubr.bf16.gmra.mrb[0].mxu0 %v2754
      %v2870 = vpop.f32.mrb[0].mxu0
      %v2871 = vadd.f32 0.0, %v2870
      %v2872 = vpop.f32.mrb[0].mxu0
      %v2873 = vpop.f32.mrb[0].mxu0
      %v2874 = vpop.f32.mrb[0].mxu0
      %2875 = vdwg.mxu0
      %v2876 = vmul.f32 %v2234, %v2871
      %v2877 = vsel %vm2366, %v2876, 0.0
      %2878 = vadd.xlane.f32.xlu0 %v2877
      %v2879 = vpop.xlane.xlu0 %2878
      %v2880 = vrot.slane %v2879, 4
      %v2881 = vadd.f32 %v2879, %v2880
      %v2882 = vrot.slane %v2881, 2
      %v2883 = vadd.f32 %v2881, %v2882
      %v2884 = vrot.slane %v2883, 1
      %v2885 = vadd.f32 %v2883, %v2884
      %s2886 = vtos %v2885
      %v2887 = vstv %s2886
      %v2888 = vpack.c.bf16 %v1159, %v1156
      %v2889 = vpack.c.bf16 %v1165, %v1162
      %v2890 = vpack.c.bf16 %v1171, %v1168
      %v2891 = vpack.c.bf16 %v1177, %v1174
      %2892 = vmatprep.subr.bf16.mxu0 0
      %2893 = vmatpush1.bf16.msra.mxu0 %v2888
      %2894 = vmatprep.subr.bf16.mxu0 0
      %2895 = vmatpush1.bf16.msra.mxu0 %v2889
      %2896 = vmatprep.subr.bf16.mxu0 0
      %2897 = vmatpush1.bf16.msra.mxu0 %v2890
      %2898 = vmatprep.subr.bf16.mxu0 0
      %2899 = vmatpush1.bf16.msra.mxu0 %v2891
      %2900 = vmatprep.subr.bf16.mxu0 0
      %2901 = vmatpush1.bf16.msra.mxu0 0
      %2902 = vmatprep.subr.bf16.mxu0 0
      %2903 = vmatpush1.bf16.msra.mxu0 0
      %2904 = vmatprep.subr.bf16.mxu0 0
      %2905 = vmatpush1.bf16.msra.mxu0 0
      %2906 = vmatprep.subr.bf16.mxu0 0
      %2907 = vmatpush1.bf16.msra.mxu0 0
      %2908 = vmatprep.subr.bf16.mxu0 0
      %2909 = vmatpush1.bf16.msra.mxu0 0
      %2910 = vmatprep.subr.bf16.mxu0 0
      %2911 = vmatpush1.bf16.msra.mxu0 0
      %2912 = vmatprep.subr.bf16.mxu0 0
      %2913 = vmatpush1.bf16.msra.mxu0 0
      %2914 = vmatprep.subr.bf16.mxu0 0
      %2915 = vmatpush1.bf16.msra.mxu0 0
      %2916 = vmatprep.subr.bf16.mxu0 0
      %2917 = vmatpush1.bf16.msra.mxu0 0
      %2918 = vmatprep.subr.bf16.mxu0 0
      %2919 = vmatpush1.bf16.msra.mxu0 0
      %2920 = vmatprep.subr.bf16.mxu0 0
      %2921 = vmatpush1.bf16.msra.mxu0 0
      %2922 = vmatprep.subr.bf16.mxu0 0
      %2923 = vmatpush1.bf16.msra.mxu0 0
      %2924 = vmatprep.mubr.bf16.mxu0 0
      %2925 = vmatmul.mubr.bf16.gmra.mrb[0].mxu0 %v2754
      %v2926 = vpop.f32.mrb[0].mxu0
      %v2927 = vadd.f32 0.0, %v2926
      %v2928 = vpop.f32.mrb[0].mxu0
      %v2929 = vpop.f32.mrb[0].mxu0
      %v2930 = vpop.f32.mrb[0].mxu0
      %2931 = vdwg.mxu0
      %v2932 = vmul.f32 %v2927, %v2927
      %v2933 = vsel %vm2423, %v2932, 0.0
      %2934 = vadd.xlane.f32.xlu0 %v2933
      %v2935 = vpop.xlane.xlu0 %2934
      %v2936 = vrot.slane %v2935, 4
      %v2937 = vadd.f32 %v2935, %v2936
      %v2938 = vrot.slane %v2937, 2
      %v2939 = vadd.f32 %v2937, %v2938
      %v2940 = vrot.slane %v2939, 1
      %v2941 = vadd.f32 %v2939, %v2940
      %s2942 = vtos %v2941
      %v2943 = vstv %s2942
      %v2944 = vsel %vm2435, %v1156, 0.0
      %v2945 = vsel %vm2435, %v1159, 0.0
      %v2946 = vadd.f32 %v2944, %v2945
      %v2947 = vsel %vm2435, %v1162, 0.0
      %v2948 = vadd.f32 %v2946, %v2947
      %v2949 = vsel %vm2435, %v1165, 0.0
      %v2950 = vadd.f32 %v2948, %v2949
      %v2951 = vsel %vm2435, %v1168, 0.0
      %v2952 = vadd.f32 %v2950, %v2951
      %v2953 = vsel %vm2435, %v1171, 0.0
      %v2954 = vadd.f32 %v2952, %v2953
      %v2955 = vsel %vm2435, %v1174, 0.0
      %v2956 = vadd.f32 %v2954, %v2955
      %v2957 = vsel %vm2435, %v1177, 0.0
      %v2958 = vadd.f32 %v2956, %v2957
      %2959 = vadd.xlane.f32.xlu0 %v2958
      %v2960 = vpop.xlane.xlu0 %2959
      %v2961 = vrot.slane %v2960, 4
      %v2962 = vadd.f32 %v2960, %v2961
      %v2963 = vrot.slane %v2962, 2
      %v2964 = vadd.f32 %v2962, %v2963
      %v2965 = vrot.slane %v2964, 1
      %v2966 = vadd.f32 %v2964, %v2965
      %s2967 = vtos %v2966
      %v2968 = vstv %s2967
      %v2969 = vmax.f32 %v2968, 1e-12
      %v2970 = vrcp.pop %v2969
      %v2971 = vmul.f32 %v2943, %v2970
      %v2972 = vsub.f32 %v2887, %v2971
      %v2973 = vsub.f32 0.0, %v2972
      %v2974 = vmul.f32 %v2973, %v2970
      %v2975 = vsel %vm2366, %v2234, 0.0
      %2976 = vadd.xlane.f32.xlu0 %v2975
      %v2977 = vpop.xlane.xlu0 %2976
      %v2978 = vmul.f32 %v2977, %v2977
      %v2979 = vsel %vm2423, %v2978, 0.0
      %2980 = vadd.xlane.f32.xlu0 %v2979
      %v2981 = vpop.xlane.xlu0 %2980
      %v2982 = vrot.slane %v2981, 4
      %v2983 = vadd.f32 %v2981, %v2982
      %v2984 = vrot.slane %v2983, 2
      %v2985 = vadd.f32 %v2983, %v2984
      %v2986 = vrot.slane %v2985, 1
      %v2987 = vadd.f32 %v2985, %v2986
      %s2988 = vtos %v2987
      %v2989 = vstv %s2988
      %v2990 = vrsqrt.pop %v2989
      %v2991 = vmul.f32 %v2989, %v2990
      %vm2992 = vcmp.eq.f32.partialorder %v2989, inf
      %v2993 = vsel %vm2992, %v2989, %v2991
      %vm2994 = vcmp.eq.f32.partialorder %v2989, 0.0
      %v2995 = vand.u32 %v2989, 2147483648
      %v2996 = vsel %vm2994, %v2995, %v2993
      %v2997 = vmul.f32 %v2996, 0.03125
      %v2998 = vsub.f32 %v2997, 1.0
      %v2999 = vadd.f32 %v2974, %v2998
      %3001 = vrot.lane.b32.xlu0 %v2236, 64
      %v3002 = vpop.permute.xlu0 %3001
      %v3004 = vsel %vm757, %v3002, 0
      %3006 = vmatprep.subr.bf16.mxu0 0
      %3007 = vmatpush1.bf16.msra.mxu0 %v1616
      %3008 = vmatprep.subr.bf16.mxu0 0
      %3009 = vmatpush1.bf16.msra.mxu0 %v1617
      %3010 = vmatprep.subr.bf16.mxu0 0
      %3011 = vmatpush1.bf16.msra.mxu0 %v1618
      %3012 = vmatprep.subr.bf16.mxu0 0
      %3013 = vmatpush1.bf16.msra.mxu0 %v1619
      %3014 = vmatprep.subr.bf16.mxu0 0
      %3015 = vmatpush1.bf16.msra.mxu0 0
      %3016 = vmatprep.subr.bf16.mxu0 0
      %3017 = vmatpush1.bf16.msra.mxu0 0
      %3018 = vmatprep.subr.bf16.mxu0 0
      %3019 = vmatpush1.bf16.msra.mxu0 0
      %3020 = vmatprep.subr.bf16.mxu0 0
      %3021 = vmatpush1.bf16.msra.mxu0 0
      %3022 = vmatprep.subr.bf16.mxu0 0
      %3023 = vmatpush1.bf16.msra.mxu0 0
      %3024 = vmatprep.subr.bf16.mxu0 0
      %3025 = vmatpush1.bf16.msra.mxu0 0
      %3026 = vmatprep.subr.bf16.mxu0 0
      %3027 = vmatpush1.bf16.msra.mxu0 0
      %3028 = vmatprep.subr.bf16.mxu0 0
      %3029 = vmatpush1.bf16.msra.mxu0 0
      %3030 = vmatprep.subr.bf16.mxu0 0
      %3031 = vmatpush1.bf16.msra.mxu0 0
      %3032 = vmatprep.subr.bf16.mxu0 0
      %3033 = vmatpush1.bf16.msra.mxu0 0
      %3034 = vmatprep.subr.bf16.mxu0 0
      %3035 = vmatpush1.bf16.msra.mxu0 0
      %3036 = vmatprep.subr.bf16.mxu0 0
      %3037 = vmatpush1.bf16.msra.mxu0 0
      %3038 = vmatprep.mubr.bf16.mxu0 0
      %3039 = vmatmul.mubr.bf16.gmra.mrb[0].mxu0 %v3004
      %v3040 = vpop.f32.mrb[0].mxu0
      %v3041 = vadd.f32 0.0, %v3040
      %v3042 = vpop.f32.mrb[0].mxu0
      %v3043 = vpop.f32.mrb[0].mxu0
      %v3044 = vpop.f32.mrb[0].mxu0
      %3045 = vdwg.mxu0
      %vm3046 = vcmp.gt.f32.partialorder %v3041, 0.0
      %v3047 = vmin.f32 %v3041, 0.0
      %v3048 = vmul.f32 %v3047, 1.442695
      %v3049 = vpow.pop %v3048
      %v3050 = vsub.f32 %v3049, 1.0
      %v3051 = vmul.f32 %v3050, 1.6732632
      %v3052 = vsel %vm3046, %v3041, %v3051
      %v3053 = vmul.f32 %v3052, 1.050701
      %v3054 = vld [vmem:[%s1335] sm:$0xf]
      %v3055 = vld [vmem:[%s1335 + $0x4] sm:$0xf]
      %v3056 = vld [vmem:[%s1335 + $0x8] sm:$0xf]
      %v3057 = vld [vmem:[%s1335 + $0xc] sm:$0xf]
      %v3058 = vld [vmem:[%s1335 + $0x10] sm:$0xf]
      %v3059 = vld [vmem:[%s1335 + $0x14] sm:$0xf]
      %v3060 = vld [vmem:[%s1335 + $0x18] sm:$0xf]
      %v3061 = vld [vmem:[%s1335 + $0x1c] sm:$0xf]
      %v3070 = vunpack.c.l.b16 %v3054
      %v3071 = vunpack.c.l.b16 %v3055
      %v3072 = vunpack.c.l.b16 %v3056
      %v3073 = vunpack.c.l.b16 %v3057
      %v3074 = vunpack.c.l.b16 %v3058
      %v3075 = vunpack.c.l.b16 %v3059
      %v3076 = vunpack.c.l.b16 %v3060
      %v3077 = vunpack.c.l.b16 %v3061
      %v3078 = vpack.c.b16 %v3071, %v3070
      %v3079 = vpack.c.b16 %v3073, %v3072
      %v3080 = vpack.c.b16 %v3075, %v3074
      %v3081 = vpack.c.b16 %v3077, %v3076
      %3086 = vmatprep.subr.bf16.mxu0 0
      %3087 = vmatpush1.bf16.msra.mxu0 %v3078
      %3088 = vmatprep.subr.bf16.mxu0 0
      %3089 = vmatpush1.bf16.msra.mxu0 %v3079
      %3090 = vmatprep.subr.bf16.mxu0 0
      %3091 = vmatpush1.bf16.msra.mxu0 %v3080
      %3092 = vmatprep.subr.bf16.mxu0 0
      %3093 = vmatpush1.bf16.msra.mxu0 %v3081
      %3094 = vmatprep.subr.bf16.mxu0 0
      %3095 = vmatpush1.bf16.msra.mxu0 0
      %3096 = vmatprep.subr.bf16.mxu0 0
      %3097 = vmatpush1.bf16.msra.mxu0 0
      %3098 = vmatprep.subr.bf16.mxu0 0
      %3099 = vmatpush1.bf16.msra.mxu0 0
      %3100 = vmatprep.subr.bf16.mxu0 0
      %3101 = vmatpush1.bf16.msra.mxu0 0
      %3102 = vmatprep.subr.bf16.mxu0 0
      %3103 = vmatpush1.bf16.msra.mxu0 0
      %3104 = vmatprep.subr.bf16.mxu0 0
      %3105 = vmatpush1.bf16.msra.mxu0 0
      %3106 = vmatprep.subr.bf16.mxu0 0
      %3107 = vmatpush1.bf16.msra.mxu0 0
      %3108 = vmatprep.subr.bf16.mxu0 0
      %3109 = vmatpush1.bf16.msra.mxu0 0
      %3110 = vmatprep.subr.bf16.mxu0 0
      %3111 = vmatpush1.bf16.msra.mxu0 0
      %3112 = vmatprep.subr.bf16.mxu0 0
      %3113 = vmatpush1.bf16.msra.mxu0 0
      %3114 = vmatprep.subr.bf16.mxu0 0
      %3115 = vmatpush1.bf16.msra.mxu0 0
      %3116 = vmatprep.subr.bf16.mxu0 0
      %3117 = vmatpush1.bf16.msra.mxu0 0
      %3118 = vmatprep.mubr.bf16.mxu0 0
      %3119 = vmatmul.mubr.bf16.gmra.mrb[0].mxu0 %v3004
      %v3120 = vpop.f32.mrb[0].mxu0
      %v3121 = vadd.f32 0.0, %v3120
      %v3122 = vpop.f32.mrb[0].mxu0
      %v3123 = vpop.f32.mrb[0].mxu0
      %v3124 = vpop.f32.mrb[0].mxu0
      %3125 = vdwg.mxu0
      %3127 = vrot.lane.b32.xlu0 %v3121, 64
      %v3128 = vpop.permute.xlu0 %3127
      %v3130 = vmul.f32 %v2234, %v3128
      %3132 = vrot.lane.b32.xlu0 %v3130, 64
      %v3133 = vpop.permute.xlu0 %3132
      %v3135 = vsel %vm2366, %v3133, 0.0
      %3136 = vadd.xlane.f32.xlu0 %v3135
      %v3137 = vpop.xlane.xlu0 %3136
      %v3138 = vrot.slane %v3137, 4
      %v3139 = vadd.f32 %v3137, %v3138
      %v3140 = vrot.slane %v3139, 2
      %v3141 = vadd.f32 %v3139, %v3140
      %v3142 = vrot.slane %v3141, 1
      %v3143 = vadd.f32 %v3141, %v3142
      %s3144 = vtos %v3143
      %v3145 = vstv %s3144
      %v3146 = vpack.c.bf16 %v1357, %v1354
      %v3147 = vpack.c.bf16 %v1363, %v1360
      %v3148 = vpack.c.bf16 %v1369, %v1366
      %v3149 = vpack.c.bf16 %v1375, %v1372
      %3150 = vmatprep.subr.bf16.mxu0 0
      %3151 = vmatpush1.bf16.msra.mxu0 %v3146
      %3152 = vmatprep.subr.bf16.mxu0 0
      %3153 = vmatpush1.bf16.msra.mxu0 %v3147
      %3154 = vmatprep.subr.bf16.mxu0 0
      %3155 = vmatpush1.bf16.msra.mxu0 %v3148
      %3156 = vmatprep.subr.bf16.mxu0 0
      %3157 = vmatpush1.bf16.msra.mxu0 %v3149
      %3158 = vmatprep.subr.bf16.mxu0 0
      %3159 = vmatpush1.bf16.msra.mxu0 0
      %3160 = vmatprep.subr.bf16.mxu0 0
      %3161 = vmatpush1.bf16.msra.mxu0 0
      %3162 = vmatprep.subr.bf16.mxu0 0
      %3163 = vmatpush1.bf16.msra.mxu0 0
      %3164 = vmatprep.subr.bf16.mxu0 0
      %3165 = vmatpush1.bf16.msra.mxu0 0
      %3166 = vmatprep.subr.bf16.mxu0 0
      %3167 = vmatpush1.bf16.msra.mxu0 0
      %3168 = vmatprep.subr.bf16.mxu0 0
      %3169 = vmatpush1.bf16.msra.mxu0 0
      %3170 = vmatprep.subr.bf16.mxu0 0
      %3171 = vmatpush1.bf16.msra.mxu0 0
      %3172 = vmatprep.subr.bf16.mxu0 0
      %3173 = vmatpush1.bf16.msra.mxu0 0
      %3174 = vmatprep.subr.bf16.mxu0 0
      %3175 = vmatpush1.bf16.msra.mxu0 0
      %3176 = vmatprep.subr.bf16.mxu0 0
      %3177 = vmatpush1.bf16.msra.mxu0 0
      %3178 = vmatprep.subr.bf16.mxu0 0
      %3179 = vmatpush1.bf16.msra.mxu0 0
      %3180 = vmatprep.subr.bf16.mxu0 0
      %3181 = vmatpush1.bf16.msra.mxu0 0
      %3182 = vmatprep.mubr.bf16.mxu0 0
      %3183 = vmatmul.mubr.bf16.gmra.mrb[0].mxu0 %v3004
      %v3184 = vpop.f32.mrb[0].mxu0
      %v3185 = vadd.f32 0.0, %v3184
      %v3186 = vpop.f32.mrb[0].mxu0
      %v3187 = vpop.f32.mrb[0].mxu0
      %v3188 = vpop.f32.mrb[0].mxu0
      %3189 = vdwg.mxu0
      %v3190 = vmul.f32 %v3185, %v3185
      %v3191 = vsel %vm2423, %v3190, 0.0
      %3192 = vadd.xlane.f32.xlu0 %v3191
      %v3193 = vpop.xlane.xlu0 %3192
      %v3194 = vrot.slane %v3193, 4
      %v3195 = vadd.f32 %v3193, %v3194
      %v3196 = vrot.slane %v3195, 2
      %v3197 = vadd.f32 %v3195, %v3196
      %v3198 = vrot.slane %v3197, 1
      %v3199 = vadd.f32 %v3197, %v3198
      %s3200 = vtos %v3199
      %v3201 = vstv %s3200
      %v3202 = vsel %vm2435, %v1354, 0.0
      %v3203 = vsel %vm2435, %v1357, 0.0
      %v3204 = vadd.f32 %v3202, %v3203
      %v3205 = vsel %vm2435, %v1360, 0.0
      %v3206 = vadd.f32 %v3204, %v3205
      %v3207 = vsel %vm2435, %v1363, 0.0
      %v3208 = vadd.f32 %v3206, %v3207
      %v3209 = vsel %vm2435, %v1366, 0.0
      %v3210 = vadd.f32 %v3208, %v3209
      %v3211 = vsel %vm2435, %v1369, 0.0
      %v3212 = vadd.f32 %v3210, %v3211
      %v3213 = vsel %vm2435, %v1372, 0.0
      %v3214 = vadd.f32 %v3212, %v3213
      %v3215 = vsel %vm2435, %v1375, 0.0
      %v3216 = vadd.f32 %v3214, %v3215
      %3217 = vadd.xlane.f32.xlu0 %v3216
      %v3218 = vpop.xlane.xlu0 %3217
      %v3219 = vrot.slane %v3218, 4
      %v3220 = vadd.f32 %v3218, %v3219
      %v3221 = vrot.slane %v3220, 2
      %v3222 = vadd.f32 %v3220, %v3221
      %v3223 = vrot.slane %v3222, 1
      %v3224 = vadd.f32 %v3222, %v3223
      %s3225 = vtos %v3224
      %v3226 = vstv %s3225
      %v3227 = vmax.f32 %v3226, 1e-12
      %v3228 = vrcp.pop %v3227
      %v3229 = vmul.f32 %v3201, %v3228
      %v3230 = vsub.f32 %v3145, %v3229
      %v3231 = vsub.f32 0.0, %v3230
      %v3232 = vmul.f32 %v3231, %v3228
      %3233 = vrot.lane.b32.xlu0 %v2234, 64
      %v3234 = vpop.permute.xlu0 %3233
      %v3236 = vsel %vm2366, %v3234, 0.0
      %3237 = vadd.xlane.f32.xlu0 %v3236
      %v3238 = vpop.xlane.xlu0 %3237
      %v3239 = vmul.f32 %v3238, %v3238
      %v3240 = vsel %vm2423, %v3239, 0.0
      %3241 = vadd.xlane.f32.xlu0 %v3240
      %v3242 = vpop.xlane.xlu0 %3241
      %v3243 = vrot.slane %v3242, 4
      %v3244 = vadd.f32 %v3242, %v3243
      %v3245 = vrot.slane %v3244, 2
      %v3246 = vadd.f32 %v3244, %v3245
      %v3247 = vrot.slane %v3246, 1
      %v3248 = vadd.f32 %v3246, %v3247
      %s3249 = vtos %v3248
      %v3250 = vstv %s3249
      %v3251 = vrsqrt.pop %v3250
      %v3252 = vmul.f32 %v3250, %v3251
      %vm3253 = vcmp.eq.f32.partialorder %v3250, inf
      %v3254 = vsel %vm3253, %v3250, %v3252
      %vm3255 = vcmp.eq.f32.partialorder %v3250, 0.0
      %v3256 = vand.u32 %v3250, 2147483648
      %v3257 = vsel %vm3255, %v3256, %v3254
      %v3258 = vmul.f32 %v3257, 0.03125
      %v3259 = vsub.f32 %v3258, 1.0
      %v3260 = vadd.f32 %v3232, %v3259
      %3262 = vrot.lane.b32.xlu0 %v2545, 64
      %v3263 = vpop.permute.xlu0 %3262
      %3266 = vrot.lane.b32.xlu0 %v3053, 64
      %v3267 = vpop.permute.xlu0 %3266
      %v3269 = vsel %vm757, %v2292, %v3263
      %v3270 = vsel %vm757, %v2803, %v3267
      %v3273 = vcombine.low %v3269, %v3270
      %3275 = vst [vmem:[%s405] sm:$0xff] %v3273
      %v3276 = vsel %vm2435, %v2491, %v2752
      %vm3277 = vcmask 15360
      %v3278 = vsel %vm3277, %v3276, %v2999
      %vm3279 = vcmask 23552
      %v3280 = vsel %vm3279, %v3278, %v3260
      %vm3281 = vcmask 24576
      %3282 = vst.msk [vmem:[%s409] sm:$0x1] %vm3281, %v3280
      %s3283 = smul.u32 2, %s22
      %p3284 = scmp.lt.s32.totalorder %s3283, 3
      %s3285 = scalar_select %p3284, %s3283, 3
      %s3286 = smul.addr %s3285, 4
      %s3287 = scalar_lea.vmem %s8, %s3286
      %s3288 = smul.u32 2, %s22
      %p3289 = scmp.lt.s32.totalorder %s3288, 3
      %s3290 = scalar_select %p3289, %s3288, 3
      %s3291 = smul.addr %s3290, 4
      %s3292 = scalar_lea.vmem %s9, %s3291
      %p3293 = scmp.lt.s32.totalorder %s22, 1
      %s3294 = scalar_select %p3293, %s22, 1
      %s3295 = scalar_lea.vmem %s10, %s3294
      // Predicated region
      $region53: #{dmon_net_forward_batched.1} parent=51 // pred_check
        %p3296 = pneg %p218
      $region54: #{dmon_net_forward_batched.1} parent=51 // pred_check_branch
        %3298 = sbr.rel (%p3296) target = $region56
      $region55: #{dmon_net_forward_batched.1} parent=51 // pred_region
        %s3299 = smul.u32 2, %s22
      $region56: #{dmon_net_forward_batched.1} parent=51 // pred_fallthru
        _
      // Predicated region
      $region57: #{dmon_net_forward_batched.1} parent=51 // pred_check
        %p3300 = pneg %p244
      $region58: #{dmon_net_forward_batched.1} parent=51 // pred_check_branch
        %3302 = sbr.rel (%p3300) target = $region60
      $region59: #{dmon_net_forward_batched.1} parent=51 // pred_region
        %s3303 = smul.u32 2, %s22
      $region60: #{dmon_net_forward_batched.1} parent=51 // pred_fallthru
        _
      // Predicated region
      $region61: #{dmon_net_forward_batched.1} parent=51 // pred_check
        %p3304 = pneg %p270
      $region62: #{dmon_net_forward_batched.1} parent=51 // pred_check_branch
        %3306 = sbr.rel (%p3304) target = $region64
      $region63: #{dmon_net_forward_batched.1} parent=51 // pred_region
        _
      $region64: #{dmon_net_forward_batched.1} parent=51 // pred_fallthru
        _
    $region52: #{dmon_net_forward_batched.1} parent=5 // pred_fallthru
      _
    %p3307 = scmp.le.s32.totalorder 2, %s17
    // Predicated region
    $region65: #{dmon_net_forward_batched.1} parent=5 // pred_check
      %p3308 = pneg %p3307
    $region66: #{dmon_net_forward_batched.1} parent=5 // pred_check_branch
      %3310 = sbr.rel (%p3308) target = $region68
    $region67: #{dmon_net_forward_batched.1} parent=5 // pred_region
      %s3311 = ssub.s32 %s17, 2
      // Predicated region
      $region69: #{dmon_net_forward_batched.1} parent=67 // pred_check
        %p3312 = pneg %p224
      $region70: #{dmon_net_forward_batched.1} parent=67 // pred_check_branch
        %3314 = sbr.rel (%p3312) target = $region72
      $region71: #{dmon_net_forward_batched.1} parent=67 // pred_region
        %s3315 = smul.u32 2, %s23
        %p3316 = scmp.lt.s32.totalorder %s3315, 3
        %s3317 = scalar_select %p3316, %s3315, 3
        %s3318 = smul.addr %s3317, 4
        %s3319 = scalar_lea.vmem %s8, %s3318
      $region72: #{dmon_net_forward_batched.1} parent=67 // pred_fallthru
        _
      // Predicated region
      $region73: #{dmon_net_forward_batched.1} parent=67 // pred_check
        %p3320 = pneg %p250
      $region74: #{dmon_net_forward_batched.1} parent=67 // pred_check_branch
        %3322 = sbr.rel (%p3320) target = $region76
      $region75: #{dmon_net_forward_batched.1} parent=67 // pred_region
        %s3323 = smul.u32 2, %s23
        %p3324 = scmp.lt.s32.totalorder %s3323, 3
        %s3325 = scalar_select %p3324, %s3323, 3
        %s3326 = smul.addr %s3325, 4
        %s3327 = scalar_lea.vmem %s9, %s3326
      $region76: #{dmon_net_forward_batched.1} parent=67 // pred_fallthru
        _
      // Predicated region
      $region77: #{dmon_net_forward_batched.1} parent=67 // pred_check
        %p3328 = pneg %p276
      $region78: #{dmon_net_forward_batched.1} parent=67 // pred_check_branch
        %3330 = sbr.rel (%p3328) target = $region80
      $region79: #{dmon_net_forward_batched.1} parent=67 // pred_region
        %p3331 = scmp.lt.s32.totalorder %s23, 1
        %s3332 = scalar_select %p3331, %s23, 1
        %s3333 = scalar_lea.vmem %s10, %s3332
      $region80: #{dmon_net_forward_batched.1} parent=67 // pred_fallthru
        _
    $region68: #{dmon_net_forward_batched.1} parent=5 // pred_fallthru
      _
  $region6: #{dmon_net_forward_batched.1} parent=0 // loop_footer
    %s21 = sadd.s32 1, %s17
  $region7: #{dmon_net_forward_batched.1} parent=0 // loop_footer_branch
    %16 = sbr.rel target = $region3
  $region8: #{dmon_net_forward_batched.1} parent=0 // loop_exit
    _

</llo_original>
